<compile_context>
chip_gen: v7x
topology: tpu7x:2x2x1
jax: 0.10.0
libtpu: 0.0.40
codegen_flags: <defaults>
</compile_context>

<pallas_src>
import jax
import jax.numpy as jnp
from jax.experimental import pallas as pl
from jax.experimental.pallas import tpu as pltpu

# ---------------------------------------------------------------------------
# Model dimensions (small, synthetic)
# ---------------------------------------------------------------------------
BATCH = 2
SRC_LEN = 6
TRG_LEN = 8
SRC_VOCAB = 16
TRG_VOCAB = 16
EMB = 16
HID = 32          # GRU hidden size == latent size (hidden = z.unsqueeze(0))
F32 = jnp.float32


def _vmem():
    return pl.BlockSpec(memory_space=pltpu.MemorySpace.VMEM)


# ---------------------------------------------------------------------------
# In-kernel helpers (operate on loaded arrays, traced once)
# ---------------------------------------------------------------------------
def _one_hot(ids_col, vocab):
    """ids_col: (B, 1) int32 -> (B, vocab) f32 one-hot."""
    lane = jax.lax.broadcasted_iota(jnp.int32, (ids_col.shape[0], vocab), 1)
    return (ids_col == lane).astype(F32)


def _gru_step(x, h, w_ih, w_hh, b_ih, b_hh):
    """torch.nn.GRU cell semantics, gates stacked r|z|n along the last axis."""
    gi = jnp.dot(x, w_ih, preferred_element_type=jnp.float32) + b_ih   # (B, 3H)
    gh = jnp.dot(h, w_hh, preferred_element_type=jnp.float32) + b_hh   # (B, 3H)
    i_r, i_z, i_n = gi[:, :HID], gi[:, HID:2 * HID], gi[:, 2 * HID:]
    h_r, h_z, h_n = gh[:, :HID], gh[:, HID:2 * HID], gh[:, 2 * HID:]
    r = jax.nn.sigmoid(i_r + h_r)
    z = jax.nn.sigmoid(i_z + h_z)
    n = jnp.tanh(i_n + r * h_n)
    return (1.0 - z) * n + z * h


# ---------------------------------------------------------------------------
# The single fused kernel
# ---------------------------------------------------------------------------
def _vae_kernel(src_ref, trg_ref, eps_ref,
                enc_emb_ref, enc_wih_ref, enc_whh_ref, enc_bih_ref, enc_bhh_ref,
                wmu_ref, bmu_ref, wlv_ref, blv_ref,
                dec_emb_ref, dec_wih_ref, dec_whh_ref, dec_bih_ref, dec_bhh_ref,
                wout_ref, bout_ref,
                z_ref, mu_ref, lv_ref, logits_ref, hid_ref):
    B = eps_ref.shape[0]
    S = src_ref.shape[1]
    T = trg_ref.shape[1]

    # Load weights once; they stay in vregs/VMEM for the whole unroll.
    enc_emb = enc_emb_ref[...]
    enc_wih, enc_whh = enc_wih_ref[...], enc_whh_ref[...]
    enc_bih, enc_bhh = enc_bih_ref[...], enc_bhh_ref[...]
    dec_emb = dec_emb_ref[...]
    dec_wih, dec_whh = dec_wih_ref[...], dec_whh_ref[...]
    dec_bih, dec_bhh = dec_bih_ref[...], dec_bhh_ref[...]
    w_out, b_out = wout_ref[...], bout_ref[...]

    # ---------------- encoder: GRU over src ----------------
    h = jnp.zeros((B, HID), F32)
    for t in range(S):                                   # fully unrolled (S=6)
        ids = src_ref[:, t:t + 1]                        # (B, 1) int32
        x = jnp.dot(_one_hot(ids, SRC_VOCAB), enc_emb,
                    preferred_element_type=jnp.float32)  # (B, E)
        h = _gru_step(x, h, enc_wih, enc_whh, enc_bih, enc_bhh)

    # ---------------- latent head + reparameterization ----------------
    mu = jnp.dot(h, wmu_ref[...], preferred_element_type=jnp.float32) + bmu_ref[...]
    lv = jnp.dot(h, wlv_ref[...], preferred_element_type=jnp.float32) + blv_ref[...]
    z = mu + jnp.exp(0.5 * lv) * eps_ref[...]
    z_ref[...] = z
    mu_ref[...] = mu
    lv_ref[...] = lv

    # ---------------- decoder: greedy unroll (teacher_forcing=False) -------
    dec_h = z                                            # hidden = z.unsqueeze(0)
    ids = trg_ref[:, 0:1]                                # (B, 1) int32
    lane = jax.lax.broadcasted_iota(jnp.int32, (B, TRG_VOCAB), 1)
    outs = [jnp.zeros((B, TRG_VOCAB), F32)]              # output_seq[:, 0] stays 0
    for t in range(1, T):                                # fully unrolled (7 steps)
        x = jnp.dot(_one_hot(ids, TRG_VOCAB), dec_emb,
                    preferred_element_type=jnp.float32)  # (B, E)
        dec_h = _gru_step(x, dec_h, dec_wih, dec_whh, dec_bih, dec_bhh)
        logits = jnp.dot(dec_h, w_out,
                         preferred_element_type=jnp.float32) + b_out  # (B, V)
        outs.append(logits)
        # greedy argmax, lowest-index tie-break (matches torch.argmax)
        row_max = jnp.max(logits, axis=-1, keepdims=True)
        ids = jnp.min(jnp.where(logits == row_max, lane, TRG_VOCAB),
                      axis=-1, keepdims=True)            # (B, 1) int32

    # One lane-dense (B, T*V) = (2, 128) store instead of 8 masked 16-lane ones.
    logits_ref[...] = jnp.concatenate(outs, axis=1)
    hid_ref[...] = dec_h


# ---------------------------------------------------------------------------
# Parameter construction (deterministic, synthetic)
# ---------------------------------------------------------------------------
def init_params(key):
    ks = jax.random.split(key, 16)
    s = 0.1

    def n(k, shape):
        return (s * jax.random.normal(k, shape)).astype(F32)

    return dict(
        enc_emb=n(ks[0], (SRC_VOCAB, EMB)),
        enc_w_ih=n(ks[1], (EMB, 3 * HID)),     # gates stacked r|z|n
        enc_w_hh=n(ks[2], (HID, 3 * HID)),
        enc_b_ih=n(ks[3], (1, 3 * HID)),
        enc_b_hh=n(ks[4], (1, 3 * HID)),
        w_mu=n(ks[5], (HID, HID)),
        b_mu=n(ks[6], (1, HID)),
        w_lv=n(ks[7], (HID, HID)),
        b_lv=n(ks[8], (1, HID)),
        dec_emb=n(ks[9], (TRG_VOCAB, EMB)),
        dec_w_ih=n(ks[10], (EMB, 3 * HID)),
        dec_w_hh=n(ks[11], (HID, 3 * HID)),
        dec_b_ih=n(ks[12], (1, 3 * HID)),
        dec_b_hh=n(ks[13], (1, 3 * HID)),
        w_out=n(ks[14], (HID, TRG_VOCAB)),
        b_out=n(ks[15], (1, TRG_VOCAB)),
    )


# ---------------------------------------------------------------------------
# Forward pass (mirrors VAE.forward with teacher_forcing=False)
# ---------------------------------------------------------------------------
@jax.jit
def vae_forward(params, src, trg, eps):
    """src: (B, S) int32, trg: (B, T) int32, eps: (B, H) f32.

    Returns (z, mu, logvar, output_seq, hidden):
      z, mu, logvar : (B, H)
      output_seq    : (B, T, TRG_VOCAB)  (row t=0 is all zeros)
      hidden        : (1, B, H)
    """
    B, T = trg.shape
    out_shapes = (
        jax.ShapeDtypeStruct((B, HID), F32),                 # z
        jax.ShapeDtypeStruct((B, HID), F32),                 # mu
        jax.ShapeDtypeStruct((B, HID), F32),                 # logvar
        jax.ShapeDtypeStruct((B, T * TRG_VOCAB), F32),       # lane-dense logits slab
        jax.ShapeDtypeStruct((B, HID), F32),                 # final decoder hidden
    )
    z, mu, logvar, slab, dec_h = pl.pallas_call(
        _vae_kernel,
        out_shape=out_shapes,
        in_specs=[_vmem()] * 19,
        out_specs=(_vmem(),) * 5,
    )(src, trg, eps,
      params["enc_emb"], params["enc_w_ih"], params["enc_w_hh"],
      params["enc_b_ih"], params["enc_b_hh"],
      params["w_mu"], params["b_mu"], params["w_lv"], params["b_lv"],
      params["dec_emb"], params["dec_w_ih"], params["dec_w_hh"],
      params["dec_b_ih"], params["dec_b_hh"],
      params["w_out"], params["b_out"])

    output_seq = slab.reshape(B, T, TRG_VOCAB)
    hidden = dec_h[None, :, :]
    # TODO(synk): teacher_forcing branch needs host-side torch.rand(1).item();
    # only the default (teacher_forcing=False) path is implemented.
    return z, mu, logvar, output_seq, hidden


# ---------------------------------------------------------------------------
if __name__ == "__main__":
    key = jax.random.PRNGKey(0)
    k_par, k_src, k_trg, k_eps = jax.random.split(key, 4)

    params = init_params(k_par)
    src = jax.random.randint(k_src, (BATCH, SRC_LEN), 0, SRC_VOCAB, dtype=jnp.int32)
    trg = jax.random.randint(k_trg, (BATCH, TRG_LEN), 0, TRG_VOCAB, dtype=jnp.int32)
    eps = jax.random.normal(k_eps, (BATCH, HID), dtype=F32)

    z, mu, logvar, output_seq, hidden = vae_forward(params, src, trg, eps)
    jax.block_until_ready((z, mu, logvar, output_seq, hidden))

    assert z.shape == (BATCH, HID)
    assert mu.shape == (BATCH, HID)
    assert logvar.shape == (BATCH, HID)
    assert output_seq.shape == (BATCH, TRG_LEN, TRG_VOCAB)
    assert hidden.shape == (1, BATCH, HID)
    assert bool(jnp.all(output_seq[:, 0] == 0.0))
    assert bool(jnp.all(jnp.isfinite(output_seq)))

    print("KERNEL_OK")
</pallas_src>

<mosaic_0001>
module attributes {stable_mosaic.version = 11 : i64} {
  func.func @_vae_kernel(%arg0: memref<2x6xi32, #tpu.memory_space<vmem>>, %arg1: memref<2x8xi32, #tpu.memory_space<vmem>>, %arg2: memref<2x32xf32, #tpu.memory_space<vmem>>, %arg3: memref<16x16xf32, #tpu.memory_space<vmem>>, %arg4: memref<16x96xf32, #tpu.memory_space<vmem>>, %arg5: memref<32x96xf32, #tpu.memory_space<vmem>>, %arg6: memref<1x96xf32, #tpu.memory_space<vmem>>, %arg7: memref<1x96xf32, #tpu.memory_space<vmem>>, %arg8: memref<32x32xf32, #tpu.memory_space<vmem>>, %arg9: memref<1x32xf32, #tpu.memory_space<vmem>>, %arg10: memref<32x32xf32, #tpu.memory_space<vmem>>, %arg11: memref<1x32xf32, #tpu.memory_space<vmem>>, %arg12: memref<16x16xf32, #tpu.memory_space<vmem>>, %arg13: memref<16x96xf32, #tpu.memory_space<vmem>>, %arg14: memref<32x96xf32, #tpu.memory_space<vmem>>, %arg15: memref<1x96xf32, #tpu.memory_space<vmem>>, %arg16: memref<1x96xf32, #tpu.memory_space<vmem>>, %arg17: memref<32x16xf32, #tpu.memory_space<vmem>>, %arg18: memref<1x16xf32, #tpu.memory_space<vmem>>, %arg19: memref<2x32xf32, #tpu.memory_space<vmem>>, %arg20: memref<2x32xf32, #tpu.memory_space<vmem>>, %arg21: memref<2x32xf32, #tpu.memory_space<vmem>>, %arg22: memref<2x128xf32, #tpu.memory_space<vmem>>, %arg23: memref<2x32xf32, #tpu.memory_space<vmem>>) attributes {dimension_semantics = [], scalar_prefetch = 0 : i64, scratch_operands = 0 : i64, tpu.core_type = #tpu.core_type<tc>} {
    %c0 = arith.constant 0 : index
    %c0_0 = arith.constant 0 : index
    %0 = vector.load %arg3[%c0, %c0_0] : memref<16x16xf32, #tpu.memory_space<vmem>>, vector<16x16xf32>
    %c0_1 = arith.constant 0 : index
    %c0_2 = arith.constant 0 : index
    %1 = vector.load %arg4[%c0_1, %c0_2] : memref<16x96xf32, #tpu.memory_space<vmem>>, vector<16x96xf32>
    %c0_3 = arith.constant 0 : index
    %c0_4 = arith.constant 0 : index
    %2 = vector.load %arg5[%c0_3, %c0_4] : memref<32x96xf32, #tpu.memory_space<vmem>>, vector<32x96xf32>
    %c0_5 = arith.constant 0 : index
    %c0_6 = arith.constant 0 : index
    %3 = vector.load %arg6[%c0_5, %c0_6] : memref<1x96xf32, #tpu.memory_space<vmem>>, vector<1x96xf32>
    %c0_7 = arith.constant 0 : index
    %c0_8 = arith.constant 0 : index
    %4 = vector.load %arg7[%c0_7, %c0_8] : memref<1x96xf32, #tpu.memory_space<vmem>>, vector<1x96xf32>
    %c0_9 = arith.constant 0 : index
    %c0_10 = arith.constant 0 : index
    %5 = vector.load %arg12[%c0_9, %c0_10] : memref<16x16xf32, #tpu.memory_space<vmem>>, vector<16x16xf32>
    %c0_11 = arith.constant 0 : index
    %c0_12 = arith.constant 0 : index
    %6 = vector.load %arg13[%c0_11, %c0_12] : memref<16x96xf32, #tpu.memory_space<vmem>>, vector<16x96xf32>
    %c0_13 = arith.constant 0 : index
    %c0_14 = arith.constant 0 : index
    %7 = vector.load %arg14[%c0_13, %c0_14] : memref<32x96xf32, #tpu.memory_space<vmem>>, vector<32x96xf32>
    %c0_15 = arith.constant 0 : index
    %c0_16 = arith.constant 0 : index
    %8 = vector.load %arg15[%c0_15, %c0_16] : memref<1x96xf32, #tpu.memory_space<vmem>>, vector<1x96xf32>
    %c0_17 = arith.constant 0 : index
    %c0_18 = arith.constant 0 : index
    %9 = vector.load %arg16[%c0_17, %c0_18] : memref<1x96xf32, #tpu.memory_space<vmem>>, vector<1x96xf32>
    %c0_19 = arith.constant 0 : index
    %c0_20 = arith.constant 0 : index
    %10 = vector.load %arg17[%c0_19, %c0_20] : memref<32x16xf32, #tpu.memory_space<vmem>>, vector<32x16xf32>
    %c0_21 = arith.constant 0 : index
    %c0_22 = arith.constant 0 : index
    %11 = vector.load %arg18[%c0_21, %c0_22] : memref<1x16xf32, #tpu.memory_space<vmem>>, vector<1x16xf32>
    %cst = arith.constant 0.000000e+00 : f32
    %12 = vector.broadcast %cst : f32 to vector<2x32xf32>
    %c0_23 = arith.constant 0 : index
    %c0_24 = arith.constant 0 : index
    %13 = vector.load %arg0[%c0_23, %c0_24] : memref<2x6xi32, #tpu.memory_space<vmem>>, vector<2x1xi32>
    %14 = tpu.iota {dimensions = array<i32: 1>} : vector<2x16xi32>
    %15 = vector.broadcast %13 : vector<2x1xi32> to vector<2x16xi32>
    %16 = arith.cmpi eq, %15, %14 : vector<2x16xi32>
    %17 = arith.extui %16 : vector<2x16xi1> to vector<2x16xi32>
    %18 = arith.sitofp %17 : vector<2x16xi32> to vector<2x16xf32>
    %cst_25 = arith.constant dense<0.000000e+00> : vector<2x16xf32>
    %19 = tpu.matmul %18, %0, %cst_25 {dimension_numbers = #tpu.dot_dimension_numbers<[1], [0], [0], [1], [0, 0, 1, 1], [], []>} : vector<2x16xf32>, vector<16x16xf32>, vector<2x16xf32> -> vector<2x16xf32>
    %cst_26 = arith.constant dense<0.000000e+00> : vector<2x96xf32>
    %20 = tpu.matmul %19, %1, %cst_26 {dimension_numbers = #tpu.dot_dimension_numbers<[1], [0], [0], [1], [0, 0, 1, 1], [], []>} : vector<2x16xf32>, vector<16x96xf32>, vector<2x96xf32> -> vector<2x96xf32>
    %21 = vector.broadcast %3 : vector<1x96xf32> to vector<2x96xf32>
    %22 = arith.addf %20, %21 : vector<2x96xf32>
    %cst_27 = arith.constant dense<0.000000e+00> : vector<2x96xf32>
    %23 = tpu.matmul %12, %2, %cst_27 {dimension_numbers = #tpu.dot_dimension_numbers<[1], [0], [0], [1], [0, 0, 1, 1], [], []>} : vector<2x32xf32>, vector<32x96xf32>, vector<2x96xf32> -> vector<2x96xf32>
    %24 = vector.broadcast %4 : vector<1x96xf32> to vector<2x96xf32>
    %25 = arith.addf %23, %24 : vector<2x96xf32>
    %26 = vector.extract_strided_slice %22 {offsets = [0, 0], sizes = [2, 32], strides = [1, 1]} : vector<2x96xf32> to vector<2x32xf32>
    %27 = vector.extract_strided_slice %22 {offsets = [0, 32], sizes = [2, 32], strides = [1, 1]} : vector<2x96xf32> to vector<2x32xf32>
    %28 = vector.extract_strided_slice %22 {offsets = [0, 64], sizes = [2, 32], strides = [1, 1]} : vector<2x96xf32> to vector<2x32xf32>
    %29 = vector.extract_strided_slice %25 {offsets = [0, 0], sizes = [2, 32], strides = [1, 1]} : vector<2x96xf32> to vector<2x32xf32>
    %30 = vector.extract_strided_slice %25 {offsets = [0, 32], sizes = [2, 32], strides = [1, 1]} : vector<2x96xf32> to vector<2x32xf32>
    %31 = vector.extract_strided_slice %25 {offsets = [0, 64], sizes = [2, 32], strides = [1, 1]} : vector<2x96xf32> to vector<2x32xf32>
    %32 = arith.addf %26, %29 : vector<2x32xf32>
    %33 = arith.negf %32 : vector<2x32xf32>
    %34 = math.exp %33 : vector<2x32xf32>
    %cst_28 = arith.constant 1.000000e+00 : f32
    %35 = vector.broadcast %cst_28 : f32 to vector<2x32xf32>
    %36 = arith.addf %35, %34 : vector<2x32xf32>
    %37 = arith.divf %35, %36 : vector<2x32xf32>
    %38 = arith.addf %27, %30 : vector<2x32xf32>
    %39 = arith.negf %38 : vector<2x32xf32>
    %40 = math.exp %39 : vector<2x32xf32>
    %cst_29 = arith.constant 1.000000e+00 : f32
    %41 = vector.broadcast %cst_29 : f32 to vector<2x32xf32>
    %42 = arith.addf %41, %40 : vector<2x32xf32>
    %43 = arith.divf %41, %42 : vector<2x32xf32>
    %44 = arith.mulf %37, %31 : vector<2x32xf32>
    %45 = arith.addf %28, %44 : vector<2x32xf32>
    %46 = math.tanh %45 : vector<2x32xf32>
    %cst_30 = arith.constant 1.000000e+00 : f32
    %47 = vector.broadcast %cst_30 : f32 to vector<2x32xf32>
    %48 = arith.subf %47, %43 : vector<2x32xf32>
    %49 = arith.mulf %48, %46 : vector<2x32xf32>
    %50 = arith.mulf %43, %12 : vector<2x32xf32>
    %51 = arith.addf %49, %50 : vector<2x32xf32>
    %c0_31 = arith.constant 0 : index
    %c1 = arith.constant 1 : index
    %52 = vector.load %arg0[%c0_31, %c1] : memref<2x6xi32, #tpu.memory_space<vmem>>, vector<2x1xi32>
    %53 = tpu.iota {dimensions = array<i32: 1>} : vector<2x16xi32>
    %54 = vector.broadcast %52 : vector<2x1xi32> to vector<2x16xi32>
    %55 = arith.cmpi eq, %54, %53 : vector<2x16xi32>
    %56 = arith.extui %55 : vector<2x16xi1> to vector<2x16xi32>
    %57 = arith.sitofp %56 : vector<2x16xi32> to vector<2x16xf32>
    %cst_32 = arith.constant dense<0.000000e+00> : vector<2x16xf32>
    %58 = tpu.matmul %57, %0, %cst_32 {dimension_numbers = #tpu.dot_dimension_numbers<[1], [0], [0], [1], [0, 0, 1, 1], [], []>} : vector<2x16xf32>, vector<16x16xf32>, vector<2x16xf32> -> vector<2x16xf32>
    %cst_33 = arith.constant dense<0.000000e+00> : vector<2x96xf32>
    %59 = tpu.matmul %58, %1, %cst_33 {dimension_numbers = #tpu.dot_dimension_numbers<[1], [0], [0], [1], [0, 0, 1, 1], [], []>} : vector<2x16xf32>, vector<16x96xf32>, vector<2x96xf32> -> vector<2x96xf32>
    %60 = vector.broadcast %3 : vector<1x96xf32> to vector<2x96xf32>
    %61 = arith.addf %59, %60 : vector<2x96xf32>
    %cst_34 = arith.constant dense<0.000000e+00> : vector<2x96xf32>
    %62 = tpu.matmul %51, %2, %cst_34 {dimension_numbers = #tpu.dot_dimension_numbers<[1], [0], [0], [1], [0, 0, 1, 1], [], []>} : vector<2x32xf32>, vector<32x96xf32>, vector<2x96xf32> -> vector<2x96xf32>
    %63 = vector.broadcast %4 : vector<1x96xf32> to vector<2x96xf32>
    %64 = arith.addf %62, %63 : vector<2x96xf32>
    %65 = vector.extract_strided_slice %61 {offsets = [0, 0], sizes = [2, 32], strides = [1, 1]} : vector<2x96xf32> to vector<2x32xf32>
    %66 = vector.extract_strided_slice %61 {offsets = [0, 32], sizes = [2, 32], strides = [1, 1]} : vector<2x96xf32> to vector<2x32xf32>
    %67 = vector.extract_strided_slice %61 {offsets = [0, 64], sizes = [2, 32], strides = [1, 1]} : vector<2x96xf32> to vector<2x32xf32>
    %68 = vector.extract_strided_slice %64 {offsets = [0, 0], sizes = [2, 32], strides = [1, 1]} : vector<2x96xf32> to vector<2x32xf32>
    %69 = vector.extract_strided_slice %64 {offsets = [0, 32], sizes = [2, 32], strides = [1, 1]} : vector<2x96xf32> to vector<2x32xf32>
    %70 = vector.extract_strided_slice %64 {offsets = [0, 64], sizes = [2, 32], strides = [1, 1]} : vector<2x96xf32> to vector<2x32xf32>
    %71 = arith.addf %65, %68 : vector<2x32xf32>
    %72 = arith.negf %71 : vector<2x32xf32>
    %73 = math.exp %72 : vector<2x32xf32>
    %cst_35 = arith.constant 1.000000e+00 : f32
    %74 = vector.broadcast %cst_35 : f32 to vector<2x32xf32>
    %75 = arith.addf %74, %73 : vector<2x32xf32>
    %76 = arith.divf %74, %75 : vector<2x32xf32>
    %77 = arith.addf %66, %69 : vector<2x32xf32>
    %78 = arith.negf %77 : vector<2x32xf32>
    %79 = math.exp %78 : vector<2x32xf32>
    %cst_36 = arith.constant 1.000000e+00 : f32
    %80 = vector.broadcast %cst_36 : f32 to vector<2x32xf32>
    %81 = arith.addf %80, %79 : vector<2x32xf32>
    %82 = arith.divf %80, %81 : vector<2x32xf32>
    %83 = arith.mulf %76, %70 : vector<2x32xf32>
    %84 = arith.addf %67, %83 : vector<2x32xf32>
    %85 = math.tanh %84 : vector<2x32xf32>
    %cst_37 = arith.constant 1.000000e+00 : f32
    %86 = vector.broadcast %cst_37 : f32 to vector<2x32xf32>
    %87 = arith.subf %86, %82 : vector<2x32xf32>
    %88 = arith.mulf %87, %85 : vector<2x32xf32>
    %89 = arith.mulf %82, %51 : vector<2x32xf32>
    %90 = arith.addf %88, %89 : vector<2x32xf32>
    %c0_38 = arith.constant 0 : index
    %c2 = arith.constant 2 : index
    %91 = vector.load %arg0[%c0_38, %c2] : memref<2x6xi32, #tpu.memory_space<vmem>>, vector<2x1xi32>
    %92 = tpu.iota {dimensions = array<i32: 1>} : vector<2x16xi32>
    %93 = vector.broadcast %91 : vector<2x1xi32> to vector<2x16xi32>
    %94 = arith.cmpi eq, %93, %92 : vector<2x16xi32>
    %95 = arith.extui %94 : vector<2x16xi1> to vector<2x16xi32>
    %96 = arith.sitofp %95 : vector<2x16xi32> to vector<2x16xf32>
    %cst_39 = arith.constant dense<0.000000e+00> : vector<2x16xf32>
    %97 = tpu.matmul %96, %0, %cst_39 {dimension_numbers = #tpu.dot_dimension_numbers<[1], [0], [0], [1], [0, 0, 1, 1], [], []>} : vector<2x16xf32>, vector<16x16xf32>, vector<2x16xf32> -> vector<2x16xf32>
    %cst_40 = arith.constant dense<0.000000e+00> : vector<2x96xf32>
    %98 = tpu.matmul %97, %1, %cst_40 {dimension_numbers = #tpu.dot_dimension_numbers<[1], [0], [0], [1], [0, 0, 1, 1], [], []>} : vector<2x16xf32>, vector<16x96xf32>, vector<2x96xf32> -> vector<2x96xf32>
    %99 = vector.broadcast %3 : vector<1x96xf32> to vector<2x96xf32>
    %100 = arith.addf %98, %99 : vector<2x96xf32>
    %cst_41 = arith.constant dense<0.000000e+00> : vector<2x96xf32>
    %101 = tpu.matmul %90, %2, %cst_41 {dimension_numbers = #tpu.dot_dimension_numbers<[1], [0], [0], [1], [0, 0, 1, 1], [], []>} : vector<2x32xf32>, vector<32x96xf32>, vector<2x96xf32> -> vector<2x96xf32>
    %102 = vector.broadcast %4 : vector<1x96xf32> to vector<2x96xf32>
    %103 = arith.addf %101, %102 : vector<2x96xf32>
    %104 = vector.extract_strided_slice %100 {offsets = [0, 0], sizes = [2, 32], strides = [1, 1]} : vector<2x96xf32> to vector<2x32xf32>
    %105 = vector.extract_strided_slice %100 {offsets = [0, 32], sizes = [2, 32], strides = [1, 1]} : vector<2x96xf32> to vector<2x32xf32>
    %106 = vector.extract_strided_slice %100 {offsets = [0, 64], sizes = [2, 32], strides = [1, 1]} : vector<2x96xf32> to vector<2x32xf32>
    %107 = vector.extract_strided_slice %103 {offsets = [0, 0], sizes = [2, 32], strides = [1, 1]} : vector<2x96xf32> to vector<2x32xf32>
    %108 = vector.extract_strided_slice %103 {offsets = [0, 32], sizes = [2, 32], strides = [1, 1]} : vector<2x96xf32> to vector<2x32xf32>
    %109 = vector.extract_strided_slice %103 {offsets = [0, 64], sizes = [2, 32], strides = [1, 1]} : vector<2x96xf32> to vector<2x32xf32>
    %110 = arith.addf %104, %107 : vector<2x32xf32>
    %111 = arith.negf %110 : vector<2x32xf32>
    %112 = math.exp %111 : vector<2x32xf32>
    %cst_42 = arith.constant 1.000000e+00 : f32
    %113 = vector.broadcast %cst_42 : f32 to vector<2x32xf32>
    %114 = arith.addf %113, %112 : vector<2x32xf32>
    %115 = arith.divf %113, %114 : vector<2x32xf32>
    %116 = arith.addf %105, %108 : vector<2x32xf32>
    %117 = arith.negf %116 : vector<2x32xf32>
    %118 = math.exp %117 : vector<2x32xf32>
    %cst_43 = arith.constant 1.000000e+00 : f32
    %119 = vector.broadcast %cst_43 : f32 to vector<2x32xf32>
    %120 = arith.addf %119, %118 : vector<2x32xf32>
    %121 = arith.divf %119, %120 : vector<2x32xf32>
    %122 = arith.mulf %115, %109 : vector<2x32xf32>
    %123 = arith.addf %106, %122 : vector<2x32xf32>
    %124 = math.tanh %123 : vector<2x32xf32>
    %cst_44 = arith.constant 1.000000e+00 : f32
    %125 = vector.broadcast %cst_44 : f32 to vector<2x32xf32>
    %126 = arith.subf %125, %121 : vector<2x32xf32>
    %127 = arith.mulf %126, %124 : vector<2x32xf32>
    %128 = arith.mulf %121, %90 : vector<2x32xf32>
    %129 = arith.addf %127, %128 : vector<2x32xf32>
    %c0_45 = arith.constant 0 : index
    %c3 = arith.constant 3 : index
    %130 = vector.load %arg0[%c0_45, %c3] : memref<2x6xi32, #tpu.memory_space<vmem>>, vector<2x1xi32>
    %131 = tpu.iota {dimensions = array<i32: 1>} : vector<2x16xi32>
    %132 = vector.broadcast %130 : vector<2x1xi32> to vector<2x16xi32>
    %133 = arith.cmpi eq, %132, %131 : vector<2x16xi32>
    %134 = arith.extui %133 : vector<2x16xi1> to vector<2x16xi32>
    %135 = arith.sitofp %134 : vector<2x16xi32> to vector<2x16xf32>
    %cst_46 = arith.constant dense<0.000000e+00> : vector<2x16xf32>
    %136 = tpu.matmul %135, %0, %cst_46 {dimension_numbers = #tpu.dot_dimension_numbers<[1], [0], [0], [1], [0, 0, 1, 1], [], []>} : vector<2x16xf32>, vector<16x16xf32>, vector<2x16xf32> -> vector<2x16xf32>
    %cst_47 = arith.constant dense<0.000000e+00> : vector<2x96xf32>
    %137 = tpu.matmul %136, %1, %cst_47 {dimension_numbers = #tpu.dot_dimension_numbers<[1], [0], [0], [1], [0, 0, 1, 1], [], []>} : vector<2x16xf32>, vector<16x96xf32>, vector<2x96xf32> -> vector<2x96xf32>
    %138 = vector.broadcast %3 : vector<1x96xf32> to vector<2x96xf32>
    %139 = arith.addf %137, %138 : vector<2x96xf32>
    %cst_48 = arith.constant dense<0.000000e+00> : vector<2x96xf32>
    %140 = tpu.matmul %129, %2, %cst_48 {dimension_numbers = #tpu.dot_dimension_numbers<[1], [0], [0], [1], [0, 0, 1, 1], [], []>} : vector<2x32xf32>, vector<32x96xf32>, vector<2x96xf32> -> vector<2x96xf32>
    %141 = vector.broadcast %4 : vector<1x96xf32> to vector<2x96xf32>
    %142 = arith.addf %140, %141 : vector<2x96xf32>
    %143 = vector.extract_strided_slice %139 {offsets = [0, 0], sizes = [2, 32], strides = [1, 1]} : vector<2x96xf32> to vector<2x32xf32>
    %144 = vector.extract_strided_slice %139 {offsets = [0, 32], sizes = [2, 32], strides = [1, 1]} : vector<2x96xf32> to vector<2x32xf32>
    %145 = vector.extract_strided_slice %139 {offsets = [0, 64], sizes = [2, 32], strides = [1, 1]} : vector<2x96xf32> to vector<2x32xf32>
    %146 = vector.extract_strided_slice %142 {offsets = [0, 0], sizes = [2, 32], strides = [1, 1]} : vector<2x96xf32> to vector<2x32xf32>
    %147 = vector.extract_strided_slice %142 {offsets = [0, 32], sizes = [2, 32], strides = [1, 1]} : vector<2x96xf32> to vector<2x32xf32>
    %148 = vector.extract_strided_slice %142 {offsets = [0, 64], sizes = [2, 32], strides = [1, 1]} : vector<2x96xf32> to vector<2x32xf32>
    %149 = arith.addf %143, %146 : vector<2x32xf32>
    %150 = arith.negf %149 : vector<2x32xf32>
    %151 = math.exp %150 : vector<2x32xf32>
    %cst_49 = arith.constant 1.000000e+00 : f32
    %152 = vector.broadcast %cst_49 : f32 to vector<2x32xf32>
    %153 = arith.addf %152, %151 : vector<2x32xf32>
    %154 = arith.divf %152, %153 : vector<2x32xf32>
    %155 = arith.addf %144, %147 : vector<2x32xf32>
    %156 = arith.negf %155 : vector<2x32xf32>
    %157 = math.exp %156 : vector<2x32xf32>
    %cst_50 = arith.constant 1.000000e+00 : f32
    %158 = vector.broadcast %cst_50 : f32 to vector<2x32xf32>
    %159 = arith.addf %158, %157 : vector<2x32xf32>
    %160 = arith.divf %158, %159 : vector<2x32xf32>
    %161 = arith.mulf %154, %148 : vector<2x32xf32>
    %162 = arith.addf %145, %161 : vector<2x32xf32>
    %163 = math.tanh %162 : vector<2x32xf32>
    %cst_51 = arith.constant 1.000000e+00 : f32
    %164 = vector.broadcast %cst_51 : f32 to vector<2x32xf32>
    %165 = arith.subf %164, %160 : vector<2x32xf32>
    %166 = arith.mulf %165, %163 : vector<2x32xf32>
    %167 = arith.mulf %160, %129 : vector<2x32xf32>
    %168 = arith.addf %166, %167 : vector<2x32xf32>
    %c0_52 = arith.constant 0 : index
    %c4 = arith.constant 4 : index
    %169 = vector.load %arg0[%c0_52, %c4] : memref<2x6xi32, #tpu.memory_space<vmem>>, vector<2x1xi32>
    %170 = tpu.iota {dimensions = array<i32: 1>} : vector<2x16xi32>
    %171 = vector.broadcast %169 : vector<2x1xi32> to vector<2x16xi32>
    %172 = arith.cmpi eq, %171, %170 : vector<2x16xi32>
    %173 = arith.extui %172 : vector<2x16xi1> to vector<2x16xi32>
    %174 = arith.sitofp %173 : vector<2x16xi32> to vector<2x16xf32>
    %cst_53 = arith.constant dense<0.000000e+00> : vector<2x16xf32>
    %175 = tpu.matmul %174, %0, %cst_53 {dimension_numbers = #tpu.dot_dimension_numbers<[1], [0], [0], [1], [0, 0, 1, 1], [], []>} : vector<2x16xf32>, vector<16x16xf32>, vector<2x16xf32> -> vector<2x16xf32>
    %cst_54 = arith.constant dense<0.000000e+00> : vector<2x96xf32>
    %176 = tpu.matmul %175, %1, %cst_54 {dimension_numbers = #tpu.dot_dimension_numbers<[1], [0], [0], [1], [0, 0, 1, 1], [], []>} : vector<2x16xf32>, vector<16x96xf32>, vector<2x96xf32> -> vector<2x96xf32>
    %177 = vector.broadcast %3 : vector<1x96xf32> to vector<2x96xf32>
    %178 = arith.addf %176, %177 : vector<2x96xf32>
    %cst_55 = arith.constant dense<0.000000e+00> : vector<2x96xf32>
    %179 = tpu.matmul %168, %2, %cst_55 {dimension_numbers = #tpu.dot_dimension_numbers<[1], [0], [0], [1], [0, 0, 1, 1], [], []>} : vector<2x32xf32>, vector<32x96xf32>, vector<2x96xf32> -> vector<2x96xf32>
    %180 = vector.broadcast %4 : vector<1x96xf32> to vector<2x96xf32>
    %181 = arith.addf %179, %180 : vector<2x96xf32>
    %182 = vector.extract_strided_slice %178 {offsets = [0, 0], sizes = [2, 32], strides = [1, 1]} : vector<2x96xf32> to vector<2x32xf32>
    %183 = vector.extract_strided_slice %178 {offsets = [0, 32], sizes = [2, 32], strides = [1, 1]} : vector<2x96xf32> to vector<2x32xf32>
    %184 = vector.extract_strided_slice %178 {offsets = [0, 64], sizes = [2, 32], strides = [1, 1]} : vector<2x96xf32> to vector<2x32xf32>
    %185 = vector.extract_strided_slice %181 {offsets = [0, 0], sizes = [2, 32], strides = [1, 1]} : vector<2x96xf32> to vector<2x32xf32>
    %186 = vector.extract_strided_slice %181 {offsets = [0, 32], sizes = [2, 32], strides = [1, 1]} : vector<2x96xf32> to vector<2x32xf32>
    %187 = vector.extract_strided_slice %181 {offsets = [0, 64], sizes = [2, 32], strides = [1, 1]} : vector<2x96xf32> to vector<2x32xf32>
    %188 = arith.addf %182, %185 : vector<2x32xf32>
    %189 = arith.negf %188 : vector<2x32xf32>
    %190 = math.exp %189 : vector<2x32xf32>
    %cst_56 = arith.constant 1.000000e+00 : f32
    %191 = vector.broadcast %cst_56 : f32 to vector<2x32xf32>
    %192 = arith.addf %191, %190 : vector<2x32xf32>
    %193 = arith.divf %191, %192 : vector<2x32xf32>
    %194 = arith.addf %183, %186 : vector<2x32xf32>
    %195 = arith.negf %194 : vector<2x32xf32>
    %196 = math.exp %195 : vector<2x32xf32>
    %cst_57 = arith.constant 1.000000e+00 : f32
    %197 = vector.broadcast %cst_57 : f32 to vector<2x32xf32>
    %198 = arith.addf %197, %196 : vector<2x32xf32>
    %199 = arith.divf %197, %198 : vector<2x32xf32>
    %200 = arith.mulf %193, %187 : vector<2x32xf32>
    %201 = arith.addf %184, %200 : vector<2x32xf32>
    %202 = math.tanh %201 : vector<2x32xf32>
    %cst_58 = arith.constant 1.000000e+00 : f32
    %203 = vector.broadcast %cst_58 : f32 to vector<2x32xf32>
    %204 = arith.subf %203, %199 : vector<2x32xf32>
    %205 = arith.mulf %204, %202 : vector<2x32xf32>
    %206 = arith.mulf %199, %168 : vector<2x32xf32>
    %207 = arith.addf %205, %206 : vector<2x32xf32>
    %c0_59 = arith.constant 0 : index
    %c5 = arith.constant 5 : index
    %208 = vector.load %arg0[%c0_59, %c5] : memref<2x6xi32, #tpu.memory_space<vmem>>, vector<2x1xi32>
    %209 = tpu.iota {dimensions = array<i32: 1>} : vector<2x16xi32>
    %210 = vector.broadcast %208 : vector<2x1xi32> to vector<2x16xi32>
    %211 = arith.cmpi eq, %210, %209 : vector<2x16xi32>
    %212 = arith.extui %211 : vector<2x16xi1> to vector<2x16xi32>
    %213 = arith.sitofp %212 : vector<2x16xi32> to vector<2x16xf32>
    %cst_60 = arith.constant dense<0.000000e+00> : vector<2x16xf32>
    %214 = tpu.matmul %213, %0, %cst_60 {dimension_numbers = #tpu.dot_dimension_numbers<[1], [0], [0], [1], [0, 0, 1, 1], [], []>} : vector<2x16xf32>, vector<16x16xf32>, vector<2x16xf32> -> vector<2x16xf32>
    %cst_61 = arith.constant dense<0.000000e+00> : vector<2x96xf32>
    %215 = tpu.matmul %214, %1, %cst_61 {dimension_numbers = #tpu.dot_dimension_numbers<[1], [0], [0], [1], [0, 0, 1, 1], [], []>} : vector<2x16xf32>, vector<16x96xf32>, vector<2x96xf32> -> vector<2x96xf32>
    %216 = vector.broadcast %3 : vector<1x96xf32> to vector<2x96xf32>
    %217 = arith.addf %215, %216 : vector<2x96xf32>
    %cst_62 = arith.constant dense<0.000000e+00> : vector<2x96xf32>
    %218 = tpu.matmul %207, %2, %cst_62 {dimension_numbers = #tpu.dot_dimension_numbers<[1], [0], [0], [1], [0, 0, 1, 1], [], []>} : vector<2x32xf32>, vector<32x96xf32>, vector<2x96xf32> -> vector<2x96xf32>
    %219 = vector.broadcast %4 : vector<1x96xf32> to vector<2x96xf32>
    %220 = arith.addf %218, %219 : vector<2x96xf32>
    %221 = vector.extract_strided_slice %217 {offsets = [0, 0], sizes = [2, 32], strides = [1, 1]} : vector<2x96xf32> to vector<2x32xf32>
    %222 = vector.extract_strided_slice %217 {offsets = [0, 32], sizes = [2, 32], strides = [1, 1]} : vector<2x96xf32> to vector<2x32xf32>
    %223 = vector.extract_strided_slice %217 {offsets = [0, 64], sizes = [2, 32], strides = [1, 1]} : vector<2x96xf32> to vector<2x32xf32>
    %224 = vector.extract_strided_slice %220 {offsets = [0, 0], sizes = [2, 32], strides = [1, 1]} : vector<2x96xf32> to vector<2x32xf32>
    %225 = vector.extract_strided_slice %220 {offsets = [0, 32], sizes = [2, 32], strides = [1, 1]} : vector<2x96xf32> to vector<2x32xf32>
    %226 = vector.extract_strided_slice %220 {offsets = [0, 64], sizes = [2, 32], strides = [1, 1]} : vector<2x96xf32> to vector<2x32xf32>
    %227 = arith.addf %221, %224 : vector<2x32xf32>
    %228 = arith.negf %227 : vector<2x32xf32>
    %229 = math.exp %228 : vector<2x32xf32>
    %cst_63 = arith.constant 1.000000e+00 : f32
    %230 = vector.broadcast %cst_63 : f32 to vector<2x32xf32>
    %231 = arith.addf %230, %229 : vector<2x32xf32>
    %232 = arith.divf %230, %231 : vector<2x32xf32>
    %233 = arith.addf %222, %225 : vector<2x32xf32>
    %234 = arith.negf %233 : vector<2x32xf32>
    %235 = math.exp %234 : vector<2x32xf32>
    %cst_64 = arith.constant 1.000000e+00 : f32
    %236 = vector.broadcast %cst_64 : f32 to vector<2x32xf32>
    %237 = arith.addf %236, %235 : vector<2x32xf32>
    %238 = arith.divf %236, %237 : vector<2x32xf32>
    %239 = arith.mulf %232, %226 : vector<2x32xf32>
    %240 = arith.addf %223, %239 : vector<2x32xf32>
    %241 = math.tanh %240 : vector<2x32xf32>
    %cst_65 = arith.constant 1.000000e+00 : f32
    %242 = vector.broadcast %cst_65 : f32 to vector<2x32xf32>
    %243 = arith.subf %242, %238 : vector<2x32xf32>
    %244 = arith.mulf %243, %241 : vector<2x32xf32>
    %245 = arith.mulf %238, %207 : vector<2x32xf32>
    %246 = arith.addf %244, %245 : vector<2x32xf32>
    %c0_66 = arith.constant 0 : index
    %c0_67 = arith.constant 0 : index
    %247 = vector.load %arg8[%c0_66, %c0_67] : memref<32x32xf32, #tpu.memory_space<vmem>>, vector<32x32xf32>
    %cst_68 = arith.constant dense<0.000000e+00> : vector<2x32xf32>
    %248 = tpu.matmul %246, %247, %cst_68 {dimension_numbers = #tpu.dot_dimension_numbers<[1], [0], [0], [1], [0, 0, 1, 1], [], []>} : vector<2x32xf32>, vector<32x32xf32>, vector<2x32xf32> -> vector<2x32xf32>
    %c0_69 = arith.constant 0 : index
    %c0_70 = arith.constant 0 : index
    %249 = vector.load %arg9[%c0_69, %c0_70] : memref<1x32xf32, #tpu.memory_space<vmem>>, vector<1x32xf32>
    %250 = vector.broadcast %249 : vector<1x32xf32> to vector<2x32xf32>
    %251 = arith.addf %248, %250 : vector<2x32xf32>
    %c0_71 = arith.constant 0 : index
    %c0_72 = arith.constant 0 : index
    %252 = vector.load %arg10[%c0_71, %c0_72] : memref<32x32xf32, #tpu.memory_space<vmem>>, vector<32x32xf32>
    %cst_73 = arith.constant dense<0.000000e+00> : vector<2x32xf32>
    %253 = tpu.matmul %246, %252, %cst_73 {dimension_numbers = #tpu.dot_dimension_numbers<[1], [0], [0], [1], [0, 0, 1, 1], [], []>} : vector<2x32xf32>, vector<32x32xf32>, vector<2x32xf32> -> vector<2x32xf32>
    %c0_74 = arith.constant 0 : index
    %c0_75 = arith.constant 0 : index
    %254 = vector.load %arg11[%c0_74, %c0_75] : memref<1x32xf32, #tpu.memory_space<vmem>>, vector<1x32xf32>
    %255 = vector.broadcast %254 : vector<1x32xf32> to vector<2x32xf32>
    %256 = arith.addf %253, %255 : vector<2x32xf32>
    %cst_76 = arith.constant 5.000000e-01 : f32
    %257 = vector.broadcast %cst_76 : f32 to vector<2x32xf32>
    %258 = arith.mulf %257, %256 : vector<2x32xf32>
    %259 = math.exp %258 : vector<2x32xf32>
    %c0_77 = arith.constant 0 : index
    %c0_78 = arith.constant 0 : index
    %260 = vector.load %arg2[%c0_77, %c0_78] : memref<2x32xf32, #tpu.memory_space<vmem>>, vector<2x32xf32>
    %261 = arith.mulf %259, %260 : vector<2x32xf32>
    %262 = arith.addf %251, %261 : vector<2x32xf32>
    %c0_79 = arith.constant 0 : index
    %c0_80 = arith.constant 0 : index
    %263 = vector.load %arg19[%c0_79, %c0_80] : memref<2x32xf32, #tpu.memory_space<vmem>>, vector<2x32xf32>
    tpu.vector_store %arg19[%c0_79, %c0_80], %262 {strides = array<i32>} : memref<2x32xf32, #tpu.memory_space<vmem>>, vector<2x32xf32>,
    %c0_81 = arith.constant 0 : index
    %c0_82 = arith.constant 0 : index
    %264 = vector.load %arg20[%c0_81, %c0_82] : memref<2x32xf32, #tpu.memory_space<vmem>>, vector<2x32xf32>
    tpu.vector_store %arg20[%c0_81, %c0_82], %251 {strides = array<i32>} : memref<2x32xf32, #tpu.memory_space<vmem>>, vector<2x32xf32>,
    %c0_83 = arith.constant 0 : index
    %c0_84 = arith.constant 0 : index
    %265 = vector.load %arg21[%c0_83, %c0_84] : memref<2x32xf32, #tpu.memory_space<vmem>>, vector<2x32xf32>
    tpu.vector_store %arg21[%c0_83, %c0_84], %256 {strides = array<i32>} : memref<2x32xf32, #tpu.memory_space<vmem>>, vector<2x32xf32>,
    %c0_85 = arith.constant 0 : index
    %c0_86 = arith.constant 0 : index
    %266 = vector.load %arg1[%c0_85, %c0_86] : memref<2x8xi32, #tpu.memory_space<vmem>>, vector<2x1xi32>
    %267 = tpu.iota {dimensions = array<i32: 1>} : vector<2x16xi32>
    %cst_87 = arith.constant 0.000000e+00 : f32
    %268 = vector.broadcast %cst_87 : f32 to vector<2x16xf32>
    %269 = tpu.iota {dimensions = array<i32: 1>} : vector<2x16xi32>
    %270 = vector.broadcast %266 : vector<2x1xi32> to vector<2x16xi32>
    %271 = arith.cmpi eq, %270, %269 : vector<2x16xi32>
    %272 = arith.extui %271 : vector<2x16xi1> to vector<2x16xi32>
    %273 = arith.sitofp %272 : vector<2x16xi32> to vector<2x16xf32>
    %cst_88 = arith.constant dense<0.000000e+00> : vector<2x16xf32>
    %274 = tpu.matmul %273, %5, %cst_88 {dimension_numbers = #tpu.dot_dimension_numbers<[1], [0], [0], [1], [0, 0, 1, 1], [], []>} : vector<2x16xf32>, vector<16x16xf32>, vector<2x16xf32> -> vector<2x16xf32>
    %cst_89 = arith.constant dense<0.000000e+00> : vector<2x96xf32>
    %275 = tpu.matmul %274, %6, %cst_89 {dimension_numbers = #tpu.dot_dimension_numbers<[1], [0], [0], [1], [0, 0, 1, 1], [], []>} : vector<2x16xf32>, vector<16x96xf32>, vector<2x96xf32> -> vector<2x96xf32>
    %276 = vector.broadcast %8 : vector<1x96xf32> to vector<2x96xf32>
    %277 = arith.addf %275, %276 : vector<2x96xf32>
    %cst_90 = arith.constant dense<0.000000e+00> : vector<2x96xf32>
    %278 = tpu.matmul %262, %7, %cst_90 {dimension_numbers = #tpu.dot_dimension_numbers<[1], [0], [0], [1], [0, 0, 1, 1], [], []>} : vector<2x32xf32>, vector<32x96xf32>, vector<2x96xf32> -> vector<2x96xf32>
    %279 = vector.broadcast %9 : vector<1x96xf32> to vector<2x96xf32>
    %280 = arith.addf %278, %279 : vector<2x96xf32>
    %281 = vector.extract_strided_slice %277 {offsets = [0, 0], sizes = [2, 32], strides = [1, 1]} : vector<2x96xf32> to vector<2x32xf32>
    %282 = vector.extract_strided_slice %277 {offsets = [0, 32], sizes = [2, 32], strides = [1, 1]} : vector<2x96xf32> to vector<2x32xf32>
    %283 = vector.extract_strided_slice %277 {offsets = [0, 64], sizes = [2, 32], strides = [1, 1]} : vector<2x96xf32> to vector<2x32xf32>
    %284 = vector.extract_strided_slice %280 {offsets = [0, 0], sizes = [2, 32], strides = [1, 1]} : vector<2x96xf32> to vector<2x32xf32>
    %285 = vector.extract_strided_slice %280 {offsets = [0, 32], sizes = [2, 32], strides = [1, 1]} : vector<2x96xf32> to vector<2x32xf32>
    %286 = vector.extract_strided_slice %280 {offsets = [0, 64], sizes = [2, 32], strides = [1, 1]} : vector<2x96xf32> to vector<2x32xf32>
    %287 = arith.addf %281, %284 : vector<2x32xf32>
    %288 = arith.negf %287 : vector<2x32xf32>
    %289 = math.exp %288 : vector<2x32xf32>
    %cst_91 = arith.constant 1.000000e+00 : f32
    %290 = vector.broadcast %cst_91 : f32 to vector<2x32xf32>
    %291 = arith.addf %290, %289 : vector<2x32xf32>
    %292 = arith.divf %290, %291 : vector<2x32xf32>
    %293 = arith.addf %282, %285 : vector<2x32xf32>
    %294 = arith.negf %293 : vector<2x32xf32>
    %295 = math.exp %294 : vector<2x32xf32>
    %cst_92 = arith.constant 1.000000e+00 : f32
    %296 = vector.broadcast %cst_92 : f32 to vector<2x32xf32>
    %297 = arith.addf %296, %295 : vector<2x32xf32>
    %298 = arith.divf %296, %297 : vector<2x32xf32>
    %299 = arith.mulf %292, %286 : vector<2x32xf32>
    %300 = arith.addf %283, %299 : vector<2x32xf32>
    %301 = math.tanh %300 : vector<2x32xf32>
    %cst_93 = arith.constant 1.000000e+00 : f32
    %302 = vector.broadcast %cst_93 : f32 to vector<2x32xf32>
    %303 = arith.subf %302, %298 : vector<2x32xf32>
    %304 = arith.mulf %303, %301 : vector<2x32xf32>
    %305 = arith.mulf %298, %262 : vector<2x32xf32>
    %306 = arith.addf %304, %305 : vector<2x32xf32>
    %cst_94 = arith.constant dense<0.000000e+00> : vector<2x16xf32>
    %307 = tpu.matmul %306, %10, %cst_94 {dimension_numbers = #tpu.dot_dimension_numbers<[1], [0], [0], [1], [0, 0, 1, 1], [], []>} : vector<2x32xf32>, vector<32x16xf32>, vector<2x16xf32> -> vector<2x16xf32>
    %308 = vector.broadcast %11 : vector<1x16xf32> to vector<2x16xf32>
    %309 = arith.addf %307, %308 : vector<2x16xf32>
    %cst_95 = arith.constant dense<0xFF800000> : vector<2xf32>
    %310 = vector.multi_reduction <maximumf>, %309, %cst_95 [1] : vector<2x16xf32> to vector<2xf32>
    %311 = vector.shape_cast %310 : vector<2xf32> to vector<2x1xf32>
    %312 = vector.broadcast %311 : vector<2x1xf32> to vector<2x16xf32>
    %313 = arith.cmpf oeq, %309, %312 : vector<2x16xf32>
    %c16_i32 = arith.constant 16 : i32
    %314 = vector.broadcast %c16_i32 : i32 to vector<2x16xi32>
    %315 = arith.select %313, %267, %314 : vector<2x16xi1>, vector<2x16xi32>
    %cst_96 = arith.constant dense<2147483647> : vector<2xi32>
    %316 = vector.multi_reduction <minsi>, %315, %cst_96 [1] : vector<2x16xi32> to vector<2xi32>
    %317 = vector.shape_cast %316 : vector<2xi32> to vector<2x1xi32>
    %318 = tpu.iota {dimensions = array<i32: 1>} : vector<2x16xi32>
    %319 = vector.broadcast %317 : vector<2x1xi32> to vector<2x16xi32>
    %320 = arith.cmpi eq, %319, %318 : vector<2x16xi32>
    %321 = arith.extui %320 : vector<2x16xi1> to vector<2x16xi32>
    %322 = arith.sitofp %321 : vector<2x16xi32> to vector<2x16xf32>
    %cst_97 = arith.constant dense<0.000000e+00> : vector<2x16xf32>
    %323 = tpu.matmul %322, %5, %cst_97 {dimension_numbers = #tpu.dot_dimension_numbers<[1], [0], [0], [1], [0, 0, 1, 1], [], []>} : vector<2x16xf32>, vector<16x16xf32>, vector<2x16xf32> -> vector<2x16xf32>
    %cst_98 = arith.constant dense<0.000000e+00> : vector<2x96xf32>
    %324 = tpu.matmul %323, %6, %cst_98 {dimension_numbers = #tpu.dot_dimension_numbers<[1], [0], [0], [1], [0, 0, 1, 1], [], []>} : vector<2x16xf32>, vector<16x96xf32>, vector<2x96xf32> -> vector<2x96xf32>
    %325 = vector.broadcast %8 : vector<1x96xf32> to vector<2x96xf32>
    %326 = arith.addf %324, %325 : vector<2x96xf32>
    %cst_99 = arith.constant dense<0.000000e+00> : vector<2x96xf32>
    %327 = tpu.matmul %306, %7, %cst_99 {dimension_numbers = #tpu.dot_dimension_numbers<[1], [0], [0], [1], [0, 0, 1, 1], [], []>} : vector<2x32xf32>, vector<32x96xf32>, vector<2x96xf32> -> vector<2x96xf32>
    %328 = vector.broadcast %9 : vector<1x96xf32> to vector<2x96xf32>
    %329 = arith.addf %327, %328 : vector<2x96xf32>
    %330 = vector.extract_strided_slice %326 {offsets = [0, 0], sizes = [2, 32], strides = [1, 1]} : vector<2x96xf32> to vector<2x32xf32>
    %331 = vector.extract_strided_slice %326 {offsets = [0, 32], sizes = [2, 32], strides = [1, 1]} : vector<2x96xf32> to vector<2x32xf32>
    %332 = vector.extract_strided_slice %326 {offsets = [0, 64], sizes = [2, 32], strides = [1, 1]} : vector<2x96xf32> to vector<2x32xf32>
    %333 = vector.extract_strided_slice %329 {offsets = [0, 0], sizes = [2, 32], strides = [1, 1]} : vector<2x96xf32> to vector<2x32xf32>
    %334 = vector.extract_strided_slice %329 {offsets = [0, 32], sizes = [2, 32], strides = [1, 1]} : vector<2x96xf32> to vector<2x32xf32>
    %335 = vector.extract_strided_slice %329 {offsets = [0, 64], sizes = [2, 32], strides = [1, 1]} : vector<2x96xf32> to vector<2x32xf32>
    %336 = arith.addf %330, %333 : vector<2x32xf32>
    %337 = arith.negf %336 : vector<2x32xf32>
    %338 = math.exp %337 : vector<2x32xf32>
    %cst_100 = arith.constant 1.000000e+00 : f32
    %339 = vector.broadcast %cst_100 : f32 to vector<2x32xf32>
    %340 = arith.addf %339, %338 : vector<2x32xf32>
    %341 = arith.divf %339, %340 : vector<2x32xf32>
    %342 = arith.addf %331, %334 : vector<2x32xf32>
    %343 = arith.negf %342 : vector<2x32xf32>
    %344 = math.exp %343 : vector<2x32xf32>
    %cst_101 = arith.constant 1.000000e+00 : f32
    %345 = vector.broadcast %cst_101 : f32 to vector<2x32xf32>
    %346 = arith.addf %345, %344 : vector<2x32xf32>
    %347 = arith.divf %345, %346 : vector<2x32xf32>
    %348 = arith.mulf %341, %335 : vector<2x32xf32>
    %349 = arith.addf %332, %348 : vector<2x32xf32>
    %350 = math.tanh %349 : vector<2x32xf32>
    %cst_102 = arith.constant 1.000000e+00 : f32
    %351 = vector.broadcast %cst_102 : f32 to vector<2x32xf32>
    %352 = arith.subf %351, %347 : vector<2x32xf32>
    %353 = arith.mulf %352, %350 : vector<2x32xf32>
    %354 = arith.mulf %347, %306 : vector<2x32xf32>
    %355 = arith.addf %353, %354 : vector<2x32xf32>
    %cst_103 = arith.constant dense<0.000000e+00> : vector<2x16xf32>
    %356 = tpu.matmul %355, %10, %cst_103 {dimension_numbers = #tpu.dot_dimension_numbers<[1], [0], [0], [1], [0, 0, 1, 1], [], []>} : vector<2x32xf32>, vector<32x16xf32>, vector<2x16xf32> -> vector<2x16xf32>
    %357 = vector.broadcast %11 : vector<1x16xf32> to vector<2x16xf32>
    %358 = arith.addf %356, %357 : vector<2x16xf32>
    %cst_104 = arith.constant dense<0xFF800000> : vector<2xf32>
    %359 = vector.multi_reduction <maximumf>, %358, %cst_104 [1] : vector<2x16xf32> to vector<2xf32>
    %360 = vector.shape_cast %359 : vector<2xf32> to vector<2x1xf32>
    %361 = vector.broadcast %360 : vector<2x1xf32> to vector<2x16xf32>
    %362 = arith.cmpf oeq, %358, %361 : vector<2x16xf32>
    %c16_i32_105 = arith.constant 16 : i32
    %363 = vector.broadcast %c16_i32_105 : i32 to vector<2x16xi32>
    %364 = arith.select %362, %267, %363 : vector<2x16xi1>, vector<2x16xi32>
    %cst_106 = arith.constant dense<2147483647> : vector<2xi32>
    %365 = vector.multi_reduction <minsi>, %364, %cst_106 [1] : vector<2x16xi32> to vector<2xi32>
    %366 = vector.shape_cast %365 : vector<2xi32> to vector<2x1xi32>
    %367 = tpu.iota {dimensions = array<i32: 1>} : vector<2x16xi32>
    %368 = vector.broadcast %366 : vector<2x1xi32> to vector<2x16xi32>
    %369 = arith.cmpi eq, %368, %367 : vector<2x16xi32>
    %370 = arith.extui %369 : vector<2x16xi1> to vector<2x16xi32>
    %371 = arith.sitofp %370 : vector<2x16xi32> to vector<2x16xf32>
    %cst_107 = arith.constant dense<0.000000e+00> : vector<2x16xf32>
    %372 = tpu.matmul %371, %5, %cst_107 {dimension_numbers = #tpu.dot_dimension_numbers<[1], [0], [0], [1], [0, 0, 1, 1], [], []>} : vector<2x16xf32>, vector<16x16xf32>, vector<2x16xf32> -> vector<2x16xf32>
    %cst_108 = arith.constant dense<0.000000e+00> : vector<2x96xf32>
    %373 = tpu.matmul %372, %6, %cst_108 {dimension_numbers = #tpu.dot_dimension_numbers<[1], [0], [0], [1], [0, 0, 1, 1], [], []>} : vector<2x16xf32>, vector<16x96xf32>, vector<2x96xf32> -> vector<2x96xf32>
    %374 = vector.broadcast %8 : vector<1x96xf32> to vector<2x96xf32>
    %375 = arith.addf %373, %374 : vector<2x96xf32>
    %cst_109 = arith.constant dense<0.000000e+00> : vector<2x96xf32>
    %376 = tpu.matmul %355, %7, %cst_109 {dimension_numbers = #tpu.dot_dimension_numbers<[1], [0], [0], [1], [0, 0, 1, 1], [], []>} : vector<2x32xf32>, vector<32x96xf32>, vector<2x96xf32> -> vector<2x96xf32>
    %377 = vector.broadcast %9 : vector<1x96xf32> to vector<2x96xf32>
    %378 = arith.addf %376, %377 : vector<2x96xf32>
    %379 = vector.extract_strided_slice %375 {offsets = [0, 0], sizes = [2, 32], strides = [1, 1]} : vector<2x96xf32> to vector<2x32xf32>
    %380 = vector.extract_strided_slice %375 {offsets = [0, 32], sizes = [2, 32], strides = [1, 1]} : vector<2x96xf32> to vector<2x32xf32>
    %381 = vector.extract_strided_slice %375 {offsets = [0, 64], sizes = [2, 32], strides = [1, 1]} : vector<2x96xf32> to vector<2x32xf32>
    %382 = vector.extract_strided_slice %378 {offsets = [0, 0], sizes = [2, 32], strides = [1, 1]} : vector<2x96xf32> to vector<2x32xf32>
    %383 = vector.extract_strided_slice %378 {offsets = [0, 32], sizes = [2, 32], strides = [1, 1]} : vector<2x96xf32> to vector<2x32xf32>
    %384 = vector.extract_strided_slice %378 {offsets = [0, 64], sizes = [2, 32], strides = [1, 1]} : vector<2x96xf32> to vector<2x32xf32>
    %385 = arith.addf %379, %382 : vector<2x32xf32>
    %386 = arith.negf %385 : vector<2x32xf32>
    %387 = math.exp %386 : vector<2x32xf32>
    %cst_110 = arith.constant 1.000000e+00 : f32
    %388 = vector.broadcast %cst_110 : f32 to vector<2x32xf32>
    %389 = arith.addf %388, %387 : vector<2x32xf32>
    %390 = arith.divf %388, %389 : vector<2x32xf32>
    %391 = arith.addf %380, %383 : vector<2x32xf32>
    %392 = arith.negf %391 : vector<2x32xf32>
    %393 = math.exp %392 : vector<2x32xf32>
    %cst_111 = arith.constant 1.000000e+00 : f32
    %394 = vector.broadcast %cst_111 : f32 to vector<2x32xf32>
    %395 = arith.addf %394, %393 : vector<2x32xf32>
    %396 = arith.divf %394, %395 : vector<2x32xf32>
    %397 = arith.mulf %390, %384 : vector<2x32xf32>
    %398 = arith.addf %381, %397 : vector<2x32xf32>
    %399 = math.tanh %398 : vector<2x32xf32>
    %cst_112 = arith.constant 1.000000e+00 : f32
    %400 = vector.broadcast %cst_112 : f32 to vector<2x32xf32>
    %401 = arith.subf %400, %396 : vector<2x32xf32>
    %402 = arith.mulf %401, %399 : vector<2x32xf32>
    %403 = arith.mulf %396, %355 : vector<2x32xf32>
    %404 = arith.addf %402, %403 : vector<2x32xf32>
    %cst_113 = arith.constant dense<0.000000e+00> : vector<2x16xf32>
    %405 = tpu.matmul %404, %10, %cst_113 {dimension_numbers = #tpu.dot_dimension_numbers<[1], [0], [0], [1], [0, 0, 1, 1], [], []>} : vector<2x32xf32>, vector<32x16xf32>, vector<2x16xf32> -> vector<2x16xf32>
    %406 = vector.broadcast %11 : vector<1x16xf32> to vector<2x16xf32>
    %407 = arith.addf %405, %406 : vector<2x16xf32>
    %cst_114 = arith.constant dense<0xFF800000> : vector<2xf32>
    %408 = vector.multi_reduction <maximumf>, %407, %cst_114 [1] : vector<2x16xf32> to vector<2xf32>
    %409 = vector.shape_cast %408 : vector<2xf32> to vector<2x1xf32>
    %410 = vector.broadcast %409 : vector<2x1xf32> to vector<2x16xf32>
    %411 = arith.cmpf oeq, %407, %410 : vector<2x16xf32>
    %c16_i32_115 = arith.constant 16 : i32
    %412 = vector.broadcast %c16_i32_115 : i32 to vector<2x16xi32>
    %413 = arith.select %411, %267, %412 : vector<2x16xi1>, vector<2x16xi32>
    %cst_116 = arith.constant dense<2147483647> : vector<2xi32>
    %414 = vector.multi_reduction <minsi>, %413, %cst_116 [1] : vector<2x16xi32> to vector<2xi32>
    %415 = vector.shape_cast %414 : vector<2xi32> to vector<2x1xi32>
    %416 = tpu.iota {dimensions = array<i32: 1>} : vector<2x16xi32>
    %417 = vector.broadcast %415 : vector<2x1xi32> to vector<2x16xi32>
    %418 = arith.cmpi eq, %417, %416 : vector<2x16xi32>
    %419 = arith.extui %418 : vector<2x16xi1> to vector<2x16xi32>
    %420 = arith.sitofp %419 : vector<2x16xi32> to vector<2x16xf32>
    %cst_117 = arith.constant dense<0.000000e+00> : vector<2x16xf32>
    %421 = tpu.matmul %420, %5, %cst_117 {dimension_numbers = #tpu.dot_dimension_numbers<[1], [0], [0], [1], [0, 0, 1, 1], [], []>} : vector<2x16xf32>, vector<16x16xf32>, vector<2x16xf32> -> vector<2x16xf32>
    %cst_118 = arith.constant dense<0.000000e+00> : vector<2x96xf32>
    %422 = tpu.matmul %421, %6, %cst_118 {dimension_numbers = #tpu.dot_dimension_numbers<[1], [0], [0], [1], [0, 0, 1, 1], [], []>} : vector<2x16xf32>, vector<16x96xf32>, vector<2x96xf32> -> vector<2x96xf32>
    %423 = vector.broadcast %8 : vector<1x96xf32> to vector<2x96xf32>
    %424 = arith.addf %422, %423 : vector<2x96xf32>
    %cst_119 = arith.constant dense<0.000000e+00> : vector<2x96xf32>
    %425 = tpu.matmul %404, %7, %cst_119 {dimension_numbers = #tpu.dot_dimension_numbers<[1], [0], [0], [1], [0, 0, 1, 1], [], []>} : vector<2x32xf32>, vector<32x96xf32>, vector<2x96xf32> -> vector<2x96xf32>
    %426 = vector.broadcast %9 : vector<1x96xf32> to vector<2x96xf32>
    %427 = arith.addf %425, %426 : vector<2x96xf32>
    %428 = vector.extract_strided_slice %424 {offsets = [0, 0], sizes = [2, 32], strides = [1, 1]} : vector<2x96xf32> to vector<2x32xf32>
    %429 = vector.extract_strided_slice %424 {offsets = [0, 32], sizes = [2, 32], strides = [1, 1]} : vector<2x96xf32> to vector<2x32xf32>
    %430 = vector.extract_strided_slice %424 {offsets = [0, 64], sizes = [2, 32], strides = [1, 1]} : vector<2x96xf32> to vector<2x32xf32>
    %431 = vector.extract_strided_slice %427 {offsets = [0, 0], sizes = [2, 32], strides = [1, 1]} : vector<2x96xf32> to vector<2x32xf32>
    %432 = vector.extract_strided_slice %427 {offsets = [0, 32], sizes = [2, 32], strides = [1, 1]} : vector<2x96xf32> to vector<2x32xf32>
    %433 = vector.extract_strided_slice %427 {offsets = [0, 64], sizes = [2, 32], strides = [1, 1]} : vector<2x96xf32> to vector<2x32xf32>
    %434 = arith.addf %428, %431 : vector<2x32xf32>
    %435 = arith.negf %434 : vector<2x32xf32>
    %436 = math.exp %435 : vector<2x32xf32>
    %cst_120 = arith.constant 1.000000e+00 : f32
    %437 = vector.broadcast %cst_120 : f32 to vector<2x32xf32>
    %438 = arith.addf %437, %436 : vector<2x32xf32>
    %439 = arith.divf %437, %438 : vector<2x32xf32>
    %440 = arith.addf %429, %432 : vector<2x32xf32>
    %441 = arith.negf %440 : vector<2x32xf32>
    %442 = math.exp %441 : vector<2x32xf32>
    %cst_121 = arith.constant 1.000000e+00 : f32
    %443 = vector.broadcast %cst_121 : f32 to vector<2x32xf32>
    %444 = arith.addf %443, %442 : vector<2x32xf32>
    %445 = arith.divf %443, %444 : vector<2x32xf32>
    %446 = arith.mulf %439, %433 : vector<2x32xf32>
    %447 = arith.addf %430, %446 : vector<2x32xf32>
    %448 = math.tanh %447 : vector<2x32xf32>
    %cst_122 = arith.constant 1.000000e+00 : f32
    %449 = vector.broadcast %cst_122 : f32 to vector<2x32xf32>
    %450 = arith.subf %449, %445 : vector<2x32xf32>
    %451 = arith.mulf %450, %448 : vector<2x32xf32>
    %452 = arith.mulf %445, %404 : vector<2x32xf32>
    %453 = arith.addf %451, %452 : vector<2x32xf32>
    %cst_123 = arith.constant dense<0.000000e+00> : vector<2x16xf32>
    %454 = tpu.matmul %453, %10, %cst_123 {dimension_numbers = #tpu.dot_dimension_numbers<[1], [0], [0], [1], [0, 0, 1, 1], [], []>} : vector<2x32xf32>, vector<32x16xf32>, vector<2x16xf32> -> vector<2x16xf32>
    %455 = vector.broadcast %11 : vector<1x16xf32> to vector<2x16xf32>
    %456 = arith.addf %454, %455 : vector<2x16xf32>
    %cst_124 = arith.constant dense<0xFF800000> : vector<2xf32>
    %457 = vector.multi_reduction <maximumf>, %456, %cst_124 [1] : vector<2x16xf32> to vector<2xf32>
    %458 = vector.shape_cast %457 : vector<2xf32> to vector<2x1xf32>
    %459 = vector.broadcast %458 : vector<2x1xf32> to vector<2x16xf32>
    %460 = arith.cmpf oeq, %456, %459 : vector<2x16xf32>
    %c16_i32_125 = arith.constant 16 : i32
    %461 = vector.broadcast %c16_i32_125 : i32 to vector<2x16xi32>
    %462 = arith.select %460, %267, %461 : vector<2x16xi1>, vector<2x16xi32>
    %cst_126 = arith.constant dense<2147483647> : vector<2xi32>
    %463 = vector.multi_reduction <minsi>, %462, %cst_126 [1] : vector<2x16xi32> to vector<2xi32>
    %464 = vector.shape_cast %463 : vector<2xi32> to vector<2x1xi32>
    %465 = tpu.iota {dimensions = array<i32: 1>} : vector<2x16xi32>
    %466 = vector.broadcast %464 : vector<2x1xi32> to vector<2x16xi32>
    %467 = arith.cmpi eq, %466, %465 : vector<2x16xi32>
    %468 = arith.extui %467 : vector<2x16xi1> to vector<2x16xi32>
    %469 = arith.sitofp %468 : vector<2x16xi32> to vector<2x16xf32>
    %cst_127 = arith.constant dense<0.000000e+00> : vector<2x16xf32>
    %470 = tpu.matmul %469, %5, %cst_127 {dimension_numbers = #tpu.dot_dimension_numbers<[1], [0], [0], [1], [0, 0, 1, 1], [], []>} : vector<2x16xf32>, vector<16x16xf32>, vector<2x16xf32> -> vector<2x16xf32>
    %cst_128 = arith.constant dense<0.000000e+00> : vector<2x96xf32>
    %471 = tpu.matmul %470, %6, %cst_128 {dimension_numbers = #tpu.dot_dimension_numbers<[1], [0], [0], [1], [0, 0, 1, 1], [], []>} : vector<2x16xf32>, vector<16x96xf32>, vector<2x96xf32> -> vector<2x96xf32>
    %472 = vector.broadcast %8 : vector<1x96xf32> to vector<2x96xf32>
    %473 = arith.addf %471, %472 : vector<2x96xf32>
    %cst_129 = arith.constant dense<0.000000e+00> : vector<2x96xf32>
    %474 = tpu.matmul %453, %7, %cst_129 {dimension_numbers = #tpu.dot_dimension_numbers<[1], [0], [0], [1], [0, 0, 1, 1], [], []>} : vector<2x32xf32>, vector<32x96xf32>, vector<2x96xf32> -> vector<2x96xf32>
    %475 = vector.broadcast %9 : vector<1x96xf32> to vector<2x96xf32>
    %476 = arith.addf %474, %475 : vector<2x96xf32>
    %477 = vector.extract_strided_slice %473 {offsets = [0, 0], sizes = [2, 32], strides = [1, 1]} : vector<2x96xf32> to vector<2x32xf32>
    %478 = vector.extract_strided_slice %473 {offsets = [0, 32], sizes = [2, 32], strides = [1, 1]} : vector<2x96xf32> to vector<2x32xf32>
    %479 = vector.extract_strided_slice %473 {offsets = [0, 64], sizes = [2, 32], strides = [1, 1]} : vector<2x96xf32> to vector<2x32xf32>
    %480 = vector.extract_strided_slice %476 {offsets = [0, 0], sizes = [2, 32], strides = [1, 1]} : vector<2x96xf32> to vector<2x32xf32>
    %481 = vector.extract_strided_slice %476 {offsets = [0, 32], sizes = [2, 32], strides = [1, 1]} : vector<2x96xf32> to vector<2x32xf32>
    %482 = vector.extract_strided_slice %476 {offsets = [0, 64], sizes = [2, 32], strides = [1, 1]} : vector<2x96xf32> to vector<2x32xf32>
    %483 = arith.addf %477, %480 : vector<2x32xf32>
    %484 = arith.negf %483 : vector<2x32xf32>
    %485 = math.exp %484 : vector<2x32xf32>
    %cst_130 = arith.constant 1.000000e+00 : f32
    %486 = vector.broadcast %cst_130 : f32 to vector<2x32xf32>
    %487 = arith.addf %486, %485 : vector<2x32xf32>
    %488 = arith.divf %486, %487 : vector<2x32xf32>
    %489 = arith.addf %478, %481 : vector<2x32xf32>
    %490 = arith.negf %489 : vector<2x32xf32>
    %491 = math.exp %490 : vector<2x32xf32>
    %cst_131 = arith.constant 1.000000e+00 : f32
    %492 = vector.broadcast %cst_131 : f32 to vector<2x32xf32>
    %493 = arith.addf %492, %491 : vector<2x32xf32>
    %494 = arith.divf %492, %493 : vector<2x32xf32>
    %495 = arith.mulf %488, %482 : vector<2x32xf32>
    %496 = arith.addf %479, %495 : vector<2x32xf32>
    %497 = math.tanh %496 : vector<2x32xf32>
    %cst_132 = arith.constant 1.000000e+00 : f32
    %498 = vector.broadcast %cst_132 : f32 to vector<2x32xf32>
    %499 = arith.subf %498, %494 : vector<2x32xf32>
    %500 = arith.mulf %499, %497 : vector<2x32xf32>
    %501 = arith.mulf %494, %453 : vector<2x32xf32>
    %502 = arith.addf %500, %501 : vector<2x32xf32>
    %cst_133 = arith.constant dense<0.000000e+00> : vector<2x16xf32>
    %503 = tpu.matmul %502, %10, %cst_133 {dimension_numbers = #tpu.dot_dimension_numbers<[1], [0], [0], [1], [0, 0, 1, 1], [], []>} : vector<2x32xf32>, vector<32x16xf32>, vector<2x16xf32> -> vector<2x16xf32>
    %504 = vector.broadcast %11 : vector<1x16xf32> to vector<2x16xf32>
    %505 = arith.addf %503, %504 : vector<2x16xf32>
    %cst_134 = arith.constant dense<0xFF800000> : vector<2xf32>
    %506 = vector.multi_reduction <maximumf>, %505, %cst_134 [1] : vector<2x16xf32> to vector<2xf32>
    %507 = vector.shape_cast %506 : vector<2xf32> to vector<2x1xf32>
    %508 = vector.broadcast %507 : vector<2x1xf32> to vector<2x16xf32>
    %509 = arith.cmpf oeq, %505, %508 : vector<2x16xf32>
    %c16_i32_135 = arith.constant 16 : i32
    %510 = vector.broadcast %c16_i32_135 : i32 to vector<2x16xi32>
    %511 = arith.select %509, %267, %510 : vector<2x16xi1>, vector<2x16xi32>
    %cst_136 = arith.constant dense<2147483647> : vector<2xi32>
    %512 = vector.multi_reduction <minsi>, %511, %cst_136 [1] : vector<2x16xi32> to vector<2xi32>
    %513 = vector.shape_cast %512 : vector<2xi32> to vector<2x1xi32>
    %514 = tpu.iota {dimensions = array<i32: 1>} : vector<2x16xi32>
    %515 = vector.broadcast %513 : vector<2x1xi32> to vector<2x16xi32>
    %516 = arith.cmpi eq, %515, %514 : vector<2x16xi32>
    %517 = arith.extui %516 : vector<2x16xi1> to vector<2x16xi32>
    %518 = arith.sitofp %517 : vector<2x16xi32> to vector<2x16xf32>
    %cst_137 = arith.constant dense<0.000000e+00> : vector<2x16xf32>
    %519 = tpu.matmul %518, %5, %cst_137 {dimension_numbers = #tpu.dot_dimension_numbers<[1], [0], [0], [1], [0, 0, 1, 1], [], []>} : vector<2x16xf32>, vector<16x16xf32>, vector<2x16xf32> -> vector<2x16xf32>
    %cst_138 = arith.constant dense<0.000000e+00> : vector<2x96xf32>
    %520 = tpu.matmul %519, %6, %cst_138 {dimension_numbers = #tpu.dot_dimension_numbers<[1], [0], [0], [1], [0, 0, 1, 1], [], []>} : vector<2x16xf32>, vector<16x96xf32>, vector<2x96xf32> -> vector<2x96xf32>
    %521 = vector.broadcast %8 : vector<1x96xf32> to vector<2x96xf32>
    %522 = arith.addf %520, %521 : vector<2x96xf32>
    %cst_139 = arith.constant dense<0.000000e+00> : vector<2x96xf32>
    %523 = tpu.matmul %502, %7, %cst_139 {dimension_numbers = #tpu.dot_dimension_numbers<[1], [0], [0], [1], [0, 0, 1, 1], [], []>} : vector<2x32xf32>, vector<32x96xf32>, vector<2x96xf32> -> vector<2x96xf32>
    %524 = vector.broadcast %9 : vector<1x96xf32> to vector<2x96xf32>
    %525 = arith.addf %523, %524 : vector<2x96xf32>
    %526 = vector.extract_strided_slice %522 {offsets = [0, 0], sizes = [2, 32], strides = [1, 1]} : vector<2x96xf32> to vector<2x32xf32>
    %527 = vector.extract_strided_slice %522 {offsets = [0, 32], sizes = [2, 32], strides = [1, 1]} : vector<2x96xf32> to vector<2x32xf32>
    %528 = vector.extract_strided_slice %522 {offsets = [0, 64], sizes = [2, 32], strides = [1, 1]} : vector<2x96xf32> to vector<2x32xf32>
    %529 = vector.extract_strided_slice %525 {offsets = [0, 0], sizes = [2, 32], strides = [1, 1]} : vector<2x96xf32> to vector<2x32xf32>
    %530 = vector.extract_strided_slice %525 {offsets = [0, 32], sizes = [2, 32], strides = [1, 1]} : vector<2x96xf32> to vector<2x32xf32>
    %531 = vector.extract_strided_slice %525 {offsets = [0, 64], sizes = [2, 32], strides = [1, 1]} : vector<2x96xf32> to vector<2x32xf32>
    %532 = arith.addf %526, %529 : vector<2x32xf32>
    %533 = arith.negf %532 : vector<2x32xf32>
    %534 = math.exp %533 : vector<2x32xf32>
    %cst_140 = arith.constant 1.000000e+00 : f32
    %535 = vector.broadcast %cst_140 : f32 to vector<2x32xf32>
    %536 = arith.addf %535, %534 : vector<2x32xf32>
    %537 = arith.divf %535, %536 : vector<2x32xf32>
    %538 = arith.addf %527, %530 : vector<2x32xf32>
    %539 = arith.negf %538 : vector<2x32xf32>
    %540 = math.exp %539 : vector<2x32xf32>
    %cst_141 = arith.constant 1.000000e+00 : f32
    %541 = vector.broadcast %cst_141 : f32 to vector<2x32xf32>
    %542 = arith.addf %541, %540 : vector<2x32xf32>
    %543 = arith.divf %541, %542 : vector<2x32xf32>
    %544 = arith.mulf %537, %531 : vector<2x32xf32>
    %545 = arith.addf %528, %544 : vector<2x32xf32>
    %546 = math.tanh %545 : vector<2x32xf32>
    %cst_142 = arith.constant 1.000000e+00 : f32
    %547 = vector.broadcast %cst_142 : f32 to vector<2x32xf32>
    %548 = arith.subf %547, %543 : vector<2x32xf32>
    %549 = arith.mulf %548, %546 : vector<2x32xf32>
    %550 = arith.mulf %543, %502 : vector<2x32xf32>
    %551 = arith.addf %549, %550 : vector<2x32xf32>
    %cst_143 = arith.constant dense<0.000000e+00> : vector<2x16xf32>
    %552 = tpu.matmul %551, %10, %cst_143 {dimension_numbers = #tpu.dot_dimension_numbers<[1], [0], [0], [1], [0, 0, 1, 1], [], []>} : vector<2x32xf32>, vector<32x16xf32>, vector<2x16xf32> -> vector<2x16xf32>
    %553 = vector.broadcast %11 : vector<1x16xf32> to vector<2x16xf32>
    %554 = arith.addf %552, %553 : vector<2x16xf32>
    %cst_144 = arith.constant dense<0xFF800000> : vector<2xf32>
    %555 = vector.multi_reduction <maximumf>, %554, %cst_144 [1] : vector<2x16xf32> to vector<2xf32>
    %556 = vector.shape_cast %555 : vector<2xf32> to vector<2x1xf32>
    %557 = vector.broadcast %556 : vector<2x1xf32> to vector<2x16xf32>
    %558 = arith.cmpf oeq, %554, %557 : vector<2x16xf32>
    %c16_i32_145 = arith.constant 16 : i32
    %559 = vector.broadcast %c16_i32_145 : i32 to vector<2x16xi32>
    %560 = arith.select %558, %267, %559 : vector<2x16xi1>, vector<2x16xi32>
    %cst_146 = arith.constant dense<2147483647> : vector<2xi32>
    %561 = vector.multi_reduction <minsi>, %560, %cst_146 [1] : vector<2x16xi32> to vector<2xi32>
    %562 = vector.shape_cast %561 : vector<2xi32> to vector<2x1xi32>
    %563 = tpu.iota {dimensions = array<i32: 1>} : vector<2x16xi32>
    %564 = vector.broadcast %562 : vector<2x1xi32> to vector<2x16xi32>
    %565 = arith.cmpi eq, %564, %563 : vector<2x16xi32>
    %566 = arith.extui %565 : vector<2x16xi1> to vector<2x16xi32>
    %567 = arith.sitofp %566 : vector<2x16xi32> to vector<2x16xf32>
    %cst_147 = arith.constant dense<0.000000e+00> : vector<2x16xf32>
    %568 = tpu.matmul %567, %5, %cst_147 {dimension_numbers = #tpu.dot_dimension_numbers<[1], [0], [0], [1], [0, 0, 1, 1], [], []>} : vector<2x16xf32>, vector<16x16xf32>, vector<2x16xf32> -> vector<2x16xf32>
    %cst_148 = arith.constant dense<0.000000e+00> : vector<2x96xf32>
    %569 = tpu.matmul %568, %6, %cst_148 {dimension_numbers = #tpu.dot_dimension_numbers<[1], [0], [0], [1], [0, 0, 1, 1], [], []>} : vector<2x16xf32>, vector<16x96xf32>, vector<2x96xf32> -> vector<2x96xf32>
    %570 = vector.broadcast %8 : vector<1x96xf32> to vector<2x96xf32>
    %571 = arith.addf %569, %570 : vector<2x96xf32>
    %cst_149 = arith.constant dense<0.000000e+00> : vector<2x96xf32>
    %572 = tpu.matmul %551, %7, %cst_149 {dimension_numbers = #tpu.dot_dimension_numbers<[1], [0], [0], [1], [0, 0, 1, 1], [], []>} : vector<2x32xf32>, vector<32x96xf32>, vector<2x96xf32> -> vector<2x96xf32>
    %573 = vector.broadcast %9 : vector<1x96xf32> to vector<2x96xf32>
    %574 = arith.addf %572, %573 : vector<2x96xf32>
    %575 = vector.extract_strided_slice %571 {offsets = [0, 0], sizes = [2, 32], strides = [1, 1]} : vector<2x96xf32> to vector<2x32xf32>
    %576 = vector.extract_strided_slice %571 {offsets = [0, 32], sizes = [2, 32], strides = [1, 1]} : vector<2x96xf32> to vector<2x32xf32>
    %577 = vector.extract_strided_slice %571 {offsets = [0, 64], sizes = [2, 32], strides = [1, 1]} : vector<2x96xf32> to vector<2x32xf32>
    %578 = vector.extract_strided_slice %574 {offsets = [0, 0], sizes = [2, 32], strides = [1, 1]} : vector<2x96xf32> to vector<2x32xf32>
    %579 = vector.extract_strided_slice %574 {offsets = [0, 32], sizes = [2, 32], strides = [1, 1]} : vector<2x96xf32> to vector<2x32xf32>
    %580 = vector.extract_strided_slice %574 {offsets = [0, 64], sizes = [2, 32], strides = [1, 1]} : vector<2x96xf32> to vector<2x32xf32>
    %581 = arith.addf %575, %578 : vector<2x32xf32>
    %582 = arith.negf %581 : vector<2x32xf32>
    %583 = math.exp %582 : vector<2x32xf32>
    %cst_150 = arith.constant 1.000000e+00 : f32
    %584 = vector.broadcast %cst_150 : f32 to vector<2x32xf32>
    %585 = arith.addf %584, %583 : vector<2x32xf32>
    %586 = arith.divf %584, %585 : vector<2x32xf32>
    %587 = arith.addf %576, %579 : vector<2x32xf32>
    %588 = arith.negf %587 : vector<2x32xf32>
    %589 = math.exp %588 : vector<2x32xf32>
    %cst_151 = arith.constant 1.000000e+00 : f32
    %590 = vector.broadcast %cst_151 : f32 to vector<2x32xf32>
    %591 = arith.addf %590, %589 : vector<2x32xf32>
    %592 = arith.divf %590, %591 : vector<2x32xf32>
    %593 = arith.mulf %586, %580 : vector<2x32xf32>
    %594 = arith.addf %577, %593 : vector<2x32xf32>
    %595 = math.tanh %594 : vector<2x32xf32>
    %cst_152 = arith.constant 1.000000e+00 : f32
    %596 = vector.broadcast %cst_152 : f32 to vector<2x32xf32>
    %597 = arith.subf %596, %592 : vector<2x32xf32>
    %598 = arith.mulf %597, %595 : vector<2x32xf32>
    %599 = arith.mulf %592, %551 : vector<2x32xf32>
    %600 = arith.addf %598, %599 : vector<2x32xf32>
    %cst_153 = arith.constant dense<0.000000e+00> : vector<2x16xf32>
    %601 = tpu.matmul %600, %10, %cst_153 {dimension_numbers = #tpu.dot_dimension_numbers<[1], [0], [0], [1], [0, 0, 1, 1], [], []>} : vector<2x32xf32>, vector<32x16xf32>, vector<2x16xf32> -> vector<2x16xf32>
    %602 = vector.broadcast %11 : vector<1x16xf32> to vector<2x16xf32>
    %603 = arith.addf %601, %602 : vector<2x16xf32>
    %604 = tpu.concatenate %268, %309, %358, %407, %456, %505, %554, %603 in 1 : vector<2x16xf32>, vector<2x16xf32>, vector<2x16xf32>, vector<2x16xf32>, vector<2x16xf32>, vector<2x16xf32>, vector<2x16xf32>, vector<2x16xf32> -> vector<2x128xf32>
    %c0_154 = arith.constant 0 : index
    %c0_155 = arith.constant 0 : index
    %605 = vector.load %arg22[%c0_154, %c0_155] : memref<2x128xf32, #tpu.memory_space<vmem>>, vector<2x128xf32>
    tpu.vector_store %arg22[%c0_154, %c0_155], %604 {strides = array<i32>} : memref<2x128xf32, #tpu.memory_space<vmem>>, vector<2x128xf32>,
    %c0_156 = arith.constant 0 : index
    %c0_157 = arith.constant 0 : index
    %606 = vector.load %arg23[%c0_156, %c0_157] : memref<2x32xf32, #tpu.memory_space<vmem>>, vector<2x32xf32>
    tpu.vector_store %arg23[%c0_156, %c0_157], %600 {strides = array<i32>} : memref<2x32xf32, #tpu.memory_space<vmem>>, vector<2x32xf32>,
    return
  }
}

</mosaic_0001>

<llo_original>
// kernel: vae_forward.1
$region0: #{vae_forward.1}
  #allocation0 [shape = 'u32[]', space=smem, size = 0x4, offset = 0x4, fixed_abs, tag = 'smem constant byte address 0x4 - core index']
  #allocation1 [shape = 'u32[144,128]{1,0:T(1,128)}', space=vmem, size = 0x12000, scoped, tag = 'internal scratch']
  %s0 = inlined_call_operand.vmem [shape: s32[2,6], index: 0, kind: input, shape index: {}]
  %s1 = inlined_call_operand.vmem [shape: s32[2,8], index: 1, kind: input, shape index: {}]
  %s2 = inlined_call_operand.vmem [shape: f32[2,32], index: 2, kind: input, shape index: {}]
  %s3 = inlined_call_operand.hbm [shape: f32[16,16], index: 3, kind: input, shape index: {}]
  %s4 = inlined_call_operand.hbm [shape: f32[16,96], index: 4, kind: input, shape index: {}]
  %s5 = inlined_call_operand.vmem [shape: f32[32,96], index: 5, kind: input, shape index: {}]
  %s6 = inlined_call_operand.hbm [shape: f32[1,96], index: 6, kind: input, shape index: {}]
  %s7 = inlined_call_operand.hbm [shape: f32[1,96], index: 7, kind: input, shape index: {}]
  %s8 = inlined_call_operand.vmem [shape: f32[32,32], index: 8, kind: input, shape index: {}]
  %s9 = inlined_call_operand.hbm [shape: f32[1,32], index: 9, kind: input, shape index: {}]
  %s10 = inlined_call_operand.vmem [shape: f32[32,32], index: 10, kind: input, shape index: {}]
  %s11 = inlined_call_operand.hbm [shape: f32[1,32], index: 11, kind: input, shape index: {}]
  %s12 = inlined_call_operand.hbm [shape: f32[16,16], index: 12, kind: input, shape index: {}]
  %s13 = inlined_call_operand.hbm [shape: f32[16,96], index: 13, kind: input, shape index: {}]
  %s14 = inlined_call_operand.hbm [shape: f32[32,96], index: 14, kind: input, shape index: {}]
  %s15 = inlined_call_operand.hbm [shape: f32[1,96], index: 15, kind: input, shape index: {}]
  %s16 = inlined_call_operand.hbm [shape: f32[1,96], index: 16, kind: input, shape index: {}]
  %s17 = inlined_call_operand.vmem [shape: f32[32,16], index: 17, kind: input, shape index: {}]
  %s18 = inlined_call_operand.hbm [shape: f32[1,16], index: 18, kind: input, shape index: {}]
  %s19 = inlined_call_operand.hbm [shape: f32[2,32], index: 19, kind: output, shape index: {0}]
  %s20 = inlined_call_operand.hbm [shape: f32[2,32], index: 20, kind: output, shape index: {1}]
  %s21 = inlined_call_operand.hbm [shape: f32[2,32], index: 21, kind: output, shape index: {2}]
  %s22 = inlined_call_operand.vmem [shape: f32[2,128], index: 22, kind: output, shape index: {3}]
  %s23 = inlined_call_operand.hbm [shape: f32[2,32], index: 23, kind: output, shape index: {4}]
  %24 = xla_tuple %s19, %s20, %s21, %s22, %s23
  %s25 = sld [smem:[#allocation0]]
  $region166: #{vae_forward.1} parent=0
    _
  %s27 = ssub.s32 1, %s25
  %s28 = scalar_select 0, %s27, %s25
  $region1: #{vae_forward.1} parent=0
    #allocation2 [shape = 'u8[8192]{0}', space=vmem, size = 0x2000, scoped, tag = 'input window, operand 3, single buffered']
    #allocation3 [shape = 's32[1]{0}', space=sflag, size = 0x4, scoped, tag = 'scoped memory for vae_forward.1']
    #allocation4 [shape = 's32[1]{0}', space=sflag, size = 0x4, scoped, tag = 'scoped memory for vae_forward.1']
    #allocation5 [shape = 'u8[8192]{0}', space=vmem, size = 0x2000, scoped, tag = 'input window, operand 4, single buffered']
    #allocation6 [shape = 's32[1]{0}', space=sflag, size = 0x4, scoped, tag = 'scoped memory for vae_forward.1']
    #allocation7 [shape = 'u8[512]{0}', space=vmem, size = 0x400, scoped, tag = 'input window, operand 6, single buffered']
    #allocation8 [shape = 'u8[512]{0}', space=vmem, size = 0x400, scoped, tag = 'input window, operand 7, single buffered']
    #allocation9 [shape = 's32[1]{0}', space=sflag, size = 0x4, scoped, tag = 'scoped memory for vae_forward.1']
    #allocation10 [shape = 'u8[512]{0}', space=vmem, size = 0x400, scoped, tag = 'input window, operand 9, single buffered']
    #allocation11 [shape = 'u8[512]{0}', space=vmem, size = 0x400, scoped, tag = 'input window, operand 11, single buffered']
    #allocation12 [shape = 's32[1]{0}', space=sflag, size = 0x4, scoped, tag = 'scoped memory for vae_forward.1']
    #allocation13 [shape = 'u8[8192]{0}', space=vmem, size = 0x2000, scoped, tag = 'input window, operand 12, single buffered']
    #allocation14 [shape = 'u8[8192]{0}', space=vmem, size = 0x2000, scoped, tag = 'input window, operand 13, single buffered']
    #allocation15 [shape = 's32[1]{0}', space=sflag, size = 0x4, scoped, tag = 'scoped memory for vae_forward.1']
    #allocation16 [shape = 'u8[16384]{0}', space=vmem, size = 0x4000, scoped, tag = 'input window, operand 14, single buffered']
    #allocation17 [shape = 'u8[512]{0}', space=vmem, size = 0x400, scoped, tag = 'input window, operand 15, single buffered']
    #allocation18 [shape = 's32[1]{0}', space=sflag, size = 0x4, scoped, tag = 'scoped memory for vae_forward.1']
    #allocation19 [shape = 'u8[512]{0}', space=vmem, size = 0x400, scoped, tag = 'input window, operand 16, single buffered']
    #allocation20 [shape = 'u8[512]{0}', space=vmem, size = 0x400, scoped, tag = 'input window, operand 18, single buffered']
    #allocation21 [shape = 's32[1]{0}', space=sflag, size = 0x4, scoped, tag = 'scoped memory for vae_forward.1']
    #allocation22 [shape = 'u8[1024]{0}', space=vmem, size = 0x400, scoped, tag = 'output window, operand 0, single buffered']
    #allocation23 [shape = 'u8[1024]{0}', space=vmem, size = 0x400, scoped, tag = 'output window, operand 1, single buffered']
    #allocation24 [shape = 's32[1]{0}', space=sflag, size = 0x4, scoped, tag = 'scoped memory for vae_forward.1']
    #allocation25 [shape = 'u8[1024]{0}', space=vmem, size = 0x400, scoped, tag = 'output window, operand 2, single buffered']
    #allocation26 [shape = 'u8[1024]{0}', space=vmem, size = 0x400, scoped, tag = 'output window, operand 4, single buffered']
    #allocation27 [shape = 's32[1]{0}', space=sflag, size = 0x4, scoped, tag = 'scoped memory for vae_forward.1']
    %29 = vsyncpa [#allocation3], 0
    %30 = vsyncpa [#allocation6], 0
    %31 = vsyncpa [#allocation9], 0
    %32 = vsyncpa [#allocation12], 0
    %33 = vsyncpa [#allocation15], 0
    %34 = vsyncpa [#allocation18], 0
    %35 = vsyncpa [#allocation21], 0
    %36 = vsyncpa [#allocation4], 0
    %37 = vsyncpa [#allocation24], 0
    %38 = vsyncpa [#allocation27], 0
    // Predicated region
    $region2: #{vae_forward.1} parent=1 // pred_check
      _
    $region3: #{vae_forward.1} parent=1 // pred_check_branch
      %40 = sbr.rel (0) target = $region5
    $region4: #{vae_forward.1} parent=1 // pred_region
      _
    $region5: #{vae_forward.1} parent=1 // pred_fallthru
      _
    // Predicated region
    $region6: #{vae_forward.1} parent=1 // pred_check
      _
    $region7: #{vae_forward.1} parent=1 // pred_check_branch
      %42 = sbr.rel (0) target = $region9
    $region8: #{vae_forward.1} parent=1 // pred_region
      _
    $region9: #{vae_forward.1} parent=1 // pred_fallthru
      _
    // Predicated region
    $region10: #{vae_forward.1} parent=1 // pred_check
      _
    $region11: #{vae_forward.1} parent=1 // pred_check_branch
      %44 = sbr.rel (0) target = $region13
    $region12: #{vae_forward.1} parent=1 // pred_region
      _
    $region13: #{vae_forward.1} parent=1 // pred_fallthru
      _
    // Predicated region
    $region14: #{vae_forward.1} parent=1 // pred_check
      _
    $region15: #{vae_forward.1} parent=1 // pred_check_branch
      %46 = sbr.rel (0) target = $region17
    $region16: #{vae_forward.1} parent=1 // pred_region
      %s48 = ssub.s32 256, 256
      %49 = vsyncadd [#allocation3], %s48
      %s50 = sshll.u32 [#allocation2], 4
      %s51 = int_to_ptr.vmem [resolvable:$true] %s50
      %56 = dma.hbm_to_vmem [thread:$0]  %s3, 256, %s51, [#allocation3], 128, 128, 8
    $region17: #{vae_forward.1} parent=1 // pred_fallthru
      _
    // Predicated region
    $region18: #{vae_forward.1} parent=1 // pred_check
      _
    $region19: #{vae_forward.1} parent=1 // pred_check_branch
      %58 = sbr.rel (0) target = $region21
    $region20: #{vae_forward.1} parent=1 // pred_region
      %s60 = ssub.s32 256, 256
      %61 = vsyncadd [#allocation6], %s60
      %s62 = sshll.u32 [#allocation5], 4
      %s63 = int_to_ptr.vmem [resolvable:$true] %s62
      %68 = dma.hbm_to_vmem [thread:$0]  %s4, 256, %s63, [#allocation6], 128, 128, 8
    $region21: #{vae_forward.1} parent=1 // pred_fallthru
      _
    // Predicated region
    $region22: #{vae_forward.1} parent=1 // pred_check
      _
    $region23: #{vae_forward.1} parent=1 // pred_check_branch
      %70 = sbr.rel (0) target = $region25
    $region24: #{vae_forward.1} parent=1 // pred_region
      _
    $region25: #{vae_forward.1} parent=1 // pred_fallthru
      _
    // Predicated region
    $region26: #{vae_forward.1} parent=1 // pred_check
      _
    $region27: #{vae_forward.1} parent=1 // pred_check_branch
      %72 = sbr.rel (0) target = $region29
    $region28: #{vae_forward.1} parent=1 // pred_region
      %s74 = ssub.s32 16, 16
      %75 = vsyncadd [#allocation6], %s74
      %s77 = sshll.u32 [#allocation7], 4
      %s78 = int_to_ptr.vmem [resolvable:$true] %s77
      %80 = dma.hbm_to_vmem [thread:$0]  %s6, 16, %s78, [#allocation6]
    $region29: #{vae_forward.1} parent=1 // pred_fallthru
      _
    // Predicated region
    $region30: #{vae_forward.1} parent=1 // pred_check
      _
    $region31: #{vae_forward.1} parent=1 // pred_check_branch
      %82 = sbr.rel (0) target = $region33
    $region32: #{vae_forward.1} parent=1 // pred_region
      %s84 = ssub.s32 16, 16
      %85 = vsyncadd [#allocation9], %s84
      %s87 = sshll.u32 [#allocation8], 4
      %s88 = int_to_ptr.vmem [resolvable:$true] %s87
      %90 = dma.hbm_to_vmem [thread:$0]  %s7, 16, %s88, [#allocation9]
    $region33: #{vae_forward.1} parent=1 // pred_fallthru
      _
    // Predicated region
    $region34: #{vae_forward.1} parent=1 // pred_check
      _
    $region35: #{vae_forward.1} parent=1 // pred_check_branch
      %92 = sbr.rel (0) target = $region37
    $region36: #{vae_forward.1} parent=1 // pred_region
      _
    $region37: #{vae_forward.1} parent=1 // pred_fallthru
      _
    // Predicated region
    $region38: #{vae_forward.1} parent=1 // pred_check
      _
    $region39: #{vae_forward.1} parent=1 // pred_check_branch
      %94 = sbr.rel (0) target = $region41
    $region40: #{vae_forward.1} parent=1 // pred_region
      %s96 = ssub.s32 16, 16
      %97 = vsyncadd [#allocation9], %s96
      %s99 = sshll.u32 [#allocation10], 4
      %s100 = int_to_ptr.vmem [resolvable:$true] %s99
      %102 = dma.hbm_to_vmem [thread:$0]  %s9, 16, %s100, [#allocation9]
    $region41: #{vae_forward.1} parent=1 // pred_fallthru
      _
    // Predicated region
    $region42: #{vae_forward.1} parent=1 // pred_check
      _
    $region43: #{vae_forward.1} parent=1 // pred_check_branch
      %104 = sbr.rel (0) target = $region45
    $region44: #{vae_forward.1} parent=1 // pred_region
      _
    $region45: #{vae_forward.1} parent=1 // pred_fallthru
      _
    // Predicated region
    $region46: #{vae_forward.1} parent=1 // pred_check
      _
    $region47: #{vae_forward.1} parent=1 // pred_check_branch
      %106 = sbr.rel (0) target = $region49
    $region48: #{vae_forward.1} parent=1 // pred_region
      %s108 = ssub.s32 16, 16
      %109 = vsyncadd [#allocation12], %s108
      %s111 = sshll.u32 [#allocation11], 4
      %s112 = int_to_ptr.vmem [resolvable:$true] %s111
      %114 = dma.hbm_to_vmem [thread:$0]  %s11, 16, %s112, [#allocation12]
    $region49: #{vae_forward.1} parent=1 // pred_fallthru
      _
    // Predicated region
    $region50: #{vae_forward.1} parent=1 // pred_check
      _
    $region51: #{vae_forward.1} parent=1 // pred_check_branch
      %116 = sbr.rel (0) target = $region53
    $region52: #{vae_forward.1} parent=1 // pred_region
      %s118 = ssub.s32 256, 256
      %119 = vsyncadd [#allocation12], %s118
      %s120 = sshll.u32 [#allocation13], 4
      %s121 = int_to_ptr.vmem [resolvable:$true] %s120
      %126 = dma.hbm_to_vmem [thread:$0]  %s12, 256, %s121, [#allocation12], 128, 128, 8
    $region53: #{vae_forward.1} parent=1 // pred_fallthru
      _
    // Predicated region
    $region54: #{vae_forward.1} parent=1 // pred_check
      _
    $region55: #{vae_forward.1} parent=1 // pred_check_branch
      %128 = sbr.rel (0) target = $region57
    $region56: #{vae_forward.1} parent=1 // pred_region
      %s130 = ssub.s32 256, 256
      %131 = vsyncadd [#allocation15], %s130
      %s132 = sshll.u32 [#allocation14], 4
      %s133 = int_to_ptr.vmem [resolvable:$true] %s132
      %138 = dma.hbm_to_vmem [thread:$0]  %s13, 256, %s133, [#allocation15], 128, 128, 8
    $region57: #{vae_forward.1} parent=1 // pred_fallthru
      _
    // Predicated region
    $region58: #{vae_forward.1} parent=1 // pred_check
      _
    $region59: #{vae_forward.1} parent=1 // pred_check_branch
      %140 = sbr.rel (0) target = $region61
    $region60: #{vae_forward.1} parent=1 // pred_region
      %s142 = ssub.s32 512, 512
      %143 = vsyncadd [#allocation15], %s142
      %s144 = sshll.u32 [#allocation16], 4
      %s145 = int_to_ptr.vmem [resolvable:$true] %s144
      %150 = dma.hbm_to_vmem [thread:$0]  %s14, 512, %s145, [#allocation15], 128, 128, 8
    $region61: #{vae_forward.1} parent=1 // pred_fallthru
      _
    // Predicated region
    $region62: #{vae_forward.1} parent=1 // pred_check
      _
    $region63: #{vae_forward.1} parent=1 // pred_check_branch
      %152 = sbr.rel (0) target = $region65
    $region64: #{vae_forward.1} parent=1 // pred_region
      %s154 = ssub.s32 16, 16
      %155 = vsyncadd [#allocation18], %s154
      %s157 = sshll.u32 [#allocation17], 4
      %s158 = int_to_ptr.vmem [resolvable:$true] %s157
      %160 = dma.hbm_to_vmem [thread:$0]  %s15, 16, %s158, [#allocation18]
    $region65: #{vae_forward.1} parent=1 // pred_fallthru
      _
    // Predicated region
    $region66: #{vae_forward.1} parent=1 // pred_check
      _
    $region67: #{vae_forward.1} parent=1 // pred_check_branch
      %162 = sbr.rel (0) target = $region69
    $region68: #{vae_forward.1} parent=1 // pred_region
      %s164 = ssub.s32 16, 16
      %165 = vsyncadd [#allocation18], %s164
      %s167 = sshll.u32 [#allocation19], 4
      %s168 = int_to_ptr.vmem [resolvable:$true] %s167
      %170 = dma.hbm_to_vmem [thread:$0]  %s16, 16, %s168, [#allocation18]
    $region69: #{vae_forward.1} parent=1 // pred_fallthru
      _
    // Predicated region
    $region70: #{vae_forward.1} parent=1 // pred_check
      _
    $region71: #{vae_forward.1} parent=1 // pred_check_branch
      %172 = sbr.rel (0) target = $region73
    $region72: #{vae_forward.1} parent=1 // pred_region
      _
    $region73: #{vae_forward.1} parent=1 // pred_fallthru
      _
    // Predicated region
    $region74: #{vae_forward.1} parent=1 // pred_check
      _
    $region75: #{vae_forward.1} parent=1 // pred_check_branch
      %174 = sbr.rel (0) target = $region77
    $region76: #{vae_forward.1} parent=1 // pred_region
      %s176 = ssub.s32 16, 16
      %177 = vsyncadd [#allocation21], %s176
      %s179 = sshll.u32 [#allocation20], 4
      %s180 = int_to_ptr.vmem [resolvable:$true] %s179
      %182 = dma.hbm_to_vmem [thread:$0]  %s18, 16, %s180, [#allocation21]
    $region77: #{vae_forward.1} parent=1 // pred_fallthru
      _
    // Predicated region
    $region78: #{vae_forward.1} parent=1 // pred_check
      _
    $region79: #{vae_forward.1} parent=1 // pred_check_branch
      %184 = sbr.rel (0) target = $region81
    $region80: #{vae_forward.1} parent=1 // pred_region
      %185 = dma.done [#allocation3], 256
    $region81: #{vae_forward.1} parent=1 // pred_fallthru
      _
    // Predicated region
    $region82: #{vae_forward.1} parent=1 // pred_check
      _
    $region83: #{vae_forward.1} parent=1 // pred_check_branch
      %187 = sbr.rel (0) target = $region85
    $region84: #{vae_forward.1} parent=1 // pred_region
      %188 = dma.done [#allocation6], 256
    $region85: #{vae_forward.1} parent=1 // pred_fallthru
      _
    // Predicated region
    $region86: #{vae_forward.1} parent=1 // pred_check
      _
    $region87: #{vae_forward.1} parent=1 // pred_check_branch
      %190 = sbr.rel (0) target = $region89
    $region88: #{vae_forward.1} parent=1 // pred_region
      %191 = dma.done [#allocation6], 16
    $region89: #{vae_forward.1} parent=1 // pred_fallthru
      _
    // Predicated region
    $region90: #{vae_forward.1} parent=1 // pred_check
      _
    $region91: #{vae_forward.1} parent=1 // pred_check_branch
      %193 = sbr.rel (0) target = $region93
    $region92: #{vae_forward.1} parent=1 // pred_region
      %194 = dma.done [#allocation9], 16
    $region93: #{vae_forward.1} parent=1 // pred_fallthru
      _
    // Predicated region
    $region94: #{vae_forward.1} parent=1 // pred_check
      _
    $region95: #{vae_forward.1} parent=1 // pred_check_branch
      %196 = sbr.rel (0) target = $region97
    $region96: #{vae_forward.1} parent=1 // pred_region
      %197 = dma.done [#allocation9], 16
    $region97: #{vae_forward.1} parent=1 // pred_fallthru
      _
    // Predicated region
    $region98: #{vae_forward.1} parent=1 // pred_check
      _
    $region99: #{vae_forward.1} parent=1 // pred_check_branch
      %199 = sbr.rel (0) target = $region101
    $region100: #{vae_forward.1} parent=1 // pred_region
      %200 = dma.done [#allocation12], 16
    $region101: #{vae_forward.1} parent=1 // pred_fallthru
      _
    // Predicated region
    $region102: #{vae_forward.1} parent=1 // pred_check
      _
    $region103: #{vae_forward.1} parent=1 // pred_check_branch
      %202 = sbr.rel (0) target = $region105
    $region104: #{vae_forward.1} parent=1 // pred_region
      %203 = dma.done [#allocation12], 256
    $region105: #{vae_forward.1} parent=1 // pred_fallthru
      _
    // Predicated region
    $region106: #{vae_forward.1} parent=1 // pred_check
      _
    $region107: #{vae_forward.1} parent=1 // pred_check_branch
      %205 = sbr.rel (0) target = $region109
    $region108: #{vae_forward.1} parent=1 // pred_region
      %206 = dma.done [#allocation15], 256
    $region109: #{vae_forward.1} parent=1 // pred_fallthru
      _
    // Predicated region
    $region110: #{vae_forward.1} parent=1 // pred_check
      _
    $region111: #{vae_forward.1} parent=1 // pred_check_branch
      %208 = sbr.rel (0) target = $region113
    $region112: #{vae_forward.1} parent=1 // pred_region
      %209 = dma.done [#allocation15], 512
    $region113: #{vae_forward.1} parent=1 // pred_fallthru
      _
    // Predicated region
    $region114: #{vae_forward.1} parent=1 // pred_check
      _
    $region115: #{vae_forward.1} parent=1 // pred_check_branch
      %211 = sbr.rel (0) target = $region117
    $region116: #{vae_forward.1} parent=1 // pred_region
      %212 = dma.done [#allocation18], 16
    $region117: #{vae_forward.1} parent=1 // pred_fallthru
      _
    // Predicated region
    $region118: #{vae_forward.1} parent=1 // pred_check
      _
    $region119: #{vae_forward.1} parent=1 // pred_check_branch
      %214 = sbr.rel (0) target = $region121
    $region120: #{vae_forward.1} parent=1 // pred_region
      %215 = dma.done [#allocation18], 16
    $region121: #{vae_forward.1} parent=1 // pred_fallthru
      _
    // Predicated region
    $region122: #{vae_forward.1} parent=1 // pred_check
      _
    $region123: #{vae_forward.1} parent=1 // pred_check_branch
      %217 = sbr.rel (0) target = $region125
    $region124: #{vae_forward.1} parent=1 // pred_region
      %218 = dma.done [#allocation21], 16
    $region125: #{vae_forward.1} parent=1 // pred_fallthru
      _
    %v219 = vld [vmem:[#allocation2] sm:$0xff]
    %v220 = vld [vmem:[#allocation2 + $0x8] sm:$0xff]
    %v221 = vld [vmem:[#allocation5] sm:$0xff]
    %v222 = vld [vmem:[#allocation5 + $0x8] sm:$0xff]
    %v223 = vld [vmem:[%s5] sm:$0xff]
    %v224 = vld [vmem:[%s5 + $0x8] sm:$0xff]
    %v225 = vld [vmem:[%s5 + $0x10] sm:$0xff]
    %v226 = vld [vmem:[%s5 + $0x18] sm:$0xff]
    %v227 = vld [vmem:[#allocation7] sm:$0x1]
    %v228 = vld [vmem:[#allocation8] sm:$0x1]
    %v229 = vld [vmem:[#allocation13] sm:$0xff]
    %v230 = vld [vmem:[#allocation13 + $0x8] sm:$0xff]
    %v231 = vld [vmem:[#allocation14] sm:$0xff]
    %v232 = vld [vmem:[#allocation14 + $0x8] sm:$0xff]
    %v233 = vld [vmem:[#allocation16] sm:$0xff]
    %v234 = vld [vmem:[#allocation16 + $0x8] sm:$0xff]
    %v235 = vld [vmem:[#allocation16 + $0x10] sm:$0xff]
    %v236 = vld [vmem:[#allocation16 + $0x18] sm:$0xff]
    %v237 = vld [vmem:[#allocation17] sm:$0x1]
    %v238 = vld [vmem:[#allocation19] sm:$0x1]
    %v239 = vld [vmem:[%s17] sm:$0xff]
    %v240 = vld [vmem:[%s17 + $0x8] sm:$0xff]
    %v241 = vld [vmem:[%s17 + $0x10] sm:$0xff]
    %v242 = vld [vmem:[%s17 + $0x18] sm:$0xff]
    %v243 = vld [vmem:[#allocation20] sm:$0x1]
    %v244 = vld [vmem:[%s0] sm:$0x3]
    %v245 = vlaneseq
    %v246 = vand.u32 %v245, 127
    %247 = vset.pattern.permute.xlu0 0
    %248 = vperm.xlu0 %247, %v244
    %v249 = vpop.permute.xlu0 %248
    %vm250 = vcmp.eq.s32.totalorder %v249, %v246
    %v251 = vsel %vm250, 1, 0
    %v252 = vcvt.s32.f32 %v251
    %vm253 = vcmask 130048
    %v255 = vsel %vm253, %v252, 0
    %257 = vmatprep.subr.mxu0 0.0
    %258 = vmatpush1.msra.mxu0 %v219
    %259 = vmatprep.subr.mxu0 0.0
    %260 = vmatpush1.msra.mxu0 %v220
    %261 = vmatprep.subr.mxu0 0.0
    %262 = vmatpush1.msra.mxu0 0.0
    %263 = vmatprep.subr.mxu0 0.0
    %264 = vmatpush1.msra.mxu0 0.0
    %265 = vmatprep.subr.mxu0 0.0
    %266 = vmatpush1.msra.mxu0 0.0
    %267 = vmatprep.subr.mxu0 0.0
    %268 = vmatpush1.msra.mxu0 0.0
    %269 = vmatprep.subr.mxu0 0.0
    %270 = vmatpush1.msra.mxu0 0.0
    %271 = vmatprep.subr.mxu0 0.0
    %272 = vmatpush1.msra.mxu0 0.0
    %273 = vmatprep.subr.mxu0 0.0
    %274 = vmatpush1.msra.mxu0 0.0
    %275 = vmatprep.subr.mxu0 0.0
    %276 = vmatpush1.msra.mxu0 0.0
    %277 = vmatprep.subr.mxu0 0.0
    %278 = vmatpush1.msra.mxu0 0.0
    %279 = vmatprep.subr.mxu0 0.0
    %280 = vmatpush1.msra.mxu0 0.0
    %281 = vmatprep.subr.mxu0 0.0
    %282 = vmatpush1.msra.mxu0 0.0
    %283 = vmatprep.subr.mxu0 0.0
    %284 = vmatpush1.msra.mxu0 0.0
    %285 = vmatprep.subr.mxu0 0.0
    %286 = vmatpush1.msra.mxu0 0.0
    %287 = vmatprep.subr.mxu0 0.0
    %288 = vmatpush1.msra.mxu0 0.0
    %289 = vmatprep.subr.mxu0 0.0
    %290 = vmatpush1.msra.mxu0 0.0
    %291 = vmatprep.subr.mxu0 0.0
    %292 = vmatpush1.msra.mxu0 0.0
    %293 = vmatprep.subr.mxu0 0.0
    %294 = vmatpush1.msra.mxu0 0.0
    %295 = vmatprep.subr.mxu0 0.0
    %296 = vmatpush1.msra.mxu0 0.0
    %297 = vmatprep.subr.mxu0 0.0
    %298 = vmatpush1.msra.mxu0 0.0
    %299 = vmatprep.subr.mxu0 0.0
    %300 = vmatpush1.msra.mxu0 0.0
    %301 = vmatprep.subr.mxu0 0.0
    %302 = vmatpush1.msra.mxu0 0.0
    %303 = vmatprep.subr.mxu0 0.0
    %304 = vmatpush1.msra.mxu0 0.0
    %305 = vmatprep.subr.mxu0 0.0
    %306 = vmatpush1.msra.mxu0 0.0
    %307 = vmatprep.subr.mxu0 0.0
    %308 = vmatpush1.msra.mxu0 0.0
    %309 = vmatprep.subr.mxu0 0.0
    %310 = vmatpush1.msra.mxu0 0.0
    %311 = vmatprep.subr.mxu0 0.0
    %312 = vmatpush1.msra.mxu0 0.0
    %313 = vmatprep.subr.mxu0 0.0
    %314 = vmatpush1.msra.mxu0 0.0
    %315 = vmatprep.subr.mxu0 0.0
    %316 = vmatpush1.msra.mxu0 0.0
    %317 = vmatprep.subr.mxu0 0.0
    %318 = vmatpush1.msra.mxu0 0.0
    %319 = vmatprep.subr.mxu0 0.0
    %320 = vmatpush1.msra.mxu0 0.0
    %321 = vmatprep.mubr.f32.mxu0 0.0
    %322 = vmatmul.mubr.f32.gmra.mrb[0].mxu0 %v255
    %v323 = vpop.f32.mrb[0].mxu0
    %v324 = vadd.f32 0.0, %v323
    %v325 = vpop.f32.mrb[0].mxu0
    %326 = vdwg.mxu0
    %v328 = vlaneseq
    %v329 = vshrl.u32 %v328, 7
    %v330 = vsub.s32 0, %v329
    %v331 = vrot.slane %v227, %v330
    %v334 = vsel %vm253, %v324, 0
    %336 = vmatprep.subr.mxu0 0.0
    %337 = vmatpush1.msra.mxu0 %v221
    %338 = vmatprep.subr.mxu0 0.0
    %339 = vmatpush1.msra.mxu0 %v222
    %340 = vmatprep.subr.mxu0 0.0
    %341 = vmatpush1.msra.mxu0 0.0
    %342 = vmatprep.subr.mxu0 0.0
    %343 = vmatpush1.msra.mxu0 0.0
    %344 = vmatprep.subr.mxu0 0.0
    %345 = vmatpush1.msra.mxu0 0.0
    %346 = vmatprep.subr.mxu0 0.0
    %347 = vmatpush1.msra.mxu0 0.0
    %348 = vmatprep.subr.mxu0 0.0
    %349 = vmatpush1.msra.mxu0 0.0
    %350 = vmatprep.subr.mxu0 0.0
    %351 = vmatpush1.msra.mxu0 0.0
    %352 = vmatprep.subr.mxu0 0.0
    %353 = vmatpush1.msra.mxu0 0.0
    %354 = vmatprep.subr.mxu0 0.0
    %355 = vmatpush1.msra.mxu0 0.0
    %356 = vmatprep.subr.mxu0 0.0
    %357 = vmatpush1.msra.mxu0 0.0
    %358 = vmatprep.subr.mxu0 0.0
    %359 = vmatpush1.msra.mxu0 0.0
    %360 = vmatprep.subr.mxu0 0.0
    %361 = vmatpush1.msra.mxu0 0.0
    %362 = vmatprep.subr.mxu0 0.0
    %363 = vmatpush1.msra.mxu0 0.0
    %364 = vmatprep.subr.mxu0 0.0
    %365 = vmatpush1.msra.mxu0 0.0
    %366 = vmatprep.subr.mxu0 0.0
    %367 = vmatpush1.msra.mxu0 0.0
    %368 = vmatprep.subr.mxu0 0.0
    %369 = vmatpush1.msra.mxu0 0.0
    %370 = vmatprep.subr.mxu0 0.0
    %371 = vmatpush1.msra.mxu0 0.0
    %372 = vmatprep.subr.mxu0 0.0
    %373 = vmatpush1.msra.mxu0 0.0
    %374 = vmatprep.subr.mxu0 0.0
    %375 = vmatpush1.msra.mxu0 0.0
    %376 = vmatprep.subr.mxu0 0.0
    %377 = vmatpush1.msra.mxu0 0.0
    %378 = vmatprep.subr.mxu0 0.0
    %379 = vmatpush1.msra.mxu0 0.0
    %380 = vmatprep.subr.mxu0 0.0
    %381 = vmatpush1.msra.mxu0 0.0
    %382 = vmatprep.subr.mxu0 0.0
    %383 = vmatpush1.msra.mxu0 0.0
    %384 = vmatprep.subr.mxu0 0.0
    %385 = vmatpush1.msra.mxu0 0.0
    %386 = vmatprep.subr.mxu0 0.0
    %387 = vmatpush1.msra.mxu0 0.0
    %388 = vmatprep.subr.mxu0 0.0
    %389 = vmatpush1.msra.mxu0 0.0
    %390 = vmatprep.subr.mxu0 0.0
    %391 = vmatpush1.msra.mxu0 0.0
    %392 = vmatprep.subr.mxu0 0.0
    %393 = vmatpush1.msra.mxu0 0.0
    %394 = vmatprep.subr.mxu0 0.0
    %395 = vmatpush1.msra.mxu0 0.0
    %396 = vmatprep.subr.mxu0 0.0
    %397 = vmatpush1.msra.mxu0 0.0
    %398 = vmatprep.subr.mxu0 0.0
    %399 = vmatpush1.msra.mxu0 0.0
    %400 = vmatprep.mubr.f32.mxu0 0.0
    %401 = vmatmul.mubr.f32.gmra.mrb[0].mxu0 %v334
    %v402 = vpop.f32.mrb[0].mxu0
    %v403 = vadd.f32 %v331, %v402
    %v404 = vpop.f32.mrb[0].mxu0
    %405 = vdwg.mxu0
    %v407 = vlaneseq
    %v408 = vshrl.u32 %v407, 7
    %v409 = vsub.s32 0, %v408
    %v410 = vrot.slane %v228, %v409
    %vm412 = vcmask 261120
    %v414 = vsel %vm412, 0.0, 0
    %416 = vmatprep.subr.mxu0 0.0
    %417 = vmatpush1.msra.mxu0 %v223
    %418 = vmatprep.subr.mxu0 0.0
    %419 = vmatpush1.msra.mxu0 %v224
    %420 = vmatprep.subr.mxu0 0.0
    %421 = vmatpush1.msra.mxu0 %v225
    %422 = vmatprep.subr.mxu0 0.0
    %423 = vmatpush1.msra.mxu0 %v226
    %424 = vmatprep.subr.mxu0 0.0
    %425 = vmatpush1.msra.mxu0 0.0
    %426 = vmatprep.subr.mxu0 0.0
    %427 = vmatpush1.msra.mxu0 0.0
    %428 = vmatprep.subr.mxu0 0.0
    %429 = vmatpush1.msra.mxu0 0.0
    %430 = vmatprep.subr.mxu0 0.0
    %431 = vmatpush1.msra.mxu0 0.0
    %432 = vmatprep.subr.mxu0 0.0
    %433 = vmatpush1.msra.mxu0 0.0
    %434 = vmatprep.subr.mxu0 0.0
    %435 = vmatpush1.msra.mxu0 0.0
    %436 = vmatprep.subr.mxu0 0.0
    %437 = vmatpush1.msra.mxu0 0.0
    %438 = vmatprep.subr.mxu0 0.0
    %439 = vmatpush1.msra.mxu0 0.0
    %440 = vmatprep.subr.mxu0 0.0
    %441 = vmatpush1.msra.mxu0 0.0
    %442 = vmatprep.subr.mxu0 0.0
    %443 = vmatpush1.msra.mxu0 0.0
    %444 = vmatprep.subr.mxu0 0.0
    %445 = vmatpush1.msra.mxu0 0.0
    %446 = vmatprep.subr.mxu0 0.0
    %447 = vmatpush1.msra.mxu0 0.0
    %448 = vmatprep.subr.mxu0 0.0
    %449 = vmatpush1.msra.mxu0 0.0
    %450 = vmatprep.subr.mxu0 0.0
    %451 = vmatpush1.msra.mxu0 0.0
    %452 = vmatprep.subr.mxu0 0.0
    %453 = vmatpush1.msra.mxu0 0.0
    %454 = vmatprep.subr.mxu0 0.0
    %455 = vmatpush1.msra.mxu0 0.0
    %456 = vmatprep.subr.mxu0 0.0
    %457 = vmatpush1.msra.mxu0 0.0
    %458 = vmatprep.subr.mxu0 0.0
    %459 = vmatpush1.msra.mxu0 0.0
    %460 = vmatprep.subr.mxu0 0.0
    %461 = vmatpush1.msra.mxu0 0.0
    %462 = vmatprep.subr.mxu0 0.0
    %463 = vmatpush1.msra.mxu0 0.0
    %464 = vmatprep.subr.mxu0 0.0
    %465 = vmatpush1.msra.mxu0 0.0
    %466 = vmatprep.subr.mxu0 0.0
    %467 = vmatpush1.msra.mxu0 0.0
    %468 = vmatprep.subr.mxu0 0.0
    %469 = vmatpush1.msra.mxu0 0.0
    %470 = vmatprep.subr.mxu0 0.0
    %471 = vmatpush1.msra.mxu0 0.0
    %472 = vmatprep.subr.mxu0 0.0
    %473 = vmatpush1.msra.mxu0 0.0
    %474 = vmatprep.subr.mxu0 0.0
    %475 = vmatpush1.msra.mxu0 0.0
    %476 = vmatprep.subr.mxu0 0.0
    %477 = vmatpush1.msra.mxu0 0.0
    %478 = vmatprep.subr.mxu0 0.0
    %479 = vmatpush1.msra.mxu0 0.0
    %480 = vmatprep.mubr.f32.mxu0 0.0
    %481 = vmatmul.mubr.f32.gmra.mrb[0].mxu0 %v414
    %v482 = vpop.f32.mrb[0].mxu0
    %v483 = vadd.f32 %v410, %v482
    %v484 = vpop.f32.mrb[0].mxu0
    %485 = vdwg.mxu0
    %v486 = vadd.f32 %v403, %v483
    %v487 = vxor.u32 %v486, 2147483648
    %v488 = vmul.f32 %v487, 1.442695
    %v489 = vpow.pop %v488
    %v490 = vadd.f32 %v489, 1.0
    %v491 = vrcp.pop %v490
    %v492 = vmul.f32 1.0, %v491
    %494 = vrot.lane.b32.xlu0 %v483, 64
    %v495 = vpop.permute.xlu0 %494
    %v497 = vmul.f32 %v492, %v495
    %499 = vrot.lane.b32.xlu0 %v497, 64
    %v500 = vpop.permute.xlu0 %499
    %v502 = vadd.f32 %v403, %v500
    %v503 = vtanh.pop %v502
    %v504 = vsub.f32 1.0, %v492
    %506 = vrot.lane.b32.xlu0 %v503, 96
    %v507 = vpop.permute.xlu0 %506
    %v509 = vmul.f32 %v504, %v507
    %v510 = vmul.f32 %v492, 0.0
    %v511 = vadd.f32 %v509, %v510
    %512 = vset.pattern.permute.xlu0 1
    %513 = vperm.xlu0 %512, %v244
    %v514 = vpop.permute.xlu0 %513
    %vm515 = vcmp.eq.s32.totalorder %v514, %v246
    %v516 = vsel %vm515, 1, 0
    %v517 = vcvt.s32.f32 %v516
    %v519 = vsel %vm253, %v517, 0
    %521 = vmatprep.subr.mxu0 0.0
    %522 = vmatpush1.msra.mxu0 %v219
    %523 = vmatprep.subr.mxu0 0.0
    %524 = vmatpush1.msra.mxu0 %v220
    %525 = vmatprep.subr.mxu0 0.0
    %526 = vmatpush1.msra.mxu0 0.0
    %527 = vmatprep.subr.mxu0 0.0
    %528 = vmatpush1.msra.mxu0 0.0
    %529 = vmatprep.subr.mxu0 0.0
    %530 = vmatpush1.msra.mxu0 0.0
    %531 = vmatprep.subr.mxu0 0.0
    %532 = vmatpush1.msra.mxu0 0.0
    %533 = vmatprep.subr.mxu0 0.0
    %534 = vmatpush1.msra.mxu0 0.0
    %535 = vmatprep.subr.mxu0 0.0
    %536 = vmatpush1.msra.mxu0 0.0
    %537 = vmatprep.subr.mxu0 0.0
    %538 = vmatpush1.msra.mxu0 0.0
    %539 = vmatprep.subr.mxu0 0.0
    %540 = vmatpush1.msra.mxu0 0.0
    %541 = vmatprep.subr.mxu0 0.0
    %542 = vmatpush1.msra.mxu0 0.0
    %543 = vmatprep.subr.mxu0 0.0
    %544 = vmatpush1.msra.mxu0 0.0
    %545 = vmatprep.subr.mxu0 0.0
    %546 = vmatpush1.msra.mxu0 0.0
    %547 = vmatprep.subr.mxu0 0.0
    %548 = vmatpush1.msra.mxu0 0.0
    %549 = vmatprep.subr.mxu0 0.0
    %550 = vmatpush1.msra.mxu0 0.0
    %551 = vmatprep.subr.mxu0 0.0
    %552 = vmatpush1.msra.mxu0 0.0
    %553 = vmatprep.subr.mxu0 0.0
    %554 = vmatpush1.msra.mxu0 0.0
    %555 = vmatprep.subr.mxu0 0.0
    %556 = vmatpush1.msra.mxu0 0.0
    %557 = vmatprep.subr.mxu0 0.0
    %558 = vmatpush1.msra.mxu0 0.0
    %559 = vmatprep.subr.mxu0 0.0
    %560 = vmatpush1.msra.mxu0 0.0
    %561 = vmatprep.subr.mxu0 0.0
    %562 = vmatpush1.msra.mxu0 0.0
    %563 = vmatprep.subr.mxu0 0.0
    %564 = vmatpush1.msra.mxu0 0.0
    %565 = vmatprep.subr.mxu0 0.0
    %566 = vmatpush1.msra.mxu0 0.0
    %567 = vmatprep.subr.mxu0 0.0
    %568 = vmatpush1.msra.mxu0 0.0
    %569 = vmatprep.subr.mxu0 0.0
    %570 = vmatpush1.msra.mxu0 0.0
    %571 = vmatprep.subr.mxu0 0.0
    %572 = vmatpush1.msra.mxu0 0.0
    %573 = vmatprep.subr.mxu0 0.0
    %574 = vmatpush1.msra.mxu0 0.0
    %575 = vmatprep.subr.mxu0 0.0
    %576 = vmatpush1.msra.mxu0 0.0
    %577 = vmatprep.subr.mxu0 0.0
    %578 = vmatpush1.msra.mxu0 0.0
    %579 = vmatprep.subr.mxu0 0.0
    %580 = vmatpush1.msra.mxu0 0.0
    %581 = vmatprep.subr.mxu0 0.0
    %582 = vmatpush1.msra.mxu0 0.0
    %583 = vmatprep.subr.mxu0 0.0
    %584 = vmatpush1.msra.mxu0 0.0
    %585 = vmatprep.mubr.f32.mxu0 0.0
    %586 = vmatmul.mubr.f32.gmra.mrb[0].mxu0 %v519
    %v587 = vpop.f32.mrb[0].mxu0
    %v588 = vadd.f32 0.0, %v587
    %v589 = vpop.f32.mrb[0].mxu0
    %590 = vdwg.mxu0
    %v592 = vsel %vm253, %v588, 0
    %594 = vmatprep.subr.mxu0 0.0
    %595 = vmatpush1.msra.mxu0 %v221
    %596 = vmatprep.subr.mxu0 0.0
    %597 = vmatpush1.msra.mxu0 %v222
    %598 = vmatprep.subr.mxu0 0.0
    %599 = vmatpush1.msra.mxu0 0.0
    %600 = vmatprep.subr.mxu0 0.0
    %601 = vmatpush1.msra.mxu0 0.0
    %602 = vmatprep.subr.mxu0 0.0
    %603 = vmatpush1.msra.mxu0 0.0
    %604 = vmatprep.subr.mxu0 0.0
    %605 = vmatpush1.msra.mxu0 0.0
    %606 = vmatprep.subr.mxu0 0.0
    %607 = vmatpush1.msra.mxu0 0.0
    %608 = vmatprep.subr.mxu0 0.0
    %609 = vmatpush1.msra.mxu0 0.0
    %610 = vmatprep.subr.mxu0 0.0
    %611 = vmatpush1.msra.mxu0 0.0
    %612 = vmatprep.subr.mxu0 0.0
    %613 = vmatpush1.msra.mxu0 0.0
    %614 = vmatprep.subr.mxu0 0.0
    %615 = vmatpush1.msra.mxu0 0.0
    %616 = vmatprep.subr.mxu0 0.0
    %617 = vmatpush1.msra.mxu0 0.0
    %618 = vmatprep.subr.mxu0 0.0
    %619 = vmatpush1.msra.mxu0 0.0
    %620 = vmatprep.subr.mxu0 0.0
    %621 = vmatpush1.msra.mxu0 0.0
    %622 = vmatprep.subr.mxu0 0.0
    %623 = vmatpush1.msra.mxu0 0.0
    %624 = vmatprep.subr.mxu0 0.0
    %625 = vmatpush1.msra.mxu0 0.0
    %626 = vmatprep.subr.mxu0 0.0
    %627 = vmatpush1.msra.mxu0 0.0
    %628 = vmatprep.subr.mxu0 0.0
    %629 = vmatpush1.msra.mxu0 0.0
    %630 = vmatprep.subr.mxu0 0.0
    %631 = vmatpush1.msra.mxu0 0.0
    %632 = vmatprep.subr.mxu0 0.0
    %633 = vmatpush1.msra.mxu0 0.0
    %634 = vmatprep.subr.mxu0 0.0
    %635 = vmatpush1.msra.mxu0 0.0
    %636 = vmatprep.subr.mxu0 0.0
    %637 = vmatpush1.msra.mxu0 0.0
    %638 = vmatprep.subr.mxu0 0.0
    %639 = vmatpush1.msra.mxu0 0.0
    %640 = vmatprep.subr.mxu0 0.0
    %641 = vmatpush1.msra.mxu0 0.0
    %642 = vmatprep.subr.mxu0 0.0
    %643 = vmatpush1.msra.mxu0 0.0
    %644 = vmatprep.subr.mxu0 0.0
    %645 = vmatpush1.msra.mxu0 0.0
    %646 = vmatprep.subr.mxu0 0.0
    %647 = vmatpush1.msra.mxu0 0.0
    %648 = vmatprep.subr.mxu0 0.0
    %649 = vmatpush1.msra.mxu0 0.0
    %650 = vmatprep.subr.mxu0 0.0
    %651 = vmatpush1.msra.mxu0 0.0
    %652 = vmatprep.subr.mxu0 0.0
    %653 = vmatpush1.msra.mxu0 0.0
    %654 = vmatprep.subr.mxu0 0.0
    %655 = vmatpush1.msra.mxu0 0.0
    %656 = vmatprep.subr.mxu0 0.0
    %657 = vmatpush1.msra.mxu0 0.0
    %658 = vmatprep.mubr.f32.mxu0 0.0
    %659 = vmatmul.mubr.f32.gmra.mrb[0].mxu0 %v592
    %v660 = vpop.f32.mrb[0].mxu0
    %v661 = vadd.f32 %v331, %v660
    %v662 = vpop.f32.mrb[0].mxu0
    %663 = vdwg.mxu0
    %665 = vrot.lane.b32.xlu0 %v511, 96
    %v666 = vpop.permute.xlu0 %665
    %v667 = vsel %vm412, %v666, 0
    %669 = vmatprep.subr.mxu0 0.0
    %670 = vmatpush1.msra.mxu0 %v223
    %671 = vmatprep.subr.mxu0 0.0
    %672 = vmatpush1.msra.mxu0 %v224
    %673 = vmatprep.subr.mxu0 0.0
    %674 = vmatpush1.msra.mxu0 %v225
    %675 = vmatprep.subr.mxu0 0.0
    %676 = vmatpush1.msra.mxu0 %v226
    %677 = vmatprep.subr.mxu0 0.0
    %678 = vmatpush1.msra.mxu0 0.0
    %679 = vmatprep.subr.mxu0 0.0
    %680 = vmatpush1.msra.mxu0 0.0
    %681 = vmatprep.subr.mxu0 0.0
    %682 = vmatpush1.msra.mxu0 0.0
    %683 = vmatprep.subr.mxu0 0.0
    %684 = vmatpush1.msra.mxu0 0.0
    %685 = vmatprep.subr.mxu0 0.0
    %686 = vmatpush1.msra.mxu0 0.0
    %687 = vmatprep.subr.mxu0 0.0
    %688 = vmatpush1.msra.mxu0 0.0
    %689 = vmatprep.subr.mxu0 0.0
    %690 = vmatpush1.msra.mxu0 0.0
    %691 = vmatprep.subr.mxu0 0.0
    %692 = vmatpush1.msra.mxu0 0.0
    %693 = vmatprep.subr.mxu0 0.0
    %694 = vmatpush1.msra.mxu0 0.0
    %695 = vmatprep.subr.mxu0 0.0
    %696 = vmatpush1.msra.mxu0 0.0
    %697 = vmatprep.subr.mxu0 0.0
    %698 = vmatpush1.msra.mxu0 0.0
    %699 = vmatprep.subr.mxu0 0.0
    %700 = vmatpush1.msra.mxu0 0.0
    %701 = vmatprep.subr.mxu0 0.0
    %702 = vmatpush1.msra.mxu0 0.0
    %703 = vmatprep.subr.mxu0 0.0
    %704 = vmatpush1.msra.mxu0 0.0
    %705 = vmatprep.subr.mxu0 0.0
    %706 = vmatpush1.msra.mxu0 0.0
    %707 = vmatprep.subr.mxu0 0.0
    %708 = vmatpush1.msra.mxu0 0.0
    %709 = vmatprep.subr.mxu0 0.0
    %710 = vmatpush1.msra.mxu0 0.0
    %711 = vmatprep.subr.mxu0 0.0
    %712 = vmatpush1.msra.mxu0 0.0
    %713 = vmatprep.subr.mxu0 0.0
    %714 = vmatpush1.msra.mxu0 0.0
    %715 = vmatprep.subr.mxu0 0.0
    %716 = vmatpush1.msra.mxu0 0.0
    %717 = vmatprep.subr.mxu0 0.0
    %718 = vmatpush1.msra.mxu0 0.0
    %719 = vmatprep.subr.mxu0 0.0
    %720 = vmatpush1.msra.mxu0 0.0
    %721 = vmatprep.subr.mxu0 0.0
    %722 = vmatpush1.msra.mxu0 0.0
    %723 = vmatprep.subr.mxu0 0.0
    %724 = vmatpush1.msra.mxu0 0.0
    %725 = vmatprep.subr.mxu0 0.0
    %726 = vmatpush1.msra.mxu0 0.0
    %727 = vmatprep.subr.mxu0 0.0
    %728 = vmatpush1.msra.mxu0 0.0
    %729 = vmatprep.subr.mxu0 0.0
    %730 = vmatpush1.msra.mxu0 0.0
    %731 = vmatprep.subr.mxu0 0.0
    %732 = vmatpush1.msra.mxu0 0.0
    %733 = vmatprep.mubr.f32.mxu0 0.0
    %734 = vmatmul.mubr.f32.gmra.mrb[0].mxu0 %v667
    %v735 = vpop.f32.mrb[0].mxu0
    %v736 = vadd.f32 %v410, %v735
    %v737 = vpop.f32.mrb[0].mxu0
    %738 = vdwg.mxu0
    %v739 = vadd.f32 %v661, %v736
    %v740 = vxor.u32 %v739, 2147483648
    %v741 = vmul.f32 %v740, 1.442695
    %v742 = vpow.pop %v741
    %v743 = vadd.f32 %v742, 1.0
    %v744 = vrcp.pop %v743
    %v745 = vmul.f32 1.0, %v744
    %747 = vrot.lane.b32.xlu0 %v736, 64
    %v748 = vpop.permute.xlu0 %747
    %v750 = vmul.f32 %v745, %v748
    %752 = vrot.lane.b32.xlu0 %v750, 64
    %v753 = vpop.permute.xlu0 %752
    %v755 = vadd.f32 %v661, %v753
    %v756 = vtanh.pop %v755
    %v757 = vsub.f32 1.0, %v745
    %759 = vrot.lane.b32.xlu0 %v756, 96
    %v760 = vpop.permute.xlu0 %759
    %v762 = vmul.f32 %v757, %v760
    %v763 = vmul.f32 %v745, %v511
    %v764 = vadd.f32 %v762, %v763
    %765 = vset.pattern.permute.xlu0 2
    %766 = vperm.xlu0 %765, %v244
    %v767 = vpop.permute.xlu0 %766
    %vm768 = vcmp.eq.s32.totalorder %v767, %v246
    %v769 = vsel %vm768, 1, 0
    %v770 = vcvt.s32.f32 %v769
    %v772 = vsel %vm253, %v770, 0
    %774 = vmatprep.subr.mxu0 0.0
    %775 = vmatpush1.msra.mxu0 %v219
    %776 = vmatprep.subr.mxu0 0.0
    %777 = vmatpush1.msra.mxu0 %v220
    %778 = vmatprep.subr.mxu0 0.0
    %779 = vmatpush1.msra.mxu0 0.0
    %780 = vmatprep.subr.mxu0 0.0
    %781 = vmatpush1.msra.mxu0 0.0
    %782 = vmatprep.subr.mxu0 0.0
    %783 = vmatpush1.msra.mxu0 0.0
    %784 = vmatprep.subr.mxu0 0.0
    %785 = vmatpush1.msra.mxu0 0.0
    %786 = vmatprep.subr.mxu0 0.0
    %787 = vmatpush1.msra.mxu0 0.0
    %788 = vmatprep.subr.mxu0 0.0
    %789 = vmatpush1.msra.mxu0 0.0
    %790 = vmatprep.subr.mxu0 0.0
    %791 = vmatpush1.msra.mxu0 0.0
    %792 = vmatprep.subr.mxu0 0.0
    %793 = vmatpush1.msra.mxu0 0.0
    %794 = vmatprep.subr.mxu0 0.0
    %795 = vmatpush1.msra.mxu0 0.0
    %796 = vmatprep.subr.mxu0 0.0
    %797 = vmatpush1.msra.mxu0 0.0
    %798 = vmatprep.subr.mxu0 0.0
    %799 = vmatpush1.msra.mxu0 0.0
    %800 = vmatprep.subr.mxu0 0.0
    %801 = vmatpush1.msra.mxu0 0.0
    %802 = vmatprep.subr.mxu0 0.0
    %803 = vmatpush1.msra.mxu0 0.0
    %804 = vmatprep.subr.mxu0 0.0
    %805 = vmatpush1.msra.mxu0 0.0
    %806 = vmatprep.subr.mxu0 0.0
    %807 = vmatpush1.msra.mxu0 0.0
    %808 = vmatprep.subr.mxu0 0.0
    %809 = vmatpush1.msra.mxu0 0.0
    %810 = vmatprep.subr.mxu0 0.0
    %811 = vmatpush1.msra.mxu0 0.0
    %812 = vmatprep.subr.mxu0 0.0
    %813 = vmatpush1.msra.mxu0 0.0
    %814 = vmatprep.subr.mxu0 0.0
    %815 = vmatpush1.msra.mxu0 0.0
    %816 = vmatprep.subr.mxu0 0.0
    %817 = vmatpush1.msra.mxu0 0.0
    %818 = vmatprep.subr.mxu0 0.0
    %819 = vmatpush1.msra.mxu0 0.0
    %820 = vmatprep.subr.mxu0 0.0
    %821 = vmatpush1.msra.mxu0 0.0
    %822 = vmatprep.subr.mxu0 0.0
    %823 = vmatpush1.msra.mxu0 0.0
    %824 = vmatprep.subr.mxu0 0.0
    %825 = vmatpush1.msra.mxu0 0.0
    %826 = vmatprep.subr.mxu0 0.0
    %827 = vmatpush1.msra.mxu0 0.0
    %828 = vmatprep.subr.mxu0 0.0
    %829 = vmatpush1.msra.mxu0 0.0
    %830 = vmatprep.subr.mxu0 0.0
    %831 = vmatpush1.msra.mxu0 0.0
    %832 = vmatprep.subr.mxu0 0.0
    %833 = vmatpush1.msra.mxu0 0.0
    %834 = vmatprep.subr.mxu0 0.0
    %835 = vmatpush1.msra.mxu0 0.0
    %836 = vmatprep.subr.mxu0 0.0
    %837 = vmatpush1.msra.mxu0 0.0
    %838 = vmatprep.mubr.f32.mxu0 0.0
    %839 = vmatmul.mubr.f32.gmra.mrb[0].mxu0 %v772
    %v840 = vpop.f32.mrb[0].mxu0
    %v841 = vadd.f32 0.0, %v840
    %v842 = vpop.f32.mrb[0].mxu0
    %843 = vdwg.mxu0
    %v845 = vsel %vm253, %v841, 0
    %847 = vmatprep.subr.mxu0 0.0
    %848 = vmatpush1.msra.mxu0 %v221
    %849 = vmatprep.subr.mxu0 0.0
    %850 = vmatpush1.msra.mxu0 %v222
    %851 = vmatprep.subr.mxu0 0.0
    %852 = vmatpush1.msra.mxu0 0.0
    %853 = vmatprep.subr.mxu0 0.0
    %854 = vmatpush1.msra.mxu0 0.0
    %855 = vmatprep.subr.mxu0 0.0
    %856 = vmatpush1.msra.mxu0 0.0
    %857 = vmatprep.subr.mxu0 0.0
    %858 = vmatpush1.msra.mxu0 0.0
    %859 = vmatprep.subr.mxu0 0.0
    %860 = vmatpush1.msra.mxu0 0.0
    %861 = vmatprep.subr.mxu0 0.0
    %862 = vmatpush1.msra.mxu0 0.0
    %863 = vmatprep.subr.mxu0 0.0
    %864 = vmatpush1.msra.mxu0 0.0
    %865 = vmatprep.subr.mxu0 0.0
    %866 = vmatpush1.msra.mxu0 0.0
    %867 = vmatprep.subr.mxu0 0.0
    %868 = vmatpush1.msra.mxu0 0.0
    %869 = vmatprep.subr.mxu0 0.0
    %870 = vmatpush1.msra.mxu0 0.0
    %871 = vmatprep.subr.mxu0 0.0
    %872 = vmatpush1.msra.mxu0 0.0
    %873 = vmatprep.subr.mxu0 0.0
    %874 = vmatpush1.msra.mxu0 0.0
    %875 = vmatprep.subr.mxu0 0.0
    %876 = vmatpush1.msra.mxu0 0.0
    %877 = vmatprep.subr.mxu0 0.0
    %878 = vmatpush1.msra.mxu0 0.0
    %879 = vmatprep.subr.mxu0 0.0
    %880 = vmatpush1.msra.mxu0 0.0
    %881 = vmatprep.subr.mxu0 0.0
    %882 = vmatpush1.msra.mxu0 0.0
    %883 = vmatprep.subr.mxu0 0.0
    %884 = vmatpush1.msra.mxu0 0.0
    %885 = vmatprep.subr.mxu0 0.0
    %886 = vmatpush1.msra.mxu0 0.0
    %887 = vmatprep.subr.mxu0 0.0
    %888 = vmatpush1.msra.mxu0 0.0
    %889 = vmatprep.subr.mxu0 0.0
    %890 = vmatpush1.msra.mxu0 0.0
    %891 = vmatprep.subr.mxu0 0.0
    %892 = vmatpush1.msra.mxu0 0.0
    %893 = vmatprep.subr.mxu0 0.0
    %894 = vmatpush1.msra.mxu0 0.0
    %895 = vmatprep.subr.mxu0 0.0
    %896 = vmatpush1.msra.mxu0 0.0
    %897 = vmatprep.subr.mxu0 0.0
    %898 = vmatpush1.msra.mxu0 0.0
    %899 = vmatprep.subr.mxu0 0.0
    %900 = vmatpush1.msra.mxu0 0.0
    %901 = vmatprep.subr.mxu0 0.0
    %902 = vmatpush1.msra.mxu0 0.0
    %903 = vmatprep.subr.mxu0 0.0
    %904 = vmatpush1.msra.mxu0 0.0
    %905 = vmatprep.subr.mxu0 0.0
    %906 = vmatpush1.msra.mxu0 0.0
    %907 = vmatprep.subr.mxu0 0.0
    %908 = vmatpush1.msra.mxu0 0.0
    %909 = vmatprep.subr.mxu0 0.0
    %910 = vmatpush1.msra.mxu0 0.0
    %911 = vmatprep.mubr.f32.mxu0 0.0
    %912 = vmatmul.mubr.f32.gmra.mrb[0].mxu0 %v845
    %v913 = vpop.f32.mrb[0].mxu0
    %v914 = vadd.f32 %v331, %v913
    %v915 = vpop.f32.mrb[0].mxu0
    %916 = vdwg.mxu0
    %918 = vrot.lane.b32.xlu0 %v764, 96
    %v919 = vpop.permute.xlu0 %918
    %v920 = vsel %vm412, %v919, 0
    %922 = vmatprep.subr.mxu0 0.0
    %923 = vmatpush1.msra.mxu0 %v223
    %924 = vmatprep.subr.mxu0 0.0
    %925 = vmatpush1.msra.mxu0 %v224
    %926 = vmatprep.subr.mxu0 0.0
    %927 = vmatpush1.msra.mxu0 %v225
    %928 = vmatprep.subr.mxu0 0.0
    %929 = vmatpush1.msra.mxu0 %v226
    %930 = vmatprep.subr.mxu0 0.0
    %931 = vmatpush1.msra.mxu0 0.0
    %932 = vmatprep.subr.mxu0 0.0
    %933 = vmatpush1.msra.mxu0 0.0
    %934 = vmatprep.subr.mxu0 0.0
    %935 = vmatpush1.msra.mxu0 0.0
    %936 = vmatprep.subr.mxu0 0.0
    %937 = vmatpush1.msra.mxu0 0.0
    %938 = vmatprep.subr.mxu0 0.0
    %939 = vmatpush1.msra.mxu0 0.0
    %940 = vmatprep.subr.mxu0 0.0
    %941 = vmatpush1.msra.mxu0 0.0
    %942 = vmatprep.subr.mxu0 0.0
    %943 = vmatpush1.msra.mxu0 0.0
    %944 = vmatprep.subr.mxu0 0.0
    %945 = vmatpush1.msra.mxu0 0.0
    %946 = vmatprep.subr.mxu0 0.0
    %947 = vmatpush1.msra.mxu0 0.0
    %948 = vmatprep.subr.mxu0 0.0
    %949 = vmatpush1.msra.mxu0 0.0
    %950 = vmatprep.subr.mxu0 0.0
    %951 = vmatpush1.msra.mxu0 0.0
    %952 = vmatprep.subr.mxu0 0.0
    %953 = vmatpush1.msra.mxu0 0.0
    %954 = vmatprep.subr.mxu0 0.0
    %955 = vmatpush1.msra.mxu0 0.0
    %956 = vmatprep.subr.mxu0 0.0
    %957 = vmatpush1.msra.mxu0 0.0
    %958 = vmatprep.subr.mxu0 0.0
    %959 = vmatpush1.msra.mxu0 0.0
    %960 = vmatprep.subr.mxu0 0.0
    %961 = vmatpush1.msra.mxu0 0.0
    %962 = vmatprep.subr.mxu0 0.0
    %963 = vmatpush1.msra.mxu0 0.0
    %964 = vmatprep.subr.mxu0 0.0
    %965 = vmatpush1.msra.mxu0 0.0
    %966 = vmatprep.subr.mxu0 0.0
    %967 = vmatpush1.msra.mxu0 0.0
    %968 = vmatprep.subr.mxu0 0.0
    %969 = vmatpush1.msra.mxu0 0.0
    %970 = vmatprep.subr.mxu0 0.0
    %971 = vmatpush1.msra.mxu0 0.0
    %972 = vmatprep.subr.mxu0 0.0
    %973 = vmatpush1.msra.mxu0 0.0
    %974 = vmatprep.subr.mxu0 0.0
    %975 = vmatpush1.msra.mxu0 0.0
    %976 = vmatprep.subr.mxu0 0.0
    %977 = vmatpush1.msra.mxu0 0.0
    %978 = vmatprep.subr.mxu0 0.0
    %979 = vmatpush1.msra.mxu0 0.0
    %980 = vmatprep.subr.mxu0 0.0
    %981 = vmatpush1.msra.mxu0 0.0
    %982 = vmatprep.subr.mxu0 0.0
    %983 = vmatpush1.msra.mxu0 0.0
    %984 = vmatprep.subr.mxu0 0.0
    %985 = vmatpush1.msra.mxu0 0.0
    %986 = vmatprep.mubr.f32.mxu0 0.0
    %987 = vmatmul.mubr.f32.gmra.mrb[0].mxu0 %v920
    %v988 = vpop.f32.mrb[0].mxu0
    %v989 = vadd.f32 %v410, %v988
    %v990 = vpop.f32.mrb[0].mxu0
    %991 = vdwg.mxu0
    %v992 = vadd.f32 %v914, %v989
    %v993 = vxor.u32 %v992, 2147483648
    %v994 = vmul.f32 %v993, 1.442695
    %v995 = vpow.pop %v994
    %v996 = vadd.f32 %v995, 1.0
    %v997 = vrcp.pop %v996
    %v998 = vmul.f32 1.0, %v997
    %1000 = vrot.lane.b32.xlu0 %v989, 64
    %v1001 = vpop.permute.xlu0 %1000
    %v1003 = vmul.f32 %v998, %v1001
    %1005 = vrot.lane.b32.xlu0 %v1003, 64
    %v1006 = vpop.permute.xlu0 %1005
    %v1008 = vadd.f32 %v914, %v1006
    %v1009 = vtanh.pop %v1008
    %v1010 = vsub.f32 1.0, %v998
    %1012 = vrot.lane.b32.xlu0 %v1009, 96
    %v1013 = vpop.permute.xlu0 %1012
    %v1015 = vmul.f32 %v1010, %v1013
    %v1016 = vmul.f32 %v998, %v764
    %v1017 = vadd.f32 %v1015, %v1016
    %1018 = vset.pattern.permute.xlu0 3
    %1019 = vperm.xlu0 %1018, %v244
    %v1020 = vpop.permute.xlu0 %1019
    %vm1021 = vcmp.eq.s32.totalorder %v1020, %v246
    %v1022 = vsel %vm1021, 1, 0
    %v1023 = vcvt.s32.f32 %v1022
    %v1025 = vsel %vm253, %v1023, 0
    %1027 = vmatprep.subr.mxu0 0.0
    %1028 = vmatpush1.msra.mxu0 %v219
    %1029 = vmatprep.subr.mxu0 0.0
    %1030 = vmatpush1.msra.mxu0 %v220
    %1031 = vmatprep.subr.mxu0 0.0
    %1032 = vmatpush1.msra.mxu0 0.0
    %1033 = vmatprep.subr.mxu0 0.0
    %1034 = vmatpush1.msra.mxu0 0.0
    %1035 = vmatprep.subr.mxu0 0.0
    %1036 = vmatpush1.msra.mxu0 0.0
    %1037 = vmatprep.subr.mxu0 0.0
    %1038 = vmatpush1.msra.mxu0 0.0
    %1039 = vmatprep.subr.mxu0 0.0
    %1040 = vmatpush1.msra.mxu0 0.0
    %1041 = vmatprep.subr.mxu0 0.0
    %1042 = vmatpush1.msra.mxu0 0.0
    %1043 = vmatprep.subr.mxu0 0.0
    %1044 = vmatpush1.msra.mxu0 0.0
    %1045 = vmatprep.subr.mxu0 0.0
    %1046 = vmatpush1.msra.mxu0 0.0
    %1047 = vmatprep.subr.mxu0 0.0
    %1048 = vmatpush1.msra.mxu0 0.0
    %1049 = vmatprep.subr.mxu0 0.0
    %1050 = vmatpush1.msra.mxu0 0.0
    %1051 = vmatprep.subr.mxu0 0.0
    %1052 = vmatpush1.msra.mxu0 0.0
    %1053 = vmatprep.subr.mxu0 0.0
    %1054 = vmatpush1.msra.mxu0 0.0
    %1055 = vmatprep.subr.mxu0 0.0
    %1056 = vmatpush1.msra.mxu0 0.0
    %1057 = vmatprep.subr.mxu0 0.0
    %1058 = vmatpush1.msra.mxu0 0.0
    %1059 = vmatprep.subr.mxu0 0.0
    %1060 = vmatpush1.msra.mxu0 0.0
    %1061 = vmatprep.subr.mxu0 0.0
    %1062 = vmatpush1.msra.mxu0 0.0
    %1063 = vmatprep.subr.mxu0 0.0
    %1064 = vmatpush1.msra.mxu0 0.0
    %1065 = vmatprep.subr.mxu0 0.0
    %1066 = vmatpush1.msra.mxu0 0.0
    %1067 = vmatprep.subr.mxu0 0.0
    %1068 = vmatpush1.msra.mxu0 0.0
    %1069 = vmatprep.subr.mxu0 0.0
    %1070 = vmatpush1.msra.mxu0 0.0
    %1071 = vmatprep.subr.mxu0 0.0
    %1072 = vmatpush1.msra.mxu0 0.0
    %1073 = vmatprep.subr.mxu0 0.0
    %1074 = vmatpush1.msra.mxu0 0.0
    %1075 = vmatprep.subr.mxu0 0.0
    %1076 = vmatpush1.msra.mxu0 0.0
    %1077 = vmatprep.subr.mxu0 0.0
    %1078 = vmatpush1.msra.mxu0 0.0
    %1079 = vmatprep.subr.mxu0 0.0
    %1080 = vmatpush1.msra.mxu0 0.0
    %1081 = vmatprep.subr.mxu0 0.0
    %1082 = vmatpush1.msra.mxu0 0.0
    %1083 = vmatprep.subr.mxu0 0.0
    %1084 = vmatpush1.msra.mxu0 0.0
    %1085 = vmatprep.subr.mxu0 0.0
    %1086 = vmatpush1.msra.mxu0 0.0
    %1087 = vmatprep.subr.mxu0 0.0
    %1088 = vmatpush1.msra.mxu0 0.0
    %1089 = vmatprep.subr.mxu0 0.0
    %1090 = vmatpush1.msra.mxu0 0.0
    %1091 = vmatprep.mubr.f32.mxu0 0.0
    %1092 = vmatmul.mubr.f32.gmra.mrb[0].mxu0 %v1025
    %v1093 = vpop.f32.mrb[0].mxu0
    %v1094 = vadd.f32 0.0, %v1093
    %v1095 = vpop.f32.mrb[0].mxu0
    %1096 = vdwg.mxu0
    %v1098 = vsel %vm253, %v1094, 0
    %1100 = vmatprep.subr.mxu0 0.0
    %1101 = vmatpush1.msra.mxu0 %v221
    %1102 = vmatprep.subr.mxu0 0.0
    %1103 = vmatpush1.msra.mxu0 %v222
    %1104 = vmatprep.subr.mxu0 0.0
    %1105 = vmatpush1.msra.mxu0 0.0
    %1106 = vmatprep.subr.mxu0 0.0
    %1107 = vmatpush1.msra.mxu0 0.0
    %1108 = vmatprep.subr.mxu0 0.0
    %1109 = vmatpush1.msra.mxu0 0.0
    %1110 = vmatprep.subr.mxu0 0.0
    %1111 = vmatpush1.msra.mxu0 0.0
    %1112 = vmatprep.subr.mxu0 0.0
    %1113 = vmatpush1.msra.mxu0 0.0
    %1114 = vmatprep.subr.mxu0 0.0
    %1115 = vmatpush1.msra.mxu0 0.0
    %1116 = vmatprep.subr.mxu0 0.0
    %1117 = vmatpush1.msra.mxu0 0.0
    %1118 = vmatprep.subr.mxu0 0.0
    %1119 = vmatpush1.msra.mxu0 0.0
    %1120 = vmatprep.subr.mxu0 0.0
    %1121 = vmatpush1.msra.mxu0 0.0
    %1122 = vmatprep.subr.mxu0 0.0
    %1123 = vmatpush1.msra.mxu0 0.0
    %1124 = vmatprep.subr.mxu0 0.0
    %1125 = vmatpush1.msra.mxu0 0.0
    %1126 = vmatprep.subr.mxu0 0.0
    %1127 = vmatpush1.msra.mxu0 0.0
    %1128 = vmatprep.subr.mxu0 0.0
    %1129 = vmatpush1.msra.mxu0 0.0
    %1130 = vmatprep.subr.mxu0 0.0
    %1131 = vmatpush1.msra.mxu0 0.0
    %1132 = vmatprep.subr.mxu0 0.0
    %1133 = vmatpush1.msra.mxu0 0.0
    %1134 = vmatprep.subr.mxu0 0.0
    %1135 = vmatpush1.msra.mxu0 0.0
    %1136 = vmatprep.subr.mxu0 0.0
    %1137 = vmatpush1.msra.mxu0 0.0
    %1138 = vmatprep.subr.mxu0 0.0
    %1139 = vmatpush1.msra.mxu0 0.0
    %1140 = vmatprep.subr.mxu0 0.0
    %1141 = vmatpush1.msra.mxu0 0.0
    %1142 = vmatprep.subr.mxu0 0.0
    %1143 = vmatpush1.msra.mxu0 0.0
    %1144 = vmatprep.subr.mxu0 0.0
    %1145 = vmatpush1.msra.mxu0 0.0
    %1146 = vmatprep.subr.mxu0 0.0
    %1147 = vmatpush1.msra.mxu0 0.0
    %1148 = vmatprep.subr.mxu0 0.0
    %1149 = vmatpush1.msra.mxu0 0.0
    %1150 = vmatprep.subr.mxu0 0.0
    %1151 = vmatpush1.msra.mxu0 0.0
    %1152 = vmatprep.subr.mxu0 0.0
    %1153 = vmatpush1.msra.mxu0 0.0
    %1154 = vmatprep.subr.mxu0 0.0
    %1155 = vmatpush1.msra.mxu0 0.0
    %1156 = vmatprep.subr.mxu0 0.0
    %1157 = vmatpush1.msra.mxu0 0.0
    %1158 = vmatprep.subr.mxu0 0.0
    %1159 = vmatpush1.msra.mxu0 0.0
    %1160 = vmatprep.subr.mxu0 0.0
    %1161 = vmatpush1.msra.mxu0 0.0
    %1162 = vmatprep.subr.mxu0 0.0
    %1163 = vmatpush1.msra.mxu0 0.0
    %1164 = vmatprep.mubr.f32.mxu0 0.0
    %1165 = vmatmul.mubr.f32.gmra.mrb[0].mxu0 %v1098
    %v1166 = vpop.f32.mrb[0].mxu0
    %v1167 = vadd.f32 %v331, %v1166
    %v1168 = vpop.f32.mrb[0].mxu0
    %1169 = vdwg.mxu0
    %1171 = vrot.lane.b32.xlu0 %v1017, 96
    %v1172 = vpop.permute.xlu0 %1171
    %v1173 = vsel %vm412, %v1172, 0
    %1175 = vmatprep.subr.mxu0 0.0
    %1176 = vmatpush1.msra.mxu0 %v223
    %1177 = vmatprep.subr.mxu0 0.0
    %1178 = vmatpush1.msra.mxu0 %v224
    %1179 = vmatprep.subr.mxu0 0.0
    %1180 = vmatpush1.msra.mxu0 %v225
    %1181 = vmatprep.subr.mxu0 0.0
    %1182 = vmatpush1.msra.mxu0 %v226
    %1183 = vmatprep.subr.mxu0 0.0
    %1184 = vmatpush1.msra.mxu0 0.0
    %1185 = vmatprep.subr.mxu0 0.0
    %1186 = vmatpush1.msra.mxu0 0.0
    %1187 = vmatprep.subr.mxu0 0.0
    %1188 = vmatpush1.msra.mxu0 0.0
    %1189 = vmatprep.subr.mxu0 0.0
    %1190 = vmatpush1.msra.mxu0 0.0
    %1191 = vmatprep.subr.mxu0 0.0
    %1192 = vmatpush1.msra.mxu0 0.0
    %1193 = vmatprep.subr.mxu0 0.0
    %1194 = vmatpush1.msra.mxu0 0.0
    %1195 = vmatprep.subr.mxu0 0.0
    %1196 = vmatpush1.msra.mxu0 0.0
    %1197 = vmatprep.subr.mxu0 0.0
    %1198 = vmatpush1.msra.mxu0 0.0
    %1199 = vmatprep.subr.mxu0 0.0
    %1200 = vmatpush1.msra.mxu0 0.0
    %1201 = vmatprep.subr.mxu0 0.0
    %1202 = vmatpush1.msra.mxu0 0.0
    %1203 = vmatprep.subr.mxu0 0.0
    %1204 = vmatpush1.msra.mxu0 0.0
    %1205 = vmatprep.subr.mxu0 0.0
    %1206 = vmatpush1.msra.mxu0 0.0
    %1207 = vmatprep.subr.mxu0 0.0
    %1208 = vmatpush1.msra.mxu0 0.0
    %1209 = vmatprep.subr.mxu0 0.0
    %1210 = vmatpush1.msra.mxu0 0.0
    %1211 = vmatprep.subr.mxu0 0.0
    %1212 = vmatpush1.msra.mxu0 0.0
    %1213 = vmatprep.subr.mxu0 0.0
    %1214 = vmatpush1.msra.mxu0 0.0
    %1215 = vmatprep.subr.mxu0 0.0
    %1216 = vmatpush1.msra.mxu0 0.0
    %1217 = vmatprep.subr.mxu0 0.0
    %1218 = vmatpush1.msra.mxu0 0.0
    %1219 = vmatprep.subr.mxu0 0.0
    %1220 = vmatpush1.msra.mxu0 0.0
    %1221 = vmatprep.subr.mxu0 0.0
    %1222 = vmatpush1.msra.mxu0 0.0
    %1223 = vmatprep.subr.mxu0 0.0
    %1224 = vmatpush1.msra.mxu0 0.0
    %1225 = vmatprep.subr.mxu0 0.0
    %1226 = vmatpush1.msra.mxu0 0.0
    %1227 = vmatprep.subr.mxu0 0.0
    %1228 = vmatpush1.msra.mxu0 0.0
    %1229 = vmatprep.subr.mxu0 0.0
    %1230 = vmatpush1.msra.mxu0 0.0
    %1231 = vmatprep.subr.mxu0 0.0
    %1232 = vmatpush1.msra.mxu0 0.0
    %1233 = vmatprep.subr.mxu0 0.0
    %1234 = vmatpush1.msra.mxu0 0.0
    %1235 = vmatprep.subr.mxu0 0.0
    %1236 = vmatpush1.msra.mxu0 0.0
    %1237 = vmatprep.subr.mxu0 0.0
    %1238 = vmatpush1.msra.mxu0 0.0
    %1239 = vmatprep.mubr.f32.mxu0 0.0
    %1240 = vmatmul.mubr.f32.gmra.mrb[0].mxu0 %v1173
    %v1241 = vpop.f32.mrb[0].mxu0
    %v1242 = vadd.f32 %v410, %v1241
    %v1243 = vpop.f32.mrb[0].mxu0
    %1244 = vdwg.mxu0
    %v1245 = vadd.f32 %v1167, %v1242
    %v1246 = vxor.u32 %v1245, 2147483648
    %v1247 = vmul.f32 %v1246, 1.442695
    %v1248 = vpow.pop %v1247
    %v1249 = vadd.f32 %v1248, 1.0
    %v1250 = vrcp.pop %v1249
    %v1251 = vmul.f32 1.0, %v1250
    %1253 = vrot.lane.b32.xlu0 %v1242, 64
    %v1254 = vpop.permute.xlu0 %1253
    %v1256 = vmul.f32 %v1251, %v1254
    %1258 = vrot.lane.b32.xlu0 %v1256, 64
    %v1259 = vpop.permute.xlu0 %1258
    %v1261 = vadd.f32 %v1167, %v1259
    %v1262 = vtanh.pop %v1261
    %v1263 = vsub.f32 1.0, %v1251
    %1265 = vrot.lane.b32.xlu0 %v1262, 96
    %v1266 = vpop.permute.xlu0 %1265
    %v1268 = vmul.f32 %v1263, %v1266
    %v1269 = vmul.f32 %v1251, %v1017
    %v1270 = vadd.f32 %v1268, %v1269
    %1271 = vset.pattern.permute.xlu0 4
    %1272 = vperm.xlu0 %1271, %v244
    %v1273 = vpop.permute.xlu0 %1272
    %vm1274 = vcmp.eq.s32.totalorder %v1273, %v246
    %v1275 = vsel %vm1274, 1, 0
    %v1276 = vcvt.s32.f32 %v1275
    %v1278 = vsel %vm253, %v1276, 0
    %1280 = vmatprep.subr.mxu0 0.0
    %1281 = vmatpush1.msra.mxu0 %v219
    %1282 = vmatprep.subr.mxu0 0.0
    %1283 = vmatpush1.msra.mxu0 %v220
    %1284 = vmatprep.subr.mxu0 0.0
    %1285 = vmatpush1.msra.mxu0 0.0
    %1286 = vmatprep.subr.mxu0 0.0
    %1287 = vmatpush1.msra.mxu0 0.0
    %1288 = vmatprep.subr.mxu0 0.0
    %1289 = vmatpush1.msra.mxu0 0.0
    %1290 = vmatprep.subr.mxu0 0.0
    %1291 = vmatpush1.msra.mxu0 0.0
    %1292 = vmatprep.subr.mxu0 0.0
    %1293 = vmatpush1.msra.mxu0 0.0
    %1294 = vmatprep.subr.mxu0 0.0
    %1295 = vmatpush1.msra.mxu0 0.0
    %1296 = vmatprep.subr.mxu0 0.0
    %1297 = vmatpush1.msra.mxu0 0.0
    %1298 = vmatprep.subr.mxu0 0.0
    %1299 = vmatpush1.msra.mxu0 0.0
    %1300 = vmatprep.subr.mxu0 0.0
    %1301 = vmatpush1.msra.mxu0 0.0
    %1302 = vmatprep.subr.mxu0 0.0
    %1303 = vmatpush1.msra.mxu0 0.0
    %1304 = vmatprep.subr.mxu0 0.0
    %1305 = vmatpush1.msra.mxu0 0.0
    %1306 = vmatprep.subr.mxu0 0.0
    %1307 = vmatpush1.msra.mxu0 0.0
    %1308 = vmatprep.subr.mxu0 0.0
    %1309 = vmatpush1.msra.mxu0 0.0
    %1310 = vmatprep.subr.mxu0 0.0
    %1311 = vmatpush1.msra.mxu0 0.0
    %1312 = vmatprep.subr.mxu0 0.0
    %1313 = vmatpush1.msra.mxu0 0.0
    %1314 = vmatprep.subr.mxu0 0.0
    %1315 = vmatpush1.msra.mxu0 0.0
    %1316 = vmatprep.subr.mxu0 0.0
    %1317 = vmatpush1.msra.mxu0 0.0
    %1318 = vmatprep.subr.mxu0 0.0
    %1319 = vmatpush1.msra.mxu0 0.0
    %1320 = vmatprep.subr.mxu0 0.0
    %1321 = vmatpush1.msra.mxu0 0.0
    %1322 = vmatprep.subr.mxu0 0.0
    %1323 = vmatpush1.msra.mxu0 0.0
    %1324 = vmatprep.subr.mxu0 0.0
    %1325 = vmatpush1.msra.mxu0 0.0
    %1326 = vmatprep.subr.mxu0 0.0
    %1327 = vmatpush1.msra.mxu0 0.0
    %1328 = vmatprep.subr.mxu0 0.0
    %1329 = vmatpush1.msra.mxu0 0.0
    %1330 = vmatprep.subr.mxu0 0.0
    %1331 = vmatpush1.msra.mxu0 0.0
    %1332 = vmatprep.subr.mxu0 0.0
    %1333 = vmatpush1.msra.mxu0 0.0
    %1334 = vmatprep.subr.mxu0 0.0
    %1335 = vmatpush1.msra.mxu0 0.0
    %1336 = vmatprep.subr.mxu0 0.0
    %1337 = vmatpush1.msra.mxu0 0.0
    %1338 = vmatprep.subr.mxu0 0.0
    %1339 = vmatpush1.msra.mxu0 0.0
    %1340 = vmatprep.subr.mxu0 0.0
    %1341 = vmatpush1.msra.mxu0 0.0
    %1342 = vmatprep.subr.mxu0 0.0
    %1343 = vmatpush1.msra.mxu0 0.0
    %1344 = vmatprep.mubr.f32.mxu0 0.0
    %1345 = vmatmul.mubr.f32.gmra.mrb[0].mxu0 %v1278
    %v1346 = vpop.f32.mrb[0].mxu0
    %v1347 = vadd.f32 0.0, %v1346
    %v1348 = vpop.f32.mrb[0].mxu0
    %1349 = vdwg.mxu0
    %v1351 = vsel %vm253, %v1347, 0
    %1353 = vmatprep.subr.mxu0 0.0
    %1354 = vmatpush1.msra.mxu0 %v221
    %1355 = vmatprep.subr.mxu0 0.0
    %1356 = vmatpush1.msra.mxu0 %v222
    %1357 = vmatprep.subr.mxu0 0.0
    %1358 = vmatpush1.msra.mxu0 0.0
    %1359 = vmatprep.subr.mxu0 0.0
    %1360 = vmatpush1.msra.mxu0 0.0
    %1361 = vmatprep.subr.mxu0 0.0
    %1362 = vmatpush1.msra.mxu0 0.0
    %1363 = vmatprep.subr.mxu0 0.0
    %1364 = vmatpush1.msra.mxu0 0.0
    %1365 = vmatprep.subr.mxu0 0.0
    %1366 = vmatpush1.msra.mxu0 0.0
    %1367 = vmatprep.subr.mxu0 0.0
    %1368 = vmatpush1.msra.mxu0 0.0
    %1369 = vmatprep.subr.mxu0 0.0
    %1370 = vmatpush1.msra.mxu0 0.0
    %1371 = vmatprep.subr.mxu0 0.0
    %1372 = vmatpush1.msra.mxu0 0.0
    %1373 = vmatprep.subr.mxu0 0.0
    %1374 = vmatpush1.msra.mxu0 0.0
    %1375 = vmatprep.subr.mxu0 0.0
    %1376 = vmatpush1.msra.mxu0 0.0
    %1377 = vmatprep.subr.mxu0 0.0
    %1378 = vmatpush1.msra.mxu0 0.0
    %1379 = vmatprep.subr.mxu0 0.0
    %1380 = vmatpush1.msra.mxu0 0.0
    %1381 = vmatprep.subr.mxu0 0.0
    %1382 = vmatpush1.msra.mxu0 0.0
    %1383 = vmatprep.subr.mxu0 0.0
    %1384 = vmatpush1.msra.mxu0 0.0
    %1385 = vmatprep.subr.mxu0 0.0
    %1386 = vmatpush1.msra.mxu0 0.0
    %1387 = vmatprep.subr.mxu0 0.0
    %1388 = vmatpush1.msra.mxu0 0.0
    %1389 = vmatprep.subr.mxu0 0.0
    %1390 = vmatpush1.msra.mxu0 0.0
    %1391 = vmatprep.subr.mxu0 0.0
    %1392 = vmatpush1.msra.mxu0 0.0
    %1393 = vmatprep.subr.mxu0 0.0
    %1394 = vmatpush1.msra.mxu0 0.0
    %1395 = vmatprep.subr.mxu0 0.0
    %1396 = vmatpush1.msra.mxu0 0.0
    %1397 = vmatprep.subr.mxu0 0.0
    %1398 = vmatpush1.msra.mxu0 0.0
    %1399 = vmatprep.subr.mxu0 0.0
    %1400 = vmatpush1.msra.mxu0 0.0
    %1401 = vmatprep.subr.mxu0 0.0
    %1402 = vmatpush1.msra.mxu0 0.0
    %1403 = vmatprep.subr.mxu0 0.0
    %1404 = vmatpush1.msra.mxu0 0.0
    %1405 = vmatprep.subr.mxu0 0.0
    %1406 = vmatpush1.msra.mxu0 0.0
    %1407 = vmatprep.subr.mxu0 0.0
    %1408 = vmatpush1.msra.mxu0 0.0
    %1409 = vmatprep.subr.mxu0 0.0
    %1410 = vmatpush1.msra.mxu0 0.0
    %1411 = vmatprep.subr.mxu0 0.0
    %1412 = vmatpush1.msra.mxu0 0.0
    %1413 = vmatprep.subr.mxu0 0.0
    %1414 = vmatpush1.msra.mxu0 0.0
    %1415 = vmatprep.subr.mxu0 0.0
    %1416 = vmatpush1.msra.mxu0 0.0
    %1417 = vmatprep.mubr.f32.mxu0 0.0
    %1418 = vmatmul.mubr.f32.gmra.mrb[0].mxu0 %v1351
    %v1419 = vpop.f32.mrb[0].mxu0
    %v1420 = vadd.f32 %v331, %v1419
    %v1421 = vpop.f32.mrb[0].mxu0
    %1422 = vdwg.mxu0
    %1424 = vrot.lane.b32.xlu0 %v1270, 96
    %v1425 = vpop.permute.xlu0 %1424
    %v1426 = vsel %vm412, %v1425, 0
    %1428 = vmatprep.subr.mxu0 0.0
    %1429 = vmatpush1.msra.mxu0 %v223
    %1430 = vmatprep.subr.mxu0 0.0
    %1431 = vmatpush1.msra.mxu0 %v224
    %1432 = vmatprep.subr.mxu0 0.0
    %1433 = vmatpush1.msra.mxu0 %v225
    %1434 = vmatprep.subr.mxu0 0.0
    %1435 = vmatpush1.msra.mxu0 %v226
    %1436 = vmatprep.subr.mxu0 0.0
    %1437 = vmatpush1.msra.mxu0 0.0
    %1438 = vmatprep.subr.mxu0 0.0
    %1439 = vmatpush1.msra.mxu0 0.0
    %1440 = vmatprep.subr.mxu0 0.0
    %1441 = vmatpush1.msra.mxu0 0.0
    %1442 = vmatprep.subr.mxu0 0.0
    %1443 = vmatpush1.msra.mxu0 0.0
    %1444 = vmatprep.subr.mxu0 0.0
    %1445 = vmatpush1.msra.mxu0 0.0
    %1446 = vmatprep.subr.mxu0 0.0
    %1447 = vmatpush1.msra.mxu0 0.0
    %1448 = vmatprep.subr.mxu0 0.0
    %1449 = vmatpush1.msra.mxu0 0.0
    %1450 = vmatprep.subr.mxu0 0.0
    %1451 = vmatpush1.msra.mxu0 0.0
    %1452 = vmatprep.subr.mxu0 0.0
    %1453 = vmatpush1.msra.mxu0 0.0
    %1454 = vmatprep.subr.mxu0 0.0
    %1455 = vmatpush1.msra.mxu0 0.0
    %1456 = vmatprep.subr.mxu0 0.0
    %1457 = vmatpush1.msra.mxu0 0.0
    %1458 = vmatprep.subr.mxu0 0.0
    %1459 = vmatpush1.msra.mxu0 0.0
    %1460 = vmatprep.subr.mxu0 0.0
    %1461 = vmatpush1.msra.mxu0 0.0
    %1462 = vmatprep.subr.mxu0 0.0
    %1463 = vmatpush1.msra.mxu0 0.0
    %1464 = vmatprep.subr.mxu0 0.0
    %1465 = vmatpush1.msra.mxu0 0.0
    %1466 = vmatprep.subr.mxu0 0.0
    %1467 = vmatpush1.msra.mxu0 0.0
    %1468 = vmatprep.subr.mxu0 0.0
    %1469 = vmatpush1.msra.mxu0 0.0
    %1470 = vmatprep.subr.mxu0 0.0
    %1471 = vmatpush1.msra.mxu0 0.0
    %1472 = vmatprep.subr.mxu0 0.0
    %1473 = vmatpush1.msra.mxu0 0.0
    %1474 = vmatprep.subr.mxu0 0.0
    %1475 = vmatpush1.msra.mxu0 0.0
    %1476 = vmatprep.subr.mxu0 0.0
    %1477 = vmatpush1.msra.mxu0 0.0
    %1478 = vmatprep.subr.mxu0 0.0
    %1479 = vmatpush1.msra.mxu0 0.0
    %1480 = vmatprep.subr.mxu0 0.0
    %1481 = vmatpush1.msra.mxu0 0.0
    %1482 = vmatprep.subr.mxu0 0.0
    %1483 = vmatpush1.msra.mxu0 0.0
    %1484 = vmatprep.subr.mxu0 0.0
    %1485 = vmatpush1.msra.mxu0 0.0
    %1486 = vmatprep.subr.mxu0 0.0
    %1487 = vmatpush1.msra.mxu0 0.0
    %1488 = vmatprep.subr.mxu0 0.0
    %1489 = vmatpush1.msra.mxu0 0.0
    %1490 = vmatprep.subr.mxu0 0.0
    %1491 = vmatpush1.msra.mxu0 0.0
    %1492 = vmatprep.mubr.f32.mxu0 0.0
    %1493 = vmatmul.mubr.f32.gmra.mrb[0].mxu0 %v1426
    %v1494 = vpop.f32.mrb[0].mxu0
    %v1495 = vadd.f32 %v410, %v1494
    %v1496 = vpop.f32.mrb[0].mxu0
    %1497 = vdwg.mxu0
    %v1498 = vadd.f32 %v1420, %v1495
    %v1499 = vxor.u32 %v1498, 2147483648
    %v1500 = vmul.f32 %v1499, 1.442695
    %v1501 = vpow.pop %v1500
    %v1502 = vadd.f32 %v1501, 1.0
    %v1503 = vrcp.pop %v1502
    %v1504 = vmul.f32 1.0, %v1503
    %1506 = vrot.lane.b32.xlu0 %v1495, 64
    %v1507 = vpop.permute.xlu0 %1506
    %v1509 = vmul.f32 %v1504, %v1507
    %1511 = vrot.lane.b32.xlu0 %v1509, 64
    %v1512 = vpop.permute.xlu0 %1511
    %v1514 = vadd.f32 %v1420, %v1512
    %v1515 = vtanh.pop %v1514
    %v1516 = vsub.f32 1.0, %v1504
    %1518 = vrot.lane.b32.xlu0 %v1515, 96
    %v1519 = vpop.permute.xlu0 %1518
    %v1521 = vmul.f32 %v1516, %v1519
    %v1522 = vmul.f32 %v1504, %v1270
    %v1523 = vadd.f32 %v1521, %v1522
    %1524 = vset.pattern.permute.xlu0 5
    %1525 = vperm.xlu0 %1524, %v244
    %v1526 = vpop.permute.xlu0 %1525
    %vm1527 = vcmp.eq.s32.totalorder %v1526, %v246
    %v1528 = vsel %vm1527, 1, 0
    %v1529 = vcvt.s32.f32 %v1528
    %v1531 = vsel %vm253, %v1529, 0
    %1533 = vmatprep.subr.mxu0 0.0
    %1534 = vmatpush1.msra.mxu0 %v219
    %1535 = vmatprep.subr.mxu0 0.0
    %1536 = vmatpush1.msra.mxu0 %v220
    %1537 = vmatprep.subr.mxu0 0.0
    %1538 = vmatpush1.msra.mxu0 0.0
    %1539 = vmatprep.subr.mxu0 0.0
    %1540 = vmatpush1.msra.mxu0 0.0
    %1541 = vmatprep.subr.mxu0 0.0
    %1542 = vmatpush1.msra.mxu0 0.0
    %1543 = vmatprep.subr.mxu0 0.0
    %1544 = vmatpush1.msra.mxu0 0.0
    %1545 = vmatprep.subr.mxu0 0.0
    %1546 = vmatpush1.msra.mxu0 0.0
    %1547 = vmatprep.subr.mxu0 0.0
    %1548 = vmatpush1.msra.mxu0 0.0
    %1549 = vmatprep.subr.mxu0 0.0
    %1550 = vmatpush1.msra.mxu0 0.0
    %1551 = vmatprep.subr.mxu0 0.0
    %1552 = vmatpush1.msra.mxu0 0.0
    %1553 = vmatprep.subr.mxu0 0.0
    %1554 = vmatpush1.msra.mxu0 0.0
    %1555 = vmatprep.subr.mxu0 0.0
    %1556 = vmatpush1.msra.mxu0 0.0
    %1557 = vmatprep.subr.mxu0 0.0
    %1558 = vmatpush1.msra.mxu0 0.0
    %1559 = vmatprep.subr.mxu0 0.0
    %1560 = vmatpush1.msra.mxu0 0.0
    %1561 = vmatprep.subr.mxu0 0.0
    %1562 = vmatpush1.msra.mxu0 0.0
    %1563 = vmatprep.subr.mxu0 0.0
    %1564 = vmatpush1.msra.mxu0 0.0
    %1565 = vmatprep.subr.mxu0 0.0
    %1566 = vmatpush1.msra.mxu0 0.0
    %1567 = vmatprep.subr.mxu0 0.0
    %1568 = vmatpush1.msra.mxu0 0.0
    %1569 = vmatprep.subr.mxu0 0.0
    %1570 = vmatpush1.msra.mxu0 0.0
    %1571 = vmatprep.subr.mxu0 0.0
    %1572 = vmatpush1.msra.mxu0 0.0
    %1573 = vmatprep.subr.mxu0 0.0
    %1574 = vmatpush1.msra.mxu0 0.0
    %1575 = vmatprep.subr.mxu0 0.0
    %1576 = vmatpush1.msra.mxu0 0.0
    %1577 = vmatprep.subr.mxu0 0.0
    %1578 = vmatpush1.msra.mxu0 0.0
    %1579 = vmatprep.subr.mxu0 0.0
    %1580 = vmatpush1.msra.mxu0 0.0
    %1581 = vmatprep.subr.mxu0 0.0
    %1582 = vmatpush1.msra.mxu0 0.0
    %1583 = vmatprep.subr.mxu0 0.0
    %1584 = vmatpush1.msra.mxu0 0.0
    %1585 = vmatprep.subr.mxu0 0.0
    %1586 = vmatpush1.msra.mxu0 0.0
    %1587 = vmatprep.subr.mxu0 0.0
    %1588 = vmatpush1.msra.mxu0 0.0
    %1589 = vmatprep.subr.mxu0 0.0
    %1590 = vmatpush1.msra.mxu0 0.0
    %1591 = vmatprep.subr.mxu0 0.0
    %1592 = vmatpush1.msra.mxu0 0.0
    %1593 = vmatprep.subr.mxu0 0.0
    %1594 = vmatpush1.msra.mxu0 0.0
    %1595 = vmatprep.subr.mxu0 0.0
    %1596 = vmatpush1.msra.mxu0 0.0
    %1597 = vmatprep.mubr.f32.mxu0 0.0
    %1598 = vmatmul.mubr.f32.gmra.mrb[0].mxu0 %v1531
    %v1599 = vpop.f32.mrb[0].mxu0
    %v1600 = vadd.f32 0.0, %v1599
    %v1601 = vpop.f32.mrb[0].mxu0
    %1602 = vdwg.mxu0
    %v1604 = vsel %vm253, %v1600, 0
    %1606 = vmatprep.subr.mxu0 0.0
    %1607 = vmatpush1.msra.mxu0 %v221
    %1608 = vmatprep.subr.mxu0 0.0
    %1609 = vmatpush1.msra.mxu0 %v222
    %1610 = vmatprep.subr.mxu0 0.0
    %1611 = vmatpush1.msra.mxu0 0.0
    %1612 = vmatprep.subr.mxu0 0.0
    %1613 = vmatpush1.msra.mxu0 0.0
    %1614 = vmatprep.subr.mxu0 0.0
    %1615 = vmatpush1.msra.mxu0 0.0
    %1616 = vmatprep.subr.mxu0 0.0
    %1617 = vmatpush1.msra.mxu0 0.0
    %1618 = vmatprep.subr.mxu0 0.0
    %1619 = vmatpush1.msra.mxu0 0.0
    %1620 = vmatprep.subr.mxu0 0.0
    %1621 = vmatpush1.msra.mxu0 0.0
    %1622 = vmatprep.subr.mxu0 0.0
    %1623 = vmatpush1.msra.mxu0 0.0
    %1624 = vmatprep.subr.mxu0 0.0
    %1625 = vmatpush1.msra.mxu0 0.0
    %1626 = vmatprep.subr.mxu0 0.0
    %1627 = vmatpush1.msra.mxu0 0.0
    %1628 = vmatprep.subr.mxu0 0.0
    %1629 = vmatpush1.msra.mxu0 0.0
    %1630 = vmatprep.subr.mxu0 0.0
    %1631 = vmatpush1.msra.mxu0 0.0
    %1632 = vmatprep.subr.mxu0 0.0
    %1633 = vmatpush1.msra.mxu0 0.0
    %1634 = vmatprep.subr.mxu0 0.0
    %1635 = vmatpush1.msra.mxu0 0.0
    %1636 = vmatprep.subr.mxu0 0.0
    %1637 = vmatpush1.msra.mxu0 0.0
    %1638 = vmatprep.subr.mxu0 0.0
    %1639 = vmatpush1.msra.mxu0 0.0
    %1640 = vmatprep.subr.mxu0 0.0
    %1641 = vmatpush1.msra.mxu0 0.0
    %1642 = vmatprep.subr.mxu0 0.0
    %1643 = vmatpush1.msra.mxu0 0.0
    %1644 = vmatprep.subr.mxu0 0.0
    %1645 = vmatpush1.msra.mxu0 0.0
    %1646 = vmatprep.subr.mxu0 0.0
    %1647 = vmatpush1.msra.mxu0 0.0
    %1648 = vmatprep.subr.mxu0 0.0
    %1649 = vmatpush1.msra.mxu0 0.0
    %1650 = vmatprep.subr.mxu0 0.0
    %1651 = vmatpush1.msra.mxu0 0.0
    %1652 = vmatprep.subr.mxu0 0.0
    %1653 = vmatpush1.msra.mxu0 0.0
    %1654 = vmatprep.subr.mxu0 0.0
    %1655 = vmatpush1.msra.mxu0 0.0
    %1656 = vmatprep.subr.mxu0 0.0
    %1657 = vmatpush1.msra.mxu0 0.0
    %1658 = vmatprep.subr.mxu0 0.0
    %1659 = vmatpush1.msra.mxu0 0.0
    %1660 = vmatprep.subr.mxu0 0.0
    %1661 = vmatpush1.msra.mxu0 0.0
    %1662 = vmatprep.subr.mxu0 0.0
    %1663 = vmatpush1.msra.mxu0 0.0
    %1664 = vmatprep.subr.mxu0 0.0
    %1665 = vmatpush1.msra.mxu0 0.0
    %1666 = vmatprep.subr.mxu0 0.0
    %1667 = vmatpush1.msra.mxu0 0.0
    %1668 = vmatprep.subr.mxu0 0.0
    %1669 = vmatpush1.msra.mxu0 0.0
    %1670 = vmatprep.mubr.f32.mxu0 0.0
    %1671 = vmatmul.mubr.f32.gmra.mrb[0].mxu0 %v1604
    %v1672 = vpop.f32.mrb[0].mxu0
    %v1673 = vadd.f32 %v331, %v1672
    %v1674 = vpop.f32.mrb[0].mxu0
    %1675 = vdwg.mxu0
    %1677 = vrot.lane.b32.xlu0 %v1523, 96
    %v1678 = vpop.permute.xlu0 %1677
    %v1679 = vsel %vm412, %v1678, 0
    %1681 = vmatprep.subr.mxu0 0.0
    %1682 = vmatpush1.msra.mxu0 %v223
    %1683 = vmatprep.subr.mxu0 0.0
    %1684 = vmatpush1.msra.mxu0 %v224
    %1685 = vmatprep.subr.mxu0 0.0
    %1686 = vmatpush1.msra.mxu0 %v225
    %1687 = vmatprep.subr.mxu0 0.0
    %1688 = vmatpush1.msra.mxu0 %v226
    %1689 = vmatprep.subr.mxu0 0.0
    %1690 = vmatpush1.msra.mxu0 0.0
    %1691 = vmatprep.subr.mxu0 0.0
    %1692 = vmatpush1.msra.mxu0 0.0
    %1693 = vmatprep.subr.mxu0 0.0
    %1694 = vmatpush1.msra.mxu0 0.0
    %1695 = vmatprep.subr.mxu0 0.0
    %1696 = vmatpush1.msra.mxu0 0.0
    %1697 = vmatprep.subr.mxu0 0.0
    %1698 = vmatpush1.msra.mxu0 0.0
    %1699 = vmatprep.subr.mxu0 0.0
    %1700 = vmatpush1.msra.mxu0 0.0
    %1701 = vmatprep.subr.mxu0 0.0
    %1702 = vmatpush1.msra.mxu0 0.0
    %1703 = vmatprep.subr.mxu0 0.0
    %1704 = vmatpush1.msra.mxu0 0.0
    %1705 = vmatprep.subr.mxu0 0.0
    %1706 = vmatpush1.msra.mxu0 0.0
    %1707 = vmatprep.subr.mxu0 0.0
    %1708 = vmatpush1.msra.mxu0 0.0
    %1709 = vmatprep.subr.mxu0 0.0
    %1710 = vmatpush1.msra.mxu0 0.0
    %1711 = vmatprep.subr.mxu0 0.0
    %1712 = vmatpush1.msra.mxu0 0.0
    %1713 = vmatprep.subr.mxu0 0.0
    %1714 = vmatpush1.msra.mxu0 0.0
    %1715 = vmatprep.subr.mxu0 0.0
    %1716 = vmatpush1.msra.mxu0 0.0
    %1717 = vmatprep.subr.mxu0 0.0
    %1718 = vmatpush1.msra.mxu0 0.0
    %1719 = vmatprep.subr.mxu0 0.0
    %1720 = vmatpush1.msra.mxu0 0.0
    %1721 = vmatprep.subr.mxu0 0.0
    %1722 = vmatpush1.msra.mxu0 0.0
    %1723 = vmatprep.subr.mxu0 0.0
    %1724 = vmatpush1.msra.mxu0 0.0
    %1725 = vmatprep.subr.mxu0 0.0
    %1726 = vmatpush1.msra.mxu0 0.0
    %1727 = vmatprep.subr.mxu0 0.0
    %1728 = vmatpush1.msra.mxu0 0.0
    %1729 = vmatprep.subr.mxu0 0.0
    %1730 = vmatpush1.msra.mxu0 0.0
    %1731 = vmatprep.subr.mxu0 0.0
    %1732 = vmatpush1.msra.mxu0 0.0
    %1733 = vmatprep.subr.mxu0 0.0
    %1734 = vmatpush1.msra.mxu0 0.0
    %1735 = vmatprep.subr.mxu0 0.0
    %1736 = vmatpush1.msra.mxu0 0.0
    %1737 = vmatprep.subr.mxu0 0.0
    %1738 = vmatpush1.msra.mxu0 0.0
    %1739 = vmatprep.subr.mxu0 0.0
    %1740 = vmatpush1.msra.mxu0 0.0
    %1741 = vmatprep.subr.mxu0 0.0
    %1742 = vmatpush1.msra.mxu0 0.0
    %1743 = vmatprep.subr.mxu0 0.0
    %1744 = vmatpush1.msra.mxu0 0.0
    %1745 = vmatprep.mubr.f32.mxu0 0.0
    %1746 = vmatmul.mubr.f32.gmra.mrb[0].mxu0 %v1679
    %v1747 = vpop.f32.mrb[0].mxu0
    %v1748 = vadd.f32 %v410, %v1747
    %v1749 = vpop.f32.mrb[0].mxu0
    %1750 = vdwg.mxu0
    %v1751 = vadd.f32 %v1673, %v1748
    %v1752 = vxor.u32 %v1751, 2147483648
    %v1753 = vmul.f32 %v1752, 1.442695
    %v1754 = vpow.pop %v1753
    %v1755 = vadd.f32 %v1754, 1.0
    %v1756 = vrcp.pop %v1755
    %v1757 = vmul.f32 1.0, %v1756
    %1759 = vrot.lane.b32.xlu0 %v1748, 64
    %v1760 = vpop.permute.xlu0 %1759
    %v1762 = vmul.f32 %v1757, %v1760
    %1764 = vrot.lane.b32.xlu0 %v1762, 64
    %v1765 = vpop.permute.xlu0 %1764
    %v1767 = vadd.f32 %v1673, %v1765
    %v1768 = vtanh.pop %v1767
    %v1769 = vsub.f32 1.0, %v1757
    %1771 = vrot.lane.b32.xlu0 %v1768, 96
    %v1772 = vpop.permute.xlu0 %1771
    %v1774 = vmul.f32 %v1769, %v1772
    %v1775 = vmul.f32 %v1757, %v1523
    %v1776 = vadd.f32 %v1774, %v1775
    %v1777 = vld [vmem:[%s8] sm:$0xff]
    %v1778 = vld [vmem:[%s8 + $0x8] sm:$0xff]
    %v1779 = vld [vmem:[%s8 + $0x10] sm:$0xff]
    %v1780 = vld [vmem:[%s8 + $0x18] sm:$0xff]
    %v1781 = vld [vmem:[#allocation10] sm:$0x1]
    %v1783 = vlaneseq
    %v1784 = vshrl.u32 %v1783, 7
    %v1785 = vsub.s32 0, %v1784
    %v1786 = vrot.slane %v1781, %v1785
    %1789 = vrot.lane.b32.xlu0 %v1776, 96
    %v1790 = vpop.permute.xlu0 %1789
    %v1791 = vsel %vm412, %v1790, 0
    %1793 = vmatprep.subr.mxu0 0.0
    %1794 = vmatpush1.msra.mxu0 %v1777
    %1795 = vmatprep.subr.mxu0 0.0
    %1796 = vmatpush1.msra.mxu0 %v1778
    %1797 = vmatprep.subr.mxu0 0.0
    %1798 = vmatpush1.msra.mxu0 %v1779
    %1799 = vmatprep.subr.mxu0 0.0
    %1800 = vmatpush1.msra.mxu0 %v1780
    %1801 = vmatprep.subr.mxu0 0.0
    %1802 = vmatpush1.msra.mxu0 0.0
    %1803 = vmatprep.subr.mxu0 0.0
    %1804 = vmatpush1.msra.mxu0 0.0
    %1805 = vmatprep.subr.mxu0 0.0
    %1806 = vmatpush1.msra.mxu0 0.0
    %1807 = vmatprep.subr.mxu0 0.0
    %1808 = vmatpush1.msra.mxu0 0.0
    %1809 = vmatprep.subr.mxu0 0.0
    %1810 = vmatpush1.msra.mxu0 0.0
    %1811 = vmatprep.subr.mxu0 0.0
    %1812 = vmatpush1.msra.mxu0 0.0
    %1813 = vmatprep.subr.mxu0 0.0
    %1814 = vmatpush1.msra.mxu0 0.0
    %1815 = vmatprep.subr.mxu0 0.0
    %1816 = vmatpush1.msra.mxu0 0.0
    %1817 = vmatprep.subr.mxu0 0.0
    %1818 = vmatpush1.msra.mxu0 0.0
    %1819 = vmatprep.subr.mxu0 0.0
    %1820 = vmatpush1.msra.mxu0 0.0
    %1821 = vmatprep.subr.mxu0 0.0
    %1822 = vmatpush1.msra.mxu0 0.0
    %1823 = vmatprep.subr.mxu0 0.0
    %1824 = vmatpush1.msra.mxu0 0.0
    %1825 = vmatprep.subr.mxu0 0.0
    %1826 = vmatpush1.msra.mxu0 0.0
    %1827 = vmatprep.subr.mxu0 0.0
    %1828 = vmatpush1.msra.mxu0 0.0
    %1829 = vmatprep.subr.mxu0 0.0
    %1830 = vmatpush1.msra.mxu0 0.0
    %1831 = vmatprep.subr.mxu0 0.0
    %1832 = vmatpush1.msra.mxu0 0.0
    %1833 = vmatprep.subr.mxu0 0.0
    %1834 = vmatpush1.msra.mxu0 0.0
    %1835 = vmatprep.subr.mxu0 0.0
    %1836 = vmatpush1.msra.mxu0 0.0
    %1837 = vmatprep.subr.mxu0 0.0
    %1838 = vmatpush1.msra.mxu0 0.0
    %1839 = vmatprep.subr.mxu0 0.0
    %1840 = vmatpush1.msra.mxu0 0.0
    %1841 = vmatprep.subr.mxu0 0.0
    %1842 = vmatpush1.msra.mxu0 0.0
    %1843 = vmatprep.subr.mxu0 0.0
    %1844 = vmatpush1.msra.mxu0 0.0
    %1845 = vmatprep.subr.mxu0 0.0
    %1846 = vmatpush1.msra.mxu0 0.0
    %1847 = vmatprep.subr.mxu0 0.0
    %1848 = vmatpush1.msra.mxu0 0.0
    %1849 = vmatprep.subr.mxu0 0.0
    %1850 = vmatpush1.msra.mxu0 0.0
    %1851 = vmatprep.subr.mxu0 0.0
    %1852 = vmatpush1.msra.mxu0 0.0
    %1853 = vmatprep.subr.mxu0 0.0
    %1854 = vmatpush1.msra.mxu0 0.0
    %1855 = vmatprep.subr.mxu0 0.0
    %1856 = vmatpush1.msra.mxu0 0.0
    %1857 = vmatprep.mubr.f32.mxu0 0.0
    %1858 = vmatmul.mubr.f32.gmra.mrb[0].mxu0 %v1791
    %v1859 = vpop.f32.mrb[0].mxu0
    %v1860 = vadd.f32 %v1786, %v1859
    %v1861 = vpop.f32.mrb[0].mxu0
    %1862 = vdwg.mxu0
    %v1863 = vld [vmem:[%s10] sm:$0xff]
    %v1864 = vld [vmem:[%s10 + $0x8] sm:$0xff]
    %v1865 = vld [vmem:[%s10 + $0x10] sm:$0xff]
    %v1866 = vld [vmem:[%s10 + $0x18] sm:$0xff]
    %v1867 = vld [vmem:[#allocation11] sm:$0x1]
    %v1869 = vlaneseq
    %v1870 = vshrl.u32 %v1869, 7
    %v1871 = vsub.s32 0, %v1870
    %v1872 = vrot.slane %v1867, %v1871
    %1874 = vmatprep.subr.mxu0 0.0
    %1875 = vmatpush1.msra.mxu0 %v1863
    %1876 = vmatprep.subr.mxu0 0.0
    %1877 = vmatpush1.msra.mxu0 %v1864
    %1878 = vmatprep.subr.mxu0 0.0
    %1879 = vmatpush1.msra.mxu0 %v1865
    %1880 = vmatprep.subr.mxu0 0.0
    %1881 = vmatpush1.msra.mxu0 %v1866
    %1882 = vmatprep.subr.mxu0 0.0
    %1883 = vmatpush1.msra.mxu0 0.0
    %1884 = vmatprep.subr.mxu0 0.0
    %1885 = vmatpush1.msra.mxu0 0.0
    %1886 = vmatprep.subr.mxu0 0.0
    %1887 = vmatpush1.msra.mxu0 0.0
    %1888 = vmatprep.subr.mxu0 0.0
    %1889 = vmatpush1.msra.mxu0 0.0
    %1890 = vmatprep.subr.mxu0 0.0
    %1891 = vmatpush1.msra.mxu0 0.0
    %1892 = vmatprep.subr.mxu0 0.0
    %1893 = vmatpush1.msra.mxu0 0.0
    %1894 = vmatprep.subr.mxu0 0.0
    %1895 = vmatpush1.msra.mxu0 0.0
    %1896 = vmatprep.subr.mxu0 0.0
    %1897 = vmatpush1.msra.mxu0 0.0
    %1898 = vmatprep.subr.mxu0 0.0
    %1899 = vmatpush1.msra.mxu0 0.0
    %1900 = vmatprep.subr.mxu0 0.0
    %1901 = vmatpush1.msra.mxu0 0.0
    %1902 = vmatprep.subr.mxu0 0.0
    %1903 = vmatpush1.msra.mxu0 0.0
    %1904 = vmatprep.subr.mxu0 0.0
    %1905 = vmatpush1.msra.mxu0 0.0
    %1906 = vmatprep.subr.mxu0 0.0
    %1907 = vmatpush1.msra.mxu0 0.0
    %1908 = vmatprep.subr.mxu0 0.0
    %1909 = vmatpush1.msra.mxu0 0.0
    %1910 = vmatprep.subr.mxu0 0.0
    %1911 = vmatpush1.msra.mxu0 0.0
    %1912 = vmatprep.subr.mxu0 0.0
    %1913 = vmatpush1.msra.mxu0 0.0
    %1914 = vmatprep.subr.mxu0 0.0
    %1915 = vmatpush1.msra.mxu0 0.0
    %1916 = vmatprep.subr.mxu0 0.0
    %1917 = vmatpush1.msra.mxu0 0.0
    %1918 = vmatprep.subr.mxu0 0.0
    %1919 = vmatpush1.msra.mxu0 0.0
    %1920 = vmatprep.subr.mxu0 0.0
    %1921 = vmatpush1.msra.mxu0 0.0
    %1922 = vmatprep.subr.mxu0 0.0
    %1923 = vmatpush1.msra.mxu0 0.0
    %1924 = vmatprep.subr.mxu0 0.0
    %1925 = vmatpush1.msra.mxu0 0.0
    %1926 = vmatprep.subr.mxu0 0.0
    %1927 = vmatpush1.msra.mxu0 0.0
    %1928 = vmatprep.subr.mxu0 0.0
    %1929 = vmatpush1.msra.mxu0 0.0
    %1930 = vmatprep.subr.mxu0 0.0
    %1931 = vmatpush1.msra.mxu0 0.0
    %1932 = vmatprep.subr.mxu0 0.0
    %1933 = vmatpush1.msra.mxu0 0.0
    %1934 = vmatprep.subr.mxu0 0.0
    %1935 = vmatpush1.msra.mxu0 0.0
    %1936 = vmatprep.subr.mxu0 0.0
    %1937 = vmatpush1.msra.mxu0 0.0
    %1938 = vmatprep.mubr.f32.mxu0 0.0
    %1939 = vmatmul.mubr.f32.gmra.mrb[0].mxu0 %v1791
    %v1940 = vpop.f32.mrb[0].mxu0
    %v1941 = vadd.f32 %v1872, %v1940
    %v1942 = vpop.f32.mrb[0].mxu0
    %1943 = vdwg.mxu0
    %v1944 = vmul.f32 %v1941, 0.5
    %v1945 = vmul.f32 %v1944, 1.442695
    %v1946 = vpow.pop %v1945
    %v1947 = vld [vmem:[%s2] sm:$0x3]
    %v1948 = vmul.f32 %v1946, %v1947
    %v1949 = vadd.f32 %v1860, %v1948
    %vm1950 = vcmask 254976
    %1951 = vst.msk [vmem:[#allocation22] sm:$0x3] %vm1950, %v1949
    %1952 = vst.msk [vmem:[#allocation23] sm:$0x3] %vm1950, %v1860
    %1953 = vst.msk [vmem:[#allocation25] sm:$0x3] %vm1950, %v1941
    %v1954 = vld [vmem:[%s1] sm:$0x3]
    %1955 = vset.pattern.permute.xlu0 0
    %1956 = vperm.xlu0 %1955, %v1954
    %v1957 = vpop.permute.xlu0 %1956
    %vm1958 = vcmp.eq.s32.totalorder %v1957, %v246
    %v1959 = vsel %vm1958, 1, 0
    %v1960 = vcvt.s32.f32 %v1959
    %v1962 = vsel %vm253, %v1960, 0
    %1964 = vmatprep.subr.mxu0 0.0
    %1965 = vmatpush1.msra.mxu0 %v229
    %1966 = vmatprep.subr.mxu0 0.0
    %1967 = vmatpush1.msra.mxu0 %v230
    %1968 = vmatprep.subr.mxu0 0.0
    %1969 = vmatpush1.msra.mxu0 0.0
    %1970 = vmatprep.subr.mxu0 0.0
    %1971 = vmatpush1.msra.mxu0 0.0
    %1972 = vmatprep.subr.mxu0 0.0
    %1973 = vmatpush1.msra.mxu0 0.0
    %1974 = vmatprep.subr.mxu0 0.0
    %1975 = vmatpush1.msra.mxu0 0.0
    %1976 = vmatprep.subr.mxu0 0.0
    %1977 = vmatpush1.msra.mxu0 0.0
    %1978 = vmatprep.subr.mxu0 0.0
    %1979 = vmatpush1.msra.mxu0 0.0
    %1980 = vmatprep.subr.mxu0 0.0
    %1981 = vmatpush1.msra.mxu0 0.0
    %1982 = vmatprep.subr.mxu0 0.0
    %1983 = vmatpush1.msra.mxu0 0.0
    %1984 = vmatprep.subr.mxu0 0.0
    %1985 = vmatpush1.msra.mxu0 0.0
    %1986 = vmatprep.subr.mxu0 0.0
    %1987 = vmatpush1.msra.mxu0 0.0
    %1988 = vmatprep.subr.mxu0 0.0
    %1989 = vmatpush1.msra.mxu0 0.0
    %1990 = vmatprep.subr.mxu0 0.0
    %1991 = vmatpush1.msra.mxu0 0.0
    %1992 = vmatprep.subr.mxu0 0.0
    %1993 = vmatpush1.msra.mxu0 0.0
    %1994 = vmatprep.subr.mxu0 0.0
    %1995 = vmatpush1.msra.mxu0 0.0
    %1996 = vmatprep.subr.mxu0 0.0
    %1997 = vmatpush1.msra.mxu0 0.0
    %1998 = vmatprep.subr.mxu0 0.0
    %1999 = vmatpush1.msra.mxu0 0.0
    %2000 = vmatprep.subr.mxu0 0.0
    %2001 = vmatpush1.msra.mxu0 0.0
    %2002 = vmatprep.subr.mxu0 0.0
    %2003 = vmatpush1.msra.mxu0 0.0
    %2004 = vmatprep.subr.mxu0 0.0
    %2005 = vmatpush1.msra.mxu0 0.0
    %2006 = vmatprep.subr.mxu0 0.0
    %2007 = vmatpush1.msra.mxu0 0.0
    %2008 = vmatprep.subr.mxu0 0.0
    %2009 = vmatpush1.msra.mxu0 0.0
    %2010 = vmatprep.subr.mxu0 0.0
    %2011 = vmatpush1.msra.mxu0 0.0
    %2012 = vmatprep.subr.mxu0 0.0
    %2013 = vmatpush1.msra.mxu0 0.0
    %2014 = vmatprep.subr.mxu0 0.0
    %2015 = vmatpush1.msra.mxu0 0.0
    %2016 = vmatprep.subr.mxu0 0.0
    %2017 = vmatpush1.msra.mxu0 0.0
    %2018 = vmatprep.subr.mxu0 0.0
    %2019 = vmatpush1.msra.mxu0 0.0
    %2020 = vmatprep.subr.mxu0 0.0
    %2021 = vmatpush1.msra.mxu0 0.0
    %2022 = vmatprep.subr.mxu0 0.0
    %2023 = vmatpush1.msra.mxu0 0.0
    %2024 = vmatprep.subr.mxu0 0.0
    %2025 = vmatpush1.msra.mxu0 0.0
    %2026 = vmatprep.subr.mxu0 0.0
    %2027 = vmatpush1.msra.mxu0 0.0
    %2028 = vmatprep.mubr.f32.mxu0 0.0
    %2029 = vmatmul.mubr.f32.gmra.mrb[0].mxu0 %v1962
    %v2030 = vpop.f32.mrb[0].mxu0
    %v2031 = vadd.f32 0.0, %v2030
    %v2032 = vpop.f32.mrb[0].mxu0
    %2033 = vdwg.mxu0
    %v2035 = vlaneseq
    %v2036 = vshrl.u32 %v2035, 7
    %v2037 = vsub.s32 0, %v2036
    %v2038 = vrot.slane %v237, %v2037
    %v2041 = vsel %vm253, %v2031, 0
    %2043 = vmatprep.subr.mxu0 0.0
    %2044 = vmatpush1.msra.mxu0 %v231
    %2045 = vmatprep.subr.mxu0 0.0
    %2046 = vmatpush1.msra.mxu0 %v232
    %2047 = vmatprep.subr.mxu0 0.0
    %2048 = vmatpush1.msra.mxu0 0.0
    %2049 = vmatprep.subr.mxu0 0.0
    %2050 = vmatpush1.msra.mxu0 0.0
    %2051 = vmatprep.subr.mxu0 0.0
    %2052 = vmatpush1.msra.mxu0 0.0
    %2053 = vmatprep.subr.mxu0 0.0
    %2054 = vmatpush1.msra.mxu0 0.0
    %2055 = vmatprep.subr.mxu0 0.0
    %2056 = vmatpush1.msra.mxu0 0.0
    %2057 = vmatprep.subr.mxu0 0.0
    %2058 = vmatpush1.msra.mxu0 0.0
    %2059 = vmatprep.subr.mxu0 0.0
    %2060 = vmatpush1.msra.mxu0 0.0
    %2061 = vmatprep.subr.mxu0 0.0
    %2062 = vmatpush1.msra.mxu0 0.0
    %2063 = vmatprep.subr.mxu0 0.0
    %2064 = vmatpush1.msra.mxu0 0.0
    %2065 = vmatprep.subr.mxu0 0.0
    %2066 = vmatpush1.msra.mxu0 0.0
    %2067 = vmatprep.subr.mxu0 0.0
    %2068 = vmatpush1.msra.mxu0 0.0
    %2069 = vmatprep.subr.mxu0 0.0
    %2070 = vmatpush1.msra.mxu0 0.0
    %2071 = vmatprep.subr.mxu0 0.0
    %2072 = vmatpush1.msra.mxu0 0.0
    %2073 = vmatprep.subr.mxu0 0.0
    %2074 = vmatpush1.msra.mxu0 0.0
    %2075 = vmatprep.subr.mxu0 0.0
    %2076 = vmatpush1.msra.mxu0 0.0
    %2077 = vmatprep.subr.mxu0 0.0
    %2078 = vmatpush1.msra.mxu0 0.0
    %2079 = vmatprep.subr.mxu0 0.0
    %2080 = vmatpush1.msra.mxu0 0.0
    %2081 = vmatprep.subr.mxu0 0.0
    %2082 = vmatpush1.msra.mxu0 0.0
    %2083 = vmatprep.subr.mxu0 0.0
    %2084 = vmatpush1.msra.mxu0 0.0
    %2085 = vmatprep.subr.mxu0 0.0
    %2086 = vmatpush1.msra.mxu0 0.0
    %2087 = vmatprep.subr.mxu0 0.0
    %2088 = vmatpush1.msra.mxu0 0.0
    %2089 = vmatprep.subr.mxu0 0.0
    %2090 = vmatpush1.msra.mxu0 0.0
    %2091 = vmatprep.subr.mxu0 0.0
    %2092 = vmatpush1.msra.mxu0 0.0
    %2093 = vmatprep.subr.mxu0 0.0
    %2094 = vmatpush1.msra.mxu0 0.0
    %2095 = vmatprep.subr.mxu0 0.0
    %2096 = vmatpush1.msra.mxu0 0.0
    %2097 = vmatprep.subr.mxu0 0.0
    %2098 = vmatpush1.msra.mxu0 0.0
    %2099 = vmatprep.subr.mxu0 0.0
    %2100 = vmatpush1.msra.mxu0 0.0
    %2101 = vmatprep.subr.mxu0 0.0
    %2102 = vmatpush1.msra.mxu0 0.0
    %2103 = vmatprep.subr.mxu0 0.0
    %2104 = vmatpush1.msra.mxu0 0.0
    %2105 = vmatprep.subr.mxu0 0.0
    %2106 = vmatpush1.msra.mxu0 0.0
    %2107 = vmatprep.mubr.f32.mxu0 0.0
    %2108 = vmatmul.mubr.f32.gmra.mrb[0].mxu0 %v2041
    %v2109 = vpop.f32.mrb[0].mxu0
    %v2110 = vadd.f32 %v2038, %v2109
    %v2111 = vpop.f32.mrb[0].mxu0
    %2112 = vdwg.mxu0
    %v2114 = vlaneseq
    %v2115 = vshrl.u32 %v2114, 7
    %v2116 = vsub.s32 0, %v2115
    %v2117 = vrot.slane %v238, %v2116
    %v2120 = vsel %vm412, %v1949, 0
    %2122 = vmatprep.subr.mxu0 0.0
    %2123 = vmatpush1.msra.mxu0 %v233
    %2124 = vmatprep.subr.mxu0 0.0
    %2125 = vmatpush1.msra.mxu0 %v234
    %2126 = vmatprep.subr.mxu0 0.0
    %2127 = vmatpush1.msra.mxu0 %v235
    %2128 = vmatprep.subr.mxu0 0.0
    %2129 = vmatpush1.msra.mxu0 %v236
    %2130 = vmatprep.subr.mxu0 0.0
    %2131 = vmatpush1.msra.mxu0 0.0
    %2132 = vmatprep.subr.mxu0 0.0
    %2133 = vmatpush1.msra.mxu0 0.0
    %2134 = vmatprep.subr.mxu0 0.0
    %2135 = vmatpush1.msra.mxu0 0.0
    %2136 = vmatprep.subr.mxu0 0.0
    %2137 = vmatpush1.msra.mxu0 0.0
    %2138 = vmatprep.subr.mxu0 0.0
    %2139 = vmatpush1.msra.mxu0 0.0
    %2140 = vmatprep.subr.mxu0 0.0
    %2141 = vmatpush1.msra.mxu0 0.0
    %2142 = vmatprep.subr.mxu0 0.0
    %2143 = vmatpush1.msra.mxu0 0.0
    %2144 = vmatprep.subr.mxu0 0.0
    %2145 = vmatpush1.msra.mxu0 0.0
    %2146 = vmatprep.subr.mxu0 0.0
    %2147 = vmatpush1.msra.mxu0 0.0
    %2148 = vmatprep.subr.mxu0 0.0
    %2149 = vmatpush1.msra.mxu0 0.0
    %2150 = vmatprep.subr.mxu0 0.0
    %2151 = vmatpush1.msra.mxu0 0.0
    %2152 = vmatprep.subr.mxu0 0.0
    %2153 = vmatpush1.msra.mxu0 0.0
    %2154 = vmatprep.subr.mxu0 0.0
    %2155 = vmatpush1.msra.mxu0 0.0
    %2156 = vmatprep.subr.mxu0 0.0
    %2157 = vmatpush1.msra.mxu0 0.0
    %2158 = vmatprep.subr.mxu0 0.0
    %2159 = vmatpush1.msra.mxu0 0.0
    %2160 = vmatprep.subr.mxu0 0.0
    %2161 = vmatpush1.msra.mxu0 0.0
    %2162 = vmatprep.subr.mxu0 0.0
    %2163 = vmatpush1.msra.mxu0 0.0
    %2164 = vmatprep.subr.mxu0 0.0
    %2165 = vmatpush1.msra.mxu0 0.0
    %2166 = vmatprep.subr.mxu0 0.0
    %2167 = vmatpush1.msra.mxu0 0.0
    %2168 = vmatprep.subr.mxu0 0.0
    %2169 = vmatpush1.msra.mxu0 0.0
    %2170 = vmatprep.subr.mxu0 0.0
    %2171 = vmatpush1.msra.mxu0 0.0
    %2172 = vmatprep.subr.mxu0 0.0
    %2173 = vmatpush1.msra.mxu0 0.0
    %2174 = vmatprep.subr.mxu0 0.0
    %2175 = vmatpush1.msra.mxu0 0.0
    %2176 = vmatprep.subr.mxu0 0.0
    %2177 = vmatpush1.msra.mxu0 0.0
    %2178 = vmatprep.subr.mxu0 0.0
    %2179 = vmatpush1.msra.mxu0 0.0
    %2180 = vmatprep.subr.mxu0 0.0
    %2181 = vmatpush1.msra.mxu0 0.0
    %2182 = vmatprep.subr.mxu0 0.0
    %2183 = vmatpush1.msra.mxu0 0.0
    %2184 = vmatprep.subr.mxu0 0.0
    %2185 = vmatpush1.msra.mxu0 0.0
    %2186 = vmatprep.mubr.f32.mxu0 0.0
    %2187 = vmatmul.mubr.f32.gmra.mrb[0].mxu0 %v2120
    %v2188 = vpop.f32.mrb[0].mxu0
    %v2189 = vadd.f32 %v2117, %v2188
    %v2190 = vpop.f32.mrb[0].mxu0
    %2191 = vdwg.mxu0
    %v2192 = vadd.f32 %v2110, %v2189
    %v2193 = vxor.u32 %v2192, 2147483648
    %v2194 = vmul.f32 %v2193, 1.442695
    %v2195 = vpow.pop %v2194
    %v2196 = vadd.f32 %v2195, 1.0
    %v2197 = vrcp.pop %v2196
    %v2198 = vmul.f32 1.0, %v2197
    %2200 = vrot.lane.b32.xlu0 %v2189, 64
    %v2201 = vpop.permute.xlu0 %2200
    %v2203 = vmul.f32 %v2198, %v2201
    %2205 = vrot.lane.b32.xlu0 %v2203, 64
    %v2206 = vpop.permute.xlu0 %2205
    %v2208 = vadd.f32 %v2110, %v2206
    %v2209 = vtanh.pop %v2208
    %v2210 = vsub.f32 1.0, %v2198
    %2212 = vrot.lane.b32.xlu0 %v2209, 96
    %v2213 = vpop.permute.xlu0 %2212
    %v2215 = vmul.f32 %v2210, %v2213
    %2216 = vrot.lane.b32.xlu0 %v1949, 32
    %v2217 = vpop.permute.xlu0 %2216
    %v2219 = vmul.f32 %v2198, %v2217
    %v2220 = vadd.f32 %v2215, %v2219
    %v2222 = vlaneseq
    %v2223 = vshrl.u32 %v2222, 7
    %v2224 = vsub.s32 0, %v2223
    %v2225 = vrot.slane %v243, %v2224
    %2228 = vrot.lane.b32.xlu0 %v2220, 96
    %v2229 = vpop.permute.xlu0 %2228
    %v2230 = vsel %vm412, %v2229, 0
    %2232 = vmatprep.subr.mxu0 0.0
    %2233 = vmatpush1.msra.mxu0 %v239
    %2234 = vmatprep.subr.mxu0 0.0
    %2235 = vmatpush1.msra.mxu0 %v240
    %2236 = vmatprep.subr.mxu0 0.0
    %2237 = vmatpush1.msra.mxu0 %v241
    %2238 = vmatprep.subr.mxu0 0.0
    %2239 = vmatpush1.msra.mxu0 %v242
    %2240 = vmatprep.subr.mxu0 0.0
    %2241 = vmatpush1.msra.mxu0 0.0
    %2242 = vmatprep.subr.mxu0 0.0
    %2243 = vmatpush1.msra.mxu0 0.0
    %2244 = vmatprep.subr.mxu0 0.0
    %2245 = vmatpush1.msra.mxu0 0.0
    %2246 = vmatprep.subr.mxu0 0.0
    %2247 = vmatpush1.msra.mxu0 0.0
    %2248 = vmatprep.subr.mxu0 0.0
    %2249 = vmatpush1.msra.mxu0 0.0
    %2250 = vmatprep.subr.mxu0 0.0
    %2251 = vmatpush1.msra.mxu0 0.0
    %2252 = vmatprep.subr.mxu0 0.0
    %2253 = vmatpush1.msra.mxu0 0.0
    %2254 = vmatprep.subr.mxu0 0.0
    %2255 = vmatpush1.msra.mxu0 0.0
    %2256 = vmatprep.subr.mxu0 0.0
    %2257 = vmatpush1.msra.mxu0 0.0
    %2258 = vmatprep.subr.mxu0 0.0
    %2259 = vmatpush1.msra.mxu0 0.0
    %2260 = vmatprep.subr.mxu0 0.0
    %2261 = vmatpush1.msra.mxu0 0.0
    %2262 = vmatprep.subr.mxu0 0.0
    %2263 = vmatpush1.msra.mxu0 0.0
    %2264 = vmatprep.subr.mxu0 0.0
    %2265 = vmatpush1.msra.mxu0 0.0
    %2266 = vmatprep.subr.mxu0 0.0
    %2267 = vmatpush1.msra.mxu0 0.0
    %2268 = vmatprep.subr.mxu0 0.0
    %2269 = vmatpush1.msra.mxu0 0.0
    %2270 = vmatprep.subr.mxu0 0.0
    %2271 = vmatpush1.msra.mxu0 0.0
    %2272 = vmatprep.subr.mxu0 0.0
    %2273 = vmatpush1.msra.mxu0 0.0
    %2274 = vmatprep.subr.mxu0 0.0
    %2275 = vmatpush1.msra.mxu0 0.0
    %2276 = vmatprep.subr.mxu0 0.0
    %2277 = vmatpush1.msra.mxu0 0.0
    %2278 = vmatprep.subr.mxu0 0.0
    %2279 = vmatpush1.msra.mxu0 0.0
    %2280 = vmatprep.subr.mxu0 0.0
    %2281 = vmatpush1.msra.mxu0 0.0
    %2282 = vmatprep.subr.mxu0 0.0
    %2283 = vmatpush1.msra.mxu0 0.0
    %2284 = vmatprep.subr.mxu0 0.0
    %2285 = vmatpush1.msra.mxu0 0.0
    %2286 = vmatprep.subr.mxu0 0.0
    %2287 = vmatpush1.msra.mxu0 0.0
    %2288 = vmatprep.subr.mxu0 0.0
    %2289 = vmatpush1.msra.mxu0 0.0
    %2290 = vmatprep.subr.mxu0 0.0
    %2291 = vmatpush1.msra.mxu0 0.0
    %2292 = vmatprep.subr.mxu0 0.0
    %2293 = vmatpush1.msra.mxu0 0.0
    %2294 = vmatprep.subr.mxu0 0.0
    %2295 = vmatpush1.msra.mxu0 0.0
    %2296 = vmatprep.mubr.f32.mxu0 0.0
    %2297 = vmatmul.mubr.f32.gmra.mrb[0].mxu0 %v2230
    %v2298 = vpop.f32.mrb[0].mxu0
    %v2299 = vadd.f32 %v2225, %v2298
    %v2300 = vpop.f32.mrb[0].mxu0
    %2301 = vdwg.mxu0
    %vm2302 = vcmask 123904
    %v2303 = vsel %vm2302, %v2299, -inf
    %2304 = vmax.xlane.f32.xlu0 %v2303
    %v2305 = vpop.xlane.xlu0 %2304
    %vm2306 = vcmp.eq.f32.partialorder %v2299, %v2305
    %v2307 = vsel %vm2306, %v246, 16
    %v2308 = vsel %vm2302, %v2307, 2147483647
    %v2309 = vand.u32 %v2308, 65535
    %v2310 = vshra.s32 %v2308, 16
    %v2311 = vcvt.s32.f32 %v2309
    %v2312 = vcvt.s32.f32 %v2310
    %2313 = vmin.xlane.f32.xlu0 %v2312
    %v2314 = vpop.xlane.xlu0 %2313
    %vm2315 = vcmp.eq.f32.partialorder %v2312, %v2314
    %v2316 = vsel %vm2315, %v2311, inf
    %2317 = vmin.xlane.f32.xlu0 %v2316
    %v2318 = vpop.xlane.xlu0 %2317
    %v2319 = vcvt.f32.s32 %v2318
    %v2320 = vcvt.f32.s32 %v2314
    %v2321 = vshll.u32 %v2320, 16
    %v2322 = vadd.s32 %v2321, %v2319
    %vm2323 = vcmp.eq.s32.totalorder %v2322, %v246
    %v2324 = vsel %vm2323, 1, 0
    %v2325 = vcvt.s32.f32 %v2324
    %v2327 = vsel %vm253, %v2325, 0
    %2329 = vmatprep.subr.mxu0 0.0
    %2330 = vmatpush1.msra.mxu0 %v229
    %2331 = vmatprep.subr.mxu0 0.0
    %2332 = vmatpush1.msra.mxu0 %v230
    %2333 = vmatprep.subr.mxu0 0.0
    %2334 = vmatpush1.msra.mxu0 0.0
    %2335 = vmatprep.subr.mxu0 0.0
    %2336 = vmatpush1.msra.mxu0 0.0
    %2337 = vmatprep.subr.mxu0 0.0
    %2338 = vmatpush1.msra.mxu0 0.0
    %2339 = vmatprep.subr.mxu0 0.0
    %2340 = vmatpush1.msra.mxu0 0.0
    %2341 = vmatprep.subr.mxu0 0.0
    %2342 = vmatpush1.msra.mxu0 0.0
    %2343 = vmatprep.subr.mxu0 0.0
    %2344 = vmatpush1.msra.mxu0 0.0
    %2345 = vmatprep.subr.mxu0 0.0
    %2346 = vmatpush1.msra.mxu0 0.0
    %2347 = vmatprep.subr.mxu0 0.0
    %2348 = vmatpush1.msra.mxu0 0.0
    %2349 = vmatprep.subr.mxu0 0.0
    %2350 = vmatpush1.msra.mxu0 0.0
    %2351 = vmatprep.subr.mxu0 0.0
    %2352 = vmatpush1.msra.mxu0 0.0
    %2353 = vmatprep.subr.mxu0 0.0
    %2354 = vmatpush1.msra.mxu0 0.0
    %2355 = vmatprep.subr.mxu0 0.0
    %2356 = vmatpush1.msra.mxu0 0.0
    %2357 = vmatprep.subr.mxu0 0.0
    %2358 = vmatpush1.msra.mxu0 0.0
    %2359 = vmatprep.subr.mxu0 0.0
    %2360 = vmatpush1.msra.mxu0 0.0
    %2361 = vmatprep.subr.mxu0 0.0
    %2362 = vmatpush1.msra.mxu0 0.0
    %2363 = vmatprep.subr.mxu0 0.0
    %2364 = vmatpush1.msra.mxu0 0.0
    %2365 = vmatprep.subr.mxu0 0.0
    %2366 = vmatpush1.msra.mxu0 0.0
    %2367 = vmatprep.subr.mxu0 0.0
    %2368 = vmatpush1.msra.mxu0 0.0
    %2369 = vmatprep.subr.mxu0 0.0
    %2370 = vmatpush1.msra.mxu0 0.0
    %2371 = vmatprep.subr.mxu0 0.0
    %2372 = vmatpush1.msra.mxu0 0.0
    %2373 = vmatprep.subr.mxu0 0.0
    %2374 = vmatpush1.msra.mxu0 0.0
    %2375 = vmatprep.subr.mxu0 0.0
    %2376 = vmatpush1.msra.mxu0 0.0
    %2377 = vmatprep.subr.mxu0 0.0
    %2378 = vmatpush1.msra.mxu0 0.0
    %2379 = vmatprep.subr.mxu0 0.0
    %2380 = vmatpush1.msra.mxu0 0.0
    %2381 = vmatprep.subr.mxu0 0.0
    %2382 = vmatpush1.msra.mxu0 0.0
    %2383 = vmatprep.subr.mxu0 0.0
    %2384 = vmatpush1.msra.mxu0 0.0
    %2385 = vmatprep.subr.mxu0 0.0
    %2386 = vmatpush1.msra.mxu0 0.0
    %2387 = vmatprep.subr.mxu0 0.0
    %2388 = vmatpush1.msra.mxu0 0.0
    %2389 = vmatprep.subr.mxu0 0.0
    %2390 = vmatpush1.msra.mxu0 0.0
    %2391 = vmatprep.subr.mxu0 0.0
    %2392 = vmatpush1.msra.mxu0 0.0
    %2393 = vmatprep.mubr.f32.mxu0 0.0
    %2394 = vmatmul.mubr.f32.gmra.mrb[0].mxu0 %v2327
    %v2395 = vpop.f32.mrb[0].mxu0
    %v2396 = vadd.f32 0.0, %v2395
    %v2397 = vpop.f32.mrb[0].mxu0
    %2398 = vdwg.mxu0
    %v2400 = vsel %vm253, %v2396, 0
    %2402 = vmatprep.subr.mxu0 0.0
    %2403 = vmatpush1.msra.mxu0 %v231
    %2404 = vmatprep.subr.mxu0 0.0
    %2405 = vmatpush1.msra.mxu0 %v232
    %2406 = vmatprep.subr.mxu0 0.0
    %2407 = vmatpush1.msra.mxu0 0.0
    %2408 = vmatprep.subr.mxu0 0.0
    %2409 = vmatpush1.msra.mxu0 0.0
    %2410 = vmatprep.subr.mxu0 0.0
    %2411 = vmatpush1.msra.mxu0 0.0
    %2412 = vmatprep.subr.mxu0 0.0
    %2413 = vmatpush1.msra.mxu0 0.0
    %2414 = vmatprep.subr.mxu0 0.0
    %2415 = vmatpush1.msra.mxu0 0.0
    %2416 = vmatprep.subr.mxu0 0.0
    %2417 = vmatpush1.msra.mxu0 0.0
    %2418 = vmatprep.subr.mxu0 0.0
    %2419 = vmatpush1.msra.mxu0 0.0
    %2420 = vmatprep.subr.mxu0 0.0
    %2421 = vmatpush1.msra.mxu0 0.0
    %2422 = vmatprep.subr.mxu0 0.0
    %2423 = vmatpush1.msra.mxu0 0.0
    %2424 = vmatprep.subr.mxu0 0.0
    %2425 = vmatpush1.msra.mxu0 0.0
    %2426 = vmatprep.subr.mxu0 0.0
    %2427 = vmatpush1.msra.mxu0 0.0
    %2428 = vmatprep.subr.mxu0 0.0
    %2429 = vmatpush1.msra.mxu0 0.0
    %2430 = vmatprep.subr.mxu0 0.0
    %2431 = vmatpush1.msra.mxu0 0.0
    %2432 = vmatprep.subr.mxu0 0.0
    %2433 = vmatpush1.msra.mxu0 0.0
    %2434 = vmatprep.subr.mxu0 0.0
    %2435 = vmatpush1.msra.mxu0 0.0
    %2436 = vmatprep.subr.mxu0 0.0
    %2437 = vmatpush1.msra.mxu0 0.0
    %2438 = vmatprep.subr.mxu0 0.0
    %2439 = vmatpush1.msra.mxu0 0.0
    %2440 = vmatprep.subr.mxu0 0.0
    %2441 = vmatpush1.msra.mxu0 0.0
    %2442 = vmatprep.subr.mxu0 0.0
    %2443 = vmatpush1.msra.mxu0 0.0
    %2444 = vmatprep.subr.mxu0 0.0
    %2445 = vmatpush1.msra.mxu0 0.0
    %2446 = vmatprep.subr.mxu0 0.0
    %2447 = vmatpush1.msra.mxu0 0.0
    %2448 = vmatprep.subr.mxu0 0.0
    %2449 = vmatpush1.msra.mxu0 0.0
    %2450 = vmatprep.subr.mxu0 0.0
    %2451 = vmatpush1.msra.mxu0 0.0
    %2452 = vmatprep.subr.mxu0 0.0
    %2453 = vmatpush1.msra.mxu0 0.0
    %2454 = vmatprep.subr.mxu0 0.0
    %2455 = vmatpush1.msra.mxu0 0.0
    %2456 = vmatprep.subr.mxu0 0.0
    %2457 = vmatpush1.msra.mxu0 0.0
    %2458 = vmatprep.subr.mxu0 0.0
    %2459 = vmatpush1.msra.mxu0 0.0
    %2460 = vmatprep.subr.mxu0 0.0
    %2461 = vmatpush1.msra.mxu0 0.0
    %2462 = vmatprep.subr.mxu0 0.0
    %2463 = vmatpush1.msra.mxu0 0.0
    %2464 = vmatprep.subr.mxu0 0.0
    %2465 = vmatpush1.msra.mxu0 0.0
    %2466 = vmatprep.mubr.f32.mxu0 0.0
    %2467 = vmatmul.mubr.f32.gmra.mrb[0].mxu0 %v2400
    %v2468 = vpop.f32.mrb[0].mxu0
    %v2469 = vadd.f32 %v2038, %v2468
    %v2470 = vpop.f32.mrb[0].mxu0
    %2471 = vdwg.mxu0
    %2472 = vmatprep.subr.mxu0 0.0
    %2473 = vmatpush1.msra.mxu0 %v233
    %2474 = vmatprep.subr.mxu0 0.0
    %2475 = vmatpush1.msra.mxu0 %v234
    %2476 = vmatprep.subr.mxu0 0.0
    %2477 = vmatpush1.msra.mxu0 %v235
    %2478 = vmatprep.subr.mxu0 0.0
    %2479 = vmatpush1.msra.mxu0 %v236
    %2480 = vmatprep.subr.mxu0 0.0
    %2481 = vmatpush1.msra.mxu0 0.0
    %2482 = vmatprep.subr.mxu0 0.0
    %2483 = vmatpush1.msra.mxu0 0.0
    %2484 = vmatprep.subr.mxu0 0.0
    %2485 = vmatpush1.msra.mxu0 0.0
    %2486 = vmatprep.subr.mxu0 0.0
    %2487 = vmatpush1.msra.mxu0 0.0
    %2488 = vmatprep.subr.mxu0 0.0
    %2489 = vmatpush1.msra.mxu0 0.0
    %2490 = vmatprep.subr.mxu0 0.0
    %2491 = vmatpush1.msra.mxu0 0.0
    %2492 = vmatprep.subr.mxu0 0.0
    %2493 = vmatpush1.msra.mxu0 0.0
    %2494 = vmatprep.subr.mxu0 0.0
    %2495 = vmatpush1.msra.mxu0 0.0
    %2496 = vmatprep.subr.mxu0 0.0
    %2497 = vmatpush1.msra.mxu0 0.0
    %2498 = vmatprep.subr.mxu0 0.0
    %2499 = vmatpush1.msra.mxu0 0.0
    %2500 = vmatprep.subr.mxu0 0.0
    %2501 = vmatpush1.msra.mxu0 0.0
    %2502 = vmatprep.subr.mxu0 0.0
    %2503 = vmatpush1.msra.mxu0 0.0
    %2504 = vmatprep.subr.mxu0 0.0
    %2505 = vmatpush1.msra.mxu0 0.0
    %2506 = vmatprep.subr.mxu0 0.0
    %2507 = vmatpush1.msra.mxu0 0.0
    %2508 = vmatprep.subr.mxu0 0.0
    %2509 = vmatpush1.msra.mxu0 0.0
    %2510 = vmatprep.subr.mxu0 0.0
    %2511 = vmatpush1.msra.mxu0 0.0
    %2512 = vmatprep.subr.mxu0 0.0
    %2513 = vmatpush1.msra.mxu0 0.0
    %2514 = vmatprep.subr.mxu0 0.0
    %2515 = vmatpush1.msra.mxu0 0.0
    %2516 = vmatprep.subr.mxu0 0.0
    %2517 = vmatpush1.msra.mxu0 0.0
    %2518 = vmatprep.subr.mxu0 0.0
    %2519 = vmatpush1.msra.mxu0 0.0
    %2520 = vmatprep.subr.mxu0 0.0
    %2521 = vmatpush1.msra.mxu0 0.0
    %2522 = vmatprep.subr.mxu0 0.0
    %2523 = vmatpush1.msra.mxu0 0.0
    %2524 = vmatprep.subr.mxu0 0.0
    %2525 = vmatpush1.msra.mxu0 0.0
    %2526 = vmatprep.subr.mxu0 0.0
    %2527 = vmatpush1.msra.mxu0 0.0
    %2528 = vmatprep.subr.mxu0 0.0
    %2529 = vmatpush1.msra.mxu0 0.0
    %2530 = vmatprep.subr.mxu0 0.0
    %2531 = vmatpush1.msra.mxu0 0.0
    %2532 = vmatprep.subr.mxu0 0.0
    %2533 = vmatpush1.msra.mxu0 0.0
    %2534 = vmatprep.subr.mxu0 0.0
    %2535 = vmatpush1.msra.mxu0 0.0
    %2536 = vmatprep.mubr.f32.mxu0 0.0
    %2537 = vmatmul.mubr.f32.gmra.mrb[0].mxu0 %v2230
    %v2538 = vpop.f32.mrb[0].mxu0
    %v2539 = vadd.f32 %v2117, %v2538
    %v2540 = vpop.f32.mrb[0].mxu0
    %2541 = vdwg.mxu0
    %v2542 = vadd.f32 %v2469, %v2539
    %v2543 = vxor.u32 %v2542, 2147483648
    %v2544 = vmul.f32 %v2543, 1.442695
    %v2545 = vpow.pop %v2544
    %v2546 = vadd.f32 %v2545, 1.0
    %v2547 = vrcp.pop %v2546
    %v2548 = vmul.f32 1.0, %v2547
    %2550 = vrot.lane.b32.xlu0 %v2539, 64
    %v2551 = vpop.permute.xlu0 %2550
    %v2553 = vmul.f32 %v2548, %v2551
    %2555 = vrot.lane.b32.xlu0 %v2553, 64
    %v2556 = vpop.permute.xlu0 %2555
    %v2558 = vadd.f32 %v2469, %v2556
    %v2559 = vtanh.pop %v2558
    %v2560 = vsub.f32 1.0, %v2548
    %2562 = vrot.lane.b32.xlu0 %v2559, 96
    %v2563 = vpop.permute.xlu0 %2562
    %v2565 = vmul.f32 %v2560, %v2563
    %v2566 = vmul.f32 %v2548, %v2220
    %v2567 = vadd.f32 %v2565, %v2566
    %2569 = vrot.lane.b32.xlu0 %v2567, 96
    %v2570 = vpop.permute.xlu0 %2569
    %v2571 = vsel %vm412, %v2570, 0
    %2573 = vmatprep.subr.mxu0 0.0
    %2574 = vmatpush1.msra.mxu0 %v239
    %2575 = vmatprep.subr.mxu0 0.0
    %2576 = vmatpush1.msra.mxu0 %v240
    %2577 = vmatprep.subr.mxu0 0.0
    %2578 = vmatpush1.msra.mxu0 %v241
    %2579 = vmatprep.subr.mxu0 0.0
    %2580 = vmatpush1.msra.mxu0 %v242
    %2581 = vmatprep.subr.mxu0 0.0
    %2582 = vmatpush1.msra.mxu0 0.0
    %2583 = vmatprep.subr.mxu0 0.0
    %2584 = vmatpush1.msra.mxu0 0.0
    %2585 = vmatprep.subr.mxu0 0.0
    %2586 = vmatpush1.msra.mxu0 0.0
    %2587 = vmatprep.subr.mxu0 0.0
    %2588 = vmatpush1.msra.mxu0 0.0
    %2589 = vmatprep.subr.mxu0 0.0
    %2590 = vmatpush1.msra.mxu0 0.0
    %2591 = vmatprep.subr.mxu0 0.0
    %2592 = vmatpush1.msra.mxu0 0.0
    %2593 = vmatprep.subr.mxu0 0.0
    %2594 = vmatpush1.msra.mxu0 0.0
    %2595 = vmatprep.subr.mxu0 0.0
    %2596 = vmatpush1.msra.mxu0 0.0
    %2597 = vmatprep.subr.mxu0 0.0
    %2598 = vmatpush1.msra.mxu0 0.0
    %2599 = vmatprep.subr.mxu0 0.0
    %2600 = vmatpush1.msra.mxu0 0.0
    %2601 = vmatprep.subr.mxu0 0.0
    %2602 = vmatpush1.msra.mxu0 0.0
    %2603 = vmatprep.subr.mxu0 0.0
    %2604 = vmatpush1.msra.mxu0 0.0
    %2605 = vmatprep.subr.mxu0 0.0
    %2606 = vmatpush1.msra.mxu0 0.0
    %2607 = vmatprep.subr.mxu0 0.0
    %2608 = vmatpush1.msra.mxu0 0.0
    %2609 = vmatprep.subr.mxu0 0.0
    %2610 = vmatpush1.msra.mxu0 0.0
    %2611 = vmatprep.subr.mxu0 0.0
    %2612 = vmatpush1.msra.mxu0 0.0
    %2613 = vmatprep.subr.mxu0 0.0
    %2614 = vmatpush1.msra.mxu0 0.0
    %2615 = vmatprep.subr.mxu0 0.0
    %2616 = vmatpush1.msra.mxu0 0.0
    %2617 = vmatprep.subr.mxu0 0.0
    %2618 = vmatpush1.msra.mxu0 0.0
    %2619 = vmatprep.subr.mxu0 0.0
    %2620 = vmatpush1.msra.mxu0 0.0
    %2621 = vmatprep.subr.mxu0 0.0
    %2622 = vmatpush1.msra.mxu0 0.0
    %2623 = vmatprep.subr.mxu0 0.0
    %2624 = vmatpush1.msra.mxu0 0.0
    %2625 = vmatprep.subr.mxu0 0.0
    %2626 = vmatpush1.msra.mxu0 0.0
    %2627 = vmatprep.subr.mxu0 0.0
    %2628 = vmatpush1.msra.mxu0 0.0
    %2629 = vmatprep.subr.mxu0 0.0
    %2630 = vmatpush1.msra.mxu0 0.0
    %2631 = vmatprep.subr.mxu0 0.0
    %2632 = vmatpush1.msra.mxu0 0.0
    %2633 = vmatprep.subr.mxu0 0.0
    %2634 = vmatpush1.msra.mxu0 0.0
    %2635 = vmatprep.subr.mxu0 0.0
    %2636 = vmatpush1.msra.mxu0 0.0
    %2637 = vmatprep.mubr.f32.mxu0 0.0
    %2638 = vmatmul.mubr.f32.gmra.mrb[0].mxu0 %v2571
    %v2639 = vpop.f32.mrb[0].mxu0
    %v2640 = vadd.f32 %v2225, %v2639
    %v2641 = vpop.f32.mrb[0].mxu0
    %2642 = vdwg.mxu0
    %v2643 = vsel %vm2302, %v2640, -inf
    %2644 = vmax.xlane.f32.xlu0 %v2643
    %v2645 = vpop.xlane.xlu0 %2644
    %vm2646 = vcmp.eq.f32.partialorder %v2640, %v2645
    %v2647 = vsel %vm2646, %v246, 16
    %v2648 = vsel %vm2302, %v2647, 2147483647
    %v2649 = vand.u32 %v2648, 65535
    %v2650 = vshra.s32 %v2648, 16
    %v2651 = vcvt.s32.f32 %v2649
    %v2652 = vcvt.s32.f32 %v2650
    %2653 = vmin.xlane.f32.xlu0 %v2652
    %v2654 = vpop.xlane.xlu0 %2653
    %vm2655 = vcmp.eq.f32.partialorder %v2652, %v2654
    %v2656 = vsel %vm2655, %v2651, inf
    %2657 = vmin.xlane.f32.xlu0 %v2656
    %v2658 = vpop.xlane.xlu0 %2657
    %v2659 = vcvt.f32.s32 %v2658
    %v2660 = vcvt.f32.s32 %v2654
    %v2661 = vshll.u32 %v2660, 16
    %v2662 = vadd.s32 %v2661, %v2659
    %vm2663 = vcmp.eq.s32.totalorder %v2662, %v246
    %v2664 = vsel %vm2663, 1, 0
    %v2665 = vcvt.s32.f32 %v2664
    %v2667 = vsel %vm253, %v2665, 0
    %2669 = vmatprep.subr.mxu0 0.0
    %2670 = vmatpush1.msra.mxu0 %v229
    %2671 = vmatprep.subr.mxu0 0.0
    %2672 = vmatpush1.msra.mxu0 %v230
    %2673 = vmatprep.subr.mxu0 0.0
    %2674 = vmatpush1.msra.mxu0 0.0
    %2675 = vmatprep.subr.mxu0 0.0
    %2676 = vmatpush1.msra.mxu0 0.0
    %2677 = vmatprep.subr.mxu0 0.0
    %2678 = vmatpush1.msra.mxu0 0.0
    %2679 = vmatprep.subr.mxu0 0.0
    %2680 = vmatpush1.msra.mxu0 0.0
    %2681 = vmatprep.subr.mxu0 0.0
    %2682 = vmatpush1.msra.mxu0 0.0
    %2683 = vmatprep.subr.mxu0 0.0
    %2684 = vmatpush1.msra.mxu0 0.0
    %2685 = vmatprep.subr.mxu0 0.0
    %2686 = vmatpush1.msra.mxu0 0.0
    %2687 = vmatprep.subr.mxu0 0.0
    %2688 = vmatpush1.msra.mxu0 0.0
    %2689 = vmatprep.subr.mxu0 0.0
    %2690 = vmatpush1.msra.mxu0 0.0
    %2691 = vmatprep.subr.mxu0 0.0
    %2692 = vmatpush1.msra.mxu0 0.0
    %2693 = vmatprep.subr.mxu0 0.0
    %2694 = vmatpush1.msra.mxu0 0.0
    %2695 = vmatprep.subr.mxu0 0.0
    %2696 = vmatpush1.msra.mxu0 0.0
    %2697 = vmatprep.subr.mxu0 0.0
    %2698 = vmatpush1.msra.mxu0 0.0
    %2699 = vmatprep.subr.mxu0 0.0
    %2700 = vmatpush1.msra.mxu0 0.0
    %2701 = vmatprep.subr.mxu0 0.0
    %2702 = vmatpush1.msra.mxu0 0.0
    %2703 = vmatprep.subr.mxu0 0.0
    %2704 = vmatpush1.msra.mxu0 0.0
    %2705 = vmatprep.subr.mxu0 0.0
    %2706 = vmatpush1.msra.mxu0 0.0
    %2707 = vmatprep.subr.mxu0 0.0
    %2708 = vmatpush1.msra.mxu0 0.0
    %2709 = vmatprep.subr.mxu0 0.0
    %2710 = vmatpush1.msra.mxu0 0.0
    %2711 = vmatprep.subr.mxu0 0.0
    %2712 = vmatpush1.msra.mxu0 0.0
    %2713 = vmatprep.subr.mxu0 0.0
    %2714 = vmatpush1.msra.mxu0 0.0
    %2715 = vmatprep.subr.mxu0 0.0
    %2716 = vmatpush1.msra.mxu0 0.0
    %2717 = vmatprep.subr.mxu0 0.0
    %2718 = vmatpush1.msra.mxu0 0.0
    %2719 = vmatprep.subr.mxu0 0.0
    %2720 = vmatpush1.msra.mxu0 0.0
    %2721 = vmatprep.subr.mxu0 0.0
    %2722 = vmatpush1.msra.mxu0 0.0
    %2723 = vmatprep.subr.mxu0 0.0
    %2724 = vmatpush1.msra.mxu0 0.0
    %2725 = vmatprep.subr.mxu0 0.0
    %2726 = vmatpush1.msra.mxu0 0.0
    %2727 = vmatprep.subr.mxu0 0.0
    %2728 = vmatpush1.msra.mxu0 0.0
    %2729 = vmatprep.subr.mxu0 0.0
    %2730 = vmatpush1.msra.mxu0 0.0
    %2731 = vmatprep.subr.mxu0 0.0
    %2732 = vmatpush1.msra.mxu0 0.0
    %2733 = vmatprep.mubr.f32.mxu0 0.0
    %2734 = vmatmul.mubr.f32.gmra.mrb[0].mxu0 %v2667
    %v2735 = vpop.f32.mrb[0].mxu0
    %v2736 = vadd.f32 0.0, %v2735
    %v2737 = vpop.f32.mrb[0].mxu0
    %2738 = vdwg.mxu0
    %v2740 = vsel %vm253, %v2736, 0
    %2742 = vmatprep.subr.mxu0 0.0
    %2743 = vmatpush1.msra.mxu0 %v231
    %2744 = vmatprep.subr.mxu0 0.0
    %2745 = vmatpush1.msra.mxu0 %v232
    %2746 = vmatprep.subr.mxu0 0.0
    %2747 = vmatpush1.msra.mxu0 0.0
    %2748 = vmatprep.subr.mxu0 0.0
    %2749 = vmatpush1.msra.mxu0 0.0
    %2750 = vmatprep.subr.mxu0 0.0
    %2751 = vmatpush1.msra.mxu0 0.0
    %2752 = vmatprep.subr.mxu0 0.0
    %2753 = vmatpush1.msra.mxu0 0.0
    %2754 = vmatprep.subr.mxu0 0.0
    %2755 = vmatpush1.msra.mxu0 0.0
    %2756 = vmatprep.subr.mxu0 0.0
    %2757 = vmatpush1.msra.mxu0 0.0
    %2758 = vmatprep.subr.mxu0 0.0
    %2759 = vmatpush1.msra.mxu0 0.0
    %2760 = vmatprep.subr.mxu0 0.0
    %2761 = vmatpush1.msra.mxu0 0.0
    %2762 = vmatprep.subr.mxu0 0.0
    %2763 = vmatpush1.msra.mxu0 0.0
    %2764 = vmatprep.subr.mxu0 0.0
    %2765 = vmatpush1.msra.mxu0 0.0
    %2766 = vmatprep.subr.mxu0 0.0
    %2767 = vmatpush1.msra.mxu0 0.0
    %2768 = vmatprep.subr.mxu0 0.0
    %2769 = vmatpush1.msra.mxu0 0.0
    %2770 = vmatprep.subr.mxu0 0.0
    %2771 = vmatpush1.msra.mxu0 0.0
    %2772 = vmatprep.subr.mxu0 0.0
    %2773 = vmatpush1.msra.mxu0 0.0
    %2774 = vmatprep.subr.mxu0 0.0
    %2775 = vmatpush1.msra.mxu0 0.0
    %2776 = vmatprep.subr.mxu0 0.0
    %2777 = vmatpush1.msra.mxu0 0.0
    %2778 = vmatprep.subr.mxu0 0.0
    %2779 = vmatpush1.msra.mxu0 0.0
    %2780 = vmatprep.subr.mxu0 0.0
    %2781 = vmatpush1.msra.mxu0 0.0
    %2782 = vmatprep.subr.mxu0 0.0
    %2783 = vmatpush1.msra.mxu0 0.0
    %2784 = vmatprep.subr.mxu0 0.0
    %2785 = vmatpush1.msra.mxu0 0.0
    %2786 = vmatprep.subr.mxu0 0.0
    %2787 = vmatpush1.msra.mxu0 0.0
    %2788 = vmatprep.subr.mxu0 0.0
    %2789 = vmatpush1.msra.mxu0 0.0
    %2790 = vmatprep.subr.mxu0 0.0
    %2791 = vmatpush1.msra.mxu0 0.0
    %2792 = vmatprep.subr.mxu0 0.0
    %2793 = vmatpush1.msra.mxu0 0.0
    %2794 = vmatprep.subr.mxu0 0.0
    %2795 = vmatpush1.msra.mxu0 0.0
    %2796 = vmatprep.subr.mxu0 0.0
    %2797 = vmatpush1.msra.mxu0 0.0
    %2798 = vmatprep.subr.mxu0 0.0
    %2799 = vmatpush1.msra.mxu0 0.0
    %2800 = vmatprep.subr.mxu0 0.0
    %2801 = vmatpush1.msra.mxu0 0.0
    %2802 = vmatprep.subr.mxu0 0.0
    %2803 = vmatpush1.msra.mxu0 0.0
    %2804 = vmatprep.subr.mxu0 0.0
    %2805 = vmatpush1.msra.mxu0 0.0
    %2806 = vmatprep.mubr.f32.mxu0 0.0
    %2807 = vmatmul.mubr.f32.gmra.mrb[0].mxu0 %v2740
    %v2808 = vpop.f32.mrb[0].mxu0
    %v2809 = vadd.f32 %v2038, %v2808
    %v2810 = vpop.f32.mrb[0].mxu0
    %2811 = vdwg.mxu0
    %2812 = vmatprep.subr.mxu0 0.0
    %2813 = vmatpush1.msra.mxu0 %v233
    %2814 = vmatprep.subr.mxu0 0.0
    %2815 = vmatpush1.msra.mxu0 %v234
    %2816 = vmatprep.subr.mxu0 0.0
    %2817 = vmatpush1.msra.mxu0 %v235
    %2818 = vmatprep.subr.mxu0 0.0
    %2819 = vmatpush1.msra.mxu0 %v236
    %2820 = vmatprep.subr.mxu0 0.0
    %2821 = vmatpush1.msra.mxu0 0.0
    %2822 = vmatprep.subr.mxu0 0.0
    %2823 = vmatpush1.msra.mxu0 0.0
    %2824 = vmatprep.subr.mxu0 0.0
    %2825 = vmatpush1.msra.mxu0 0.0
    %2826 = vmatprep.subr.mxu0 0.0
    %2827 = vmatpush1.msra.mxu0 0.0
    %2828 = vmatprep.subr.mxu0 0.0
    %2829 = vmatpush1.msra.mxu0 0.0
    %2830 = vmatprep.subr.mxu0 0.0
    %2831 = vmatpush1.msra.mxu0 0.0
    %2832 = vmatprep.subr.mxu0 0.0
    %2833 = vmatpush1.msra.mxu0 0.0
    %2834 = vmatprep.subr.mxu0 0.0
    %2835 = vmatpush1.msra.mxu0 0.0
    %2836 = vmatprep.subr.mxu0 0.0
    %2837 = vmatpush1.msra.mxu0 0.0
    %2838 = vmatprep.subr.mxu0 0.0
    %2839 = vmatpush1.msra.mxu0 0.0
    %2840 = vmatprep.subr.mxu0 0.0
    %2841 = vmatpush1.msra.mxu0 0.0
    %2842 = vmatprep.subr.mxu0 0.0
    %2843 = vmatpush1.msra.mxu0 0.0
    %2844 = vmatprep.subr.mxu0 0.0
    %2845 = vmatpush1.msra.mxu0 0.0
    %2846 = vmatprep.subr.mxu0 0.0
    %2847 = vmatpush1.msra.mxu0 0.0
    %2848 = vmatprep.subr.mxu0 0.0
    %2849 = vmatpush1.msra.mxu0 0.0
    %2850 = vmatprep.subr.mxu0 0.0
    %2851 = vmatpush1.msra.mxu0 0.0
    %2852 = vmatprep.subr.mxu0 0.0
    %2853 = vmatpush1.msra.mxu0 0.0
    %2854 = vmatprep.subr.mxu0 0.0
    %2855 = vmatpush1.msra.mxu0 0.0
    %2856 = vmatprep.subr.mxu0 0.0
    %2857 = vmatpush1.msra.mxu0 0.0
    %2858 = vmatprep.subr.mxu0 0.0
    %2859 = vmatpush1.msra.mxu0 0.0
    %2860 = vmatprep.subr.mxu0 0.0
    %2861 = vmatpush1.msra.mxu0 0.0
    %2862 = vmatprep.subr.mxu0 0.0
    %2863 = vmatpush1.msra.mxu0 0.0
    %2864 = vmatprep.subr.mxu0 0.0
    %2865 = vmatpush1.msra.mxu0 0.0
    %2866 = vmatprep.subr.mxu0 0.0
    %2867 = vmatpush1.msra.mxu0 0.0
    %2868 = vmatprep.subr.mxu0 0.0
    %2869 = vmatpush1.msra.mxu0 0.0
    %2870 = vmatprep.subr.mxu0 0.0
    %2871 = vmatpush1.msra.mxu0 0.0
    %2872 = vmatprep.subr.mxu0 0.0
    %2873 = vmatpush1.msra.mxu0 0.0
    %2874 = vmatprep.subr.mxu0 0.0
    %2875 = vmatpush1.msra.mxu0 0.0
    %2876 = vmatprep.mubr.f32.mxu0 0.0
    %2877 = vmatmul.mubr.f32.gmra.mrb[0].mxu0 %v2571
    %v2878 = vpop.f32.mrb[0].mxu0
    %v2879 = vadd.f32 %v2117, %v2878
    %v2880 = vpop.f32.mrb[0].mxu0
    %2881 = vdwg.mxu0
    %v2882 = vadd.f32 %v2809, %v2879
    %v2883 = vxor.u32 %v2882, 2147483648
    %v2884 = vmul.f32 %v2883, 1.442695
    %v2885 = vpow.pop %v2884
    %v2886 = vadd.f32 %v2885, 1.0
    %v2887 = vrcp.pop %v2886
    %v2888 = vmul.f32 1.0, %v2887
    %2890 = vrot.lane.b32.xlu0 %v2879, 64
    %v2891 = vpop.permute.xlu0 %2890
    %v2893 = vmul.f32 %v2888, %v2891
    %2895 = vrot.lane.b32.xlu0 %v2893, 64
    %v2896 = vpop.permute.xlu0 %2895
    %v2898 = vadd.f32 %v2809, %v2896
    %v2899 = vtanh.pop %v2898
    %v2900 = vsub.f32 1.0, %v2888
    %2902 = vrot.lane.b32.xlu0 %v2899, 96
    %v2903 = vpop.permute.xlu0 %2902
    %v2905 = vmul.f32 %v2900, %v2903
    %v2906 = vmul.f32 %v2888, %v2567
    %v2907 = vadd.f32 %v2905, %v2906
    %2909 = vrot.lane.b32.xlu0 %v2907, 96
    %v2910 = vpop.permute.xlu0 %2909
    %v2911 = vsel %vm412, %v2910, 0
    %2913 = vmatprep.subr.mxu0 0.0
    %2914 = vmatpush1.msra.mxu0 %v239
    %2915 = vmatprep.subr.mxu0 0.0
    %2916 = vmatpush1.msra.mxu0 %v240
    %2917 = vmatprep.subr.mxu0 0.0
    %2918 = vmatpush1.msra.mxu0 %v241
    %2919 = vmatprep.subr.mxu0 0.0
    %2920 = vmatpush1.msra.mxu0 %v242
    %2921 = vmatprep.subr.mxu0 0.0
    %2922 = vmatpush1.msra.mxu0 0.0
    %2923 = vmatprep.subr.mxu0 0.0
    %2924 = vmatpush1.msra.mxu0 0.0
    %2925 = vmatprep.subr.mxu0 0.0
    %2926 = vmatpush1.msra.mxu0 0.0
    %2927 = vmatprep.subr.mxu0 0.0
    %2928 = vmatpush1.msra.mxu0 0.0
    %2929 = vmatprep.subr.mxu0 0.0
    %2930 = vmatpush1.msra.mxu0 0.0
    %2931 = vmatprep.subr.mxu0 0.0
    %2932 = vmatpush1.msra.mxu0 0.0
    %2933 = vmatprep.subr.mxu0 0.0
    %2934 = vmatpush1.msra.mxu0 0.0
    %2935 = vmatprep.subr.mxu0 0.0
    %2936 = vmatpush1.msra.mxu0 0.0
    %2937 = vmatprep.subr.mxu0 0.0
    %2938 = vmatpush1.msra.mxu0 0.0
    %2939 = vmatprep.subr.mxu0 0.0
    %2940 = vmatpush1.msra.mxu0 0.0
    %2941 = vmatprep.subr.mxu0 0.0
    %2942 = vmatpush1.msra.mxu0 0.0
    %2943 = vmatprep.subr.mxu0 0.0
    %2944 = vmatpush1.msra.mxu0 0.0
    %2945 = vmatprep.subr.mxu0 0.0
    %2946 = vmatpush1.msra.mxu0 0.0
    %2947 = vmatprep.subr.mxu0 0.0
    %2948 = vmatpush1.msra.mxu0 0.0
    %2949 = vmatprep.subr.mxu0 0.0
    %2950 = vmatpush1.msra.mxu0 0.0
    %2951 = vmatprep.subr.mxu0 0.0
    %2952 = vmatpush1.msra.mxu0 0.0
    %2953 = vmatprep.subr.mxu0 0.0
    %2954 = vmatpush1.msra.mxu0 0.0
    %2955 = vmatprep.subr.mxu0 0.0
    %2956 = vmatpush1.msra.mxu0 0.0
    %2957 = vmatprep.subr.mxu0 0.0
    %2958 = vmatpush1.msra.mxu0 0.0
    %2959 = vmatprep.subr.mxu0 0.0
    %2960 = vmatpush1.msra.mxu0 0.0
    %2961 = vmatprep.subr.mxu0 0.0
    %2962 = vmatpush1.msra.mxu0 0.0
    %2963 = vmatprep.subr.mxu0 0.0
    %2964 = vmatpush1.msra.mxu0 0.0
    %2965 = vmatprep.subr.mxu0 0.0
    %2966 = vmatpush1.msra.mxu0 0.0
    %2967 = vmatprep.subr.mxu0 0.0
    %2968 = vmatpush1.msra.mxu0 0.0
    %2969 = vmatprep.subr.mxu0 0.0
    %2970 = vmatpush1.msra.mxu0 0.0
    %2971 = vmatprep.subr.mxu0 0.0
    %2972 = vmatpush1.msra.mxu0 0.0
    %2973 = vmatprep.subr.mxu0 0.0
    %2974 = vmatpush1.msra.mxu0 0.0
    %2975 = vmatprep.subr.mxu0 0.0
    %2976 = vmatpush1.msra.mxu0 0.0
    %2977 = vmatprep.mubr.f32.mxu0 0.0
    %2978 = vmatmul.mubr.f32.gmra.mrb[0].mxu0 %v2911
    %v2979 = vpop.f32.mrb[0].mxu0
    %v2980 = vadd.f32 %v2225, %v2979
    %v2981 = vpop.f32.mrb[0].mxu0
    %2982 = vdwg.mxu0
    %v2983 = vsel %vm2302, %v2980, -inf
    %2984 = vmax.xlane.f32.xlu0 %v2983
    %v2985 = vpop.xlane.xlu0 %2984
    %vm2986 = vcmp.eq.f32.partialorder %v2980, %v2985
    %v2987 = vsel %vm2986, %v246, 16
    %v2988 = vsel %vm2302, %v2987, 2147483647
    %v2989 = vand.u32 %v2988, 65535
    %v2990 = vshra.s32 %v2988, 16
    %v2991 = vcvt.s32.f32 %v2989
    %v2992 = vcvt.s32.f32 %v2990
    %2993 = vmin.xlane.f32.xlu0 %v2992
    %v2994 = vpop.xlane.xlu0 %2993
    %vm2995 = vcmp.eq.f32.partialorder %v2992, %v2994
    %v2996 = vsel %vm2995, %v2991, inf
    %2997 = vmin.xlane.f32.xlu0 %v2996
    %v2998 = vpop.xlane.xlu0 %2997
    %v2999 = vcvt.f32.s32 %v2998
    %v3000 = vcvt.f32.s32 %v2994
    %v3001 = vshll.u32 %v3000, 16
    %v3002 = vadd.s32 %v3001, %v2999
    %vm3003 = vcmp.eq.s32.totalorder %v3002, %v246
    %v3004 = vsel %vm3003, 1, 0
    %v3005 = vcvt.s32.f32 %v3004
    %v3007 = vsel %vm253, %v3005, 0
    %3009 = vmatprep.subr.mxu0 0.0
    %3010 = vmatpush1.msra.mxu0 %v229
    %3011 = vmatprep.subr.mxu0 0.0
    %3012 = vmatpush1.msra.mxu0 %v230
    %3013 = vmatprep.subr.mxu0 0.0
    %3014 = vmatpush1.msra.mxu0 0.0
    %3015 = vmatprep.subr.mxu0 0.0
    %3016 = vmatpush1.msra.mxu0 0.0
    %3017 = vmatprep.subr.mxu0 0.0
    %3018 = vmatpush1.msra.mxu0 0.0
    %3019 = vmatprep.subr.mxu0 0.0
    %3020 = vmatpush1.msra.mxu0 0.0
    %3021 = vmatprep.subr.mxu0 0.0
    %3022 = vmatpush1.msra.mxu0 0.0
    %3023 = vmatprep.subr.mxu0 0.0
    %3024 = vmatpush1.msra.mxu0 0.0
    %3025 = vmatprep.subr.mxu0 0.0
    %3026 = vmatpush1.msra.mxu0 0.0
    %3027 = vmatprep.subr.mxu0 0.0
    %3028 = vmatpush1.msra.mxu0 0.0
    %3029 = vmatprep.subr.mxu0 0.0
    %3030 = vmatpush1.msra.mxu0 0.0
    %3031 = vmatprep.subr.mxu0 0.0
    %3032 = vmatpush1.msra.mxu0 0.0
    %3033 = vmatprep.subr.mxu0 0.0
    %3034 = vmatpush1.msra.mxu0 0.0
    %3035 = vmatprep.subr.mxu0 0.0
    %3036 = vmatpush1.msra.mxu0 0.0
    %3037 = vmatprep.subr.mxu0 0.0
    %3038 = vmatpush1.msra.mxu0 0.0
    %3039 = vmatprep.subr.mxu0 0.0
    %3040 = vmatpush1.msra.mxu0 0.0
    %3041 = vmatprep.subr.mxu0 0.0
    %3042 = vmatpush1.msra.mxu0 0.0
    %3043 = vmatprep.subr.mxu0 0.0
    %3044 = vmatpush1.msra.mxu0 0.0
    %3045 = vmatprep.subr.mxu0 0.0
    %3046 = vmatpush1.msra.mxu0 0.0
    %3047 = vmatprep.subr.mxu0 0.0
    %3048 = vmatpush1.msra.mxu0 0.0
    %3049 = vmatprep.subr.mxu0 0.0
    %3050 = vmatpush1.msra.mxu0 0.0
    %3051 = vmatprep.subr.mxu0 0.0
    %3052 = vmatpush1.msra.mxu0 0.0
    %3053 = vmatprep.subr.mxu0 0.0
    %3054 = vmatpush1.msra.mxu0 0.0
    %3055 = vmatprep.subr.mxu0 0.0
    %3056 = vmatpush1.msra.mxu0 0.0
    %3057 = vmatprep.subr.mxu0 0.0
    %3058 = vmatpush1.msra.mxu0 0.0
    %3059 = vmatprep.subr.mxu0 0.0
    %3060 = vmatpush1.msra.mxu0 0.0
    %3061 = vmatprep.subr.mxu0 0.0
    %3062 = vmatpush1.msra.mxu0 0.0
    %3063 = vmatprep.subr.mxu0 0.0
    %3064 = vmatpush1.msra.mxu0 0.0
    %3065 = vmatprep.subr.mxu0 0.0
    %3066 = vmatpush1.msra.mxu0 0.0
    %3067 = vmatprep.subr.mxu0 0.0
    %3068 = vmatpush1.msra.mxu0 0.0
    %3069 = vmatprep.subr.mxu0 0.0
    %3070 = vmatpush1.msra.mxu0 0.0
    %3071 = vmatprep.subr.mxu0 0.0
    %3072 = vmatpush1.msra.mxu0 0.0
    %3073 = vmatprep.mubr.f32.mxu0 0.0
    %3074 = vmatmul.mubr.f32.gmra.mrb[0].mxu0 %v3007
    %v3075 = vpop.f32.mrb[0].mxu0
    %v3076 = vadd.f32 0.0, %v3075
    %v3077 = vpop.f32.mrb[0].mxu0
    %3078 = vdwg.mxu0
    %v3080 = vsel %vm253, %v3076, 0
    %3082 = vmatprep.subr.mxu0 0.0
    %3083 = vmatpush1.msra.mxu0 %v231
    %3084 = vmatprep.subr.mxu0 0.0
    %3085 = vmatpush1.msra.mxu0 %v232
    %3086 = vmatprep.subr.mxu0 0.0
    %3087 = vmatpush1.msra.mxu0 0.0
    %3088 = vmatprep.subr.mxu0 0.0
    %3089 = vmatpush1.msra.mxu0 0.0
    %3090 = vmatprep.subr.mxu0 0.0
    %3091 = vmatpush1.msra.mxu0 0.0
    %3092 = vmatprep.subr.mxu0 0.0
    %3093 = vmatpush1.msra.mxu0 0.0
    %3094 = vmatprep.subr.mxu0 0.0
    %3095 = vmatpush1.msra.mxu0 0.0
    %3096 = vmatprep.subr.mxu0 0.0
    %3097 = vmatpush1.msra.mxu0 0.0
    %3098 = vmatprep.subr.mxu0 0.0
    %3099 = vmatpush1.msra.mxu0 0.0
    %3100 = vmatprep.subr.mxu0 0.0
    %3101 = vmatpush1.msra.mxu0 0.0
    %3102 = vmatprep.subr.mxu0 0.0
    %3103 = vmatpush1.msra.mxu0 0.0
    %3104 = vmatprep.subr.mxu0 0.0
    %3105 = vmatpush1.msra.mxu0 0.0
    %3106 = vmatprep.subr.mxu0 0.0
    %3107 = vmatpush1.msra.mxu0 0.0
    %3108 = vmatprep.subr.mxu0 0.0
    %3109 = vmatpush1.msra.mxu0 0.0
    %3110 = vmatprep.subr.mxu0 0.0
    %3111 = vmatpush1.msra.mxu0 0.0
    %3112 = vmatprep.subr.mxu0 0.0
    %3113 = vmatpush1.msra.mxu0 0.0
    %3114 = vmatprep.subr.mxu0 0.0
    %3115 = vmatpush1.msra.mxu0 0.0
    %3116 = vmatprep.subr.mxu0 0.0
    %3117 = vmatpush1.msra.mxu0 0.0
    %3118 = vmatprep.subr.mxu0 0.0
    %3119 = vmatpush1.msra.mxu0 0.0
    %3120 = vmatprep.subr.mxu0 0.0
    %3121 = vmatpush1.msra.mxu0 0.0
    %3122 = vmatprep.subr.mxu0 0.0
    %3123 = vmatpush1.msra.mxu0 0.0
    %3124 = vmatprep.subr.mxu0 0.0
    %3125 = vmatpush1.msra.mxu0 0.0
    %3126 = vmatprep.subr.mxu0 0.0
    %3127 = vmatpush1.msra.mxu0 0.0
    %3128 = vmatprep.subr.mxu0 0.0
    %3129 = vmatpush1.msra.mxu0 0.0
    %3130 = vmatprep.subr.mxu0 0.0
    %3131 = vmatpush1.msra.mxu0 0.0
    %3132 = vmatprep.subr.mxu0 0.0
    %3133 = vmatpush1.msra.mxu0 0.0
    %3134 = vmatprep.subr.mxu0 0.0
    %3135 = vmatpush1.msra.mxu0 0.0
    %3136 = vmatprep.subr.mxu0 0.0
    %3137 = vmatpush1.msra.mxu0 0.0
    %3138 = vmatprep.subr.mxu0 0.0
    %3139 = vmatpush1.msra.mxu0 0.0
    %3140 = vmatprep.subr.mxu0 0.0
    %3141 = vmatpush1.msra.mxu0 0.0
    %3142 = vmatprep.subr.mxu0 0.0
    %3143 = vmatpush1.msra.mxu0 0.0
    %3144 = vmatprep.subr.mxu0 0.0
    %3145 = vmatpush1.msra.mxu0 0.0
    %3146 = vmatprep.mubr.f32.mxu0 0.0
    %3147 = vmatmul.mubr.f32.gmra.mrb[0].mxu0 %v3080
    %v3148 = vpop.f32.mrb[0].mxu0
    %v3149 = vadd.f32 %v2038, %v3148
    %v3150 = vpop.f32.mrb[0].mxu0
    %3151 = vdwg.mxu0
    %3152 = vmatprep.subr.mxu0 0.0
    %3153 = vmatpush1.msra.mxu0 %v233
    %3154 = vmatprep.subr.mxu0 0.0
    %3155 = vmatpush1.msra.mxu0 %v234
    %3156 = vmatprep.subr.mxu0 0.0
    %3157 = vmatpush1.msra.mxu0 %v235
    %3158 = vmatprep.subr.mxu0 0.0
    %3159 = vmatpush1.msra.mxu0 %v236
    %3160 = vmatprep.subr.mxu0 0.0
    %3161 = vmatpush1.msra.mxu0 0.0
    %3162 = vmatprep.subr.mxu0 0.0
    %3163 = vmatpush1.msra.mxu0 0.0
    %3164 = vmatprep.subr.mxu0 0.0
    %3165 = vmatpush1.msra.mxu0 0.0
    %3166 = vmatprep.subr.mxu0 0.0
    %3167 = vmatpush1.msra.mxu0 0.0
    %3168 = vmatprep.subr.mxu0 0.0
    %3169 = vmatpush1.msra.mxu0 0.0
    %3170 = vmatprep.subr.mxu0 0.0
    %3171 = vmatpush1.msra.mxu0 0.0
    %3172 = vmatprep.subr.mxu0 0.0
    %3173 = vmatpush1.msra.mxu0 0.0
    %3174 = vmatprep.subr.mxu0 0.0
    %3175 = vmatpush1.msra.mxu0 0.0
    %3176 = vmatprep.subr.mxu0 0.0
    %3177 = vmatpush1.msra.mxu0 0.0
    %3178 = vmatprep.subr.mxu0 0.0
    %3179 = vmatpush1.msra.mxu0 0.0
    %3180 = vmatprep.subr.mxu0 0.0
    %3181 = vmatpush1.msra.mxu0 0.0
    %3182 = vmatprep.subr.mxu0 0.0
    %3183 = vmatpush1.msra.mxu0 0.0
    %3184 = vmatprep.subr.mxu0 0.0
    %3185 = vmatpush1.msra.mxu0 0.0
    %3186 = vmatprep.subr.mxu0 0.0
    %3187 = vmatpush1.msra.mxu0 0.0
    %3188 = vmatprep.subr.mxu0 0.0
    %3189 = vmatpush1.msra.mxu0 0.0
    %3190 = vmatprep.subr.mxu0 0.0
    %3191 = vmatpush1.msra.mxu0 0.0
    %3192 = vmatprep.subr.mxu0 0.0
    %3193 = vmatpush1.msra.mxu0 0.0
    %3194 = vmatprep.subr.mxu0 0.0
    %3195 = vmatpush1.msra.mxu0 0.0
    %3196 = vmatprep.subr.mxu0 0.0
    %3197 = vmatpush1.msra.mxu0 0.0
    %3198 = vmatprep.subr.mxu0 0.0
    %3199 = vmatpush1.msra.mxu0 0.0
    %3200 = vmatprep.subr.mxu0 0.0
    %3201 = vmatpush1.msra.mxu0 0.0
    %3202 = vmatprep.subr.mxu0 0.0
    %3203 = vmatpush1.msra.mxu0 0.0
    %3204 = vmatprep.subr.mxu0 0.0
    %3205 = vmatpush1.msra.mxu0 0.0
    %3206 = vmatprep.subr.mxu0 0.0
    %3207 = vmatpush1.msra.mxu0 0.0
    %3208 = vmatprep.subr.mxu0 0.0
    %3209 = vmatpush1.msra.mxu0 0.0
    %3210 = vmatprep.subr.mxu0 0.0
    %3211 = vmatpush1.msra.mxu0 0.0
    %3212 = vmatprep.subr.mxu0 0.0
    %3213 = vmatpush1.msra.mxu0 0.0
    %3214 = vmatprep.subr.mxu0 0.0
    %3215 = vmatpush1.msra.mxu0 0.0
    %3216 = vmatprep.mubr.f32.mxu0 0.0
    %3217 = vmatmul.mubr.f32.gmra.mrb[0].mxu0 %v2911
    %v3218 = vpop.f32.mrb[0].mxu0
    %v3219 = vadd.f32 %v2117, %v3218
    %v3220 = vpop.f32.mrb[0].mxu0
    %3221 = vdwg.mxu0
    %v3222 = vadd.f32 %v3149, %v3219
    %v3223 = vxor.u32 %v3222, 2147483648
    %v3224 = vmul.f32 %v3223, 1.442695
    %v3225 = vpow.pop %v3224
    %v3226 = vadd.f32 %v3225, 1.0
    %v3227 = vrcp.pop %v3226
    %v3228 = vmul.f32 1.0, %v3227
    %3230 = vrot.lane.b32.xlu0 %v3219, 64
    %v3231 = vpop.permute.xlu0 %3230
    %v3233 = vmul.f32 %v3228, %v3231
    %3235 = vrot.lane.b32.xlu0 %v3233, 64
    %v3236 = vpop.permute.xlu0 %3235
    %v3238 = vadd.f32 %v3149, %v3236
    %v3239 = vtanh.pop %v3238
    %v3240 = vsub.f32 1.0, %v3228
    %3242 = vrot.lane.b32.xlu0 %v3239, 96
    %v3243 = vpop.permute.xlu0 %3242
    %v3245 = vmul.f32 %v3240, %v3243
    %v3246 = vmul.f32 %v3228, %v2907
    %v3247 = vadd.f32 %v3245, %v3246
    %3249 = vrot.lane.b32.xlu0 %v3247, 96
    %v3250 = vpop.permute.xlu0 %3249
    %v3251 = vsel %vm412, %v3250, 0
    %3253 = vmatprep.subr.mxu0 0.0
    %3254 = vmatpush1.msra.mxu0 %v239
    %3255 = vmatprep.subr.mxu0 0.0
    %3256 = vmatpush1.msra.mxu0 %v240
    %3257 = vmatprep.subr.mxu0 0.0
    %3258 = vmatpush1.msra.mxu0 %v241
    %3259 = vmatprep.subr.mxu0 0.0
    %3260 = vmatpush1.msra.mxu0 %v242
    %3261 = vmatprep.subr.mxu0 0.0
    %3262 = vmatpush1.msra.mxu0 0.0
    %3263 = vmatprep.subr.mxu0 0.0
    %3264 = vmatpush1.msra.mxu0 0.0
    %3265 = vmatprep.subr.mxu0 0.0
    %3266 = vmatpush1.msra.mxu0 0.0
    %3267 = vmatprep.subr.mxu0 0.0
    %3268 = vmatpush1.msra.mxu0 0.0
    %3269 = vmatprep.subr.mxu0 0.0
    %3270 = vmatpush1.msra.mxu0 0.0
    %3271 = vmatprep.subr.mxu0 0.0
    %3272 = vmatpush1.msra.mxu0 0.0
    %3273 = vmatprep.subr.mxu0 0.0
    %3274 = vmatpush1.msra.mxu0 0.0
    %3275 = vmatprep.subr.mxu0 0.0
    %3276 = vmatpush1.msra.mxu0 0.0
    %3277 = vmatprep.subr.mxu0 0.0
    %3278 = vmatpush1.msra.mxu0 0.0
    %3279 = vmatprep.subr.mxu0 0.0
    %3280 = vmatpush1.msra.mxu0 0.0
    %3281 = vmatprep.subr.mxu0 0.0
    %3282 = vmatpush1.msra.mxu0 0.0
    %3283 = vmatprep.subr.mxu0 0.0
    %3284 = vmatpush1.msra.mxu0 0.0
    %3285 = vmatprep.subr.mxu0 0.0
    %3286 = vmatpush1.msra.mxu0 0.0
    %3287 = vmatprep.subr.mxu0 0.0
    %3288 = vmatpush1.msra.mxu0 0.0
    %3289 = vmatprep.subr.mxu0 0.0
    %3290 = vmatpush1.msra.mxu0 0.0
    %3291 = vmatprep.subr.mxu0 0.0
    %3292 = vmatpush1.msra.mxu0 0.0
    %3293 = vmatprep.subr.mxu0 0.0
    %3294 = vmatpush1.msra.mxu0 0.0
    %3295 = vmatprep.subr.mxu0 0.0
    %3296 = vmatpush1.msra.mxu0 0.0
    %3297 = vmatprep.subr.mxu0 0.0
    %3298 = vmatpush1.msra.mxu0 0.0
    %3299 = vmatprep.subr.mxu0 0.0
    %3300 = vmatpush1.msra.mxu0 0.0
    %3301 = vmatprep.subr.mxu0 0.0
    %3302 = vmatpush1.msra.mxu0 0.0
    %3303 = vmatprep.subr.mxu0 0.0
    %3304 = vmatpush1.msra.mxu0 0.0
    %3305 = vmatprep.subr.mxu0 0.0
    %3306 = vmatpush1.msra.mxu0 0.0
    %3307 = vmatprep.subr.mxu0 0.0
    %3308 = vmatpush1.msra.mxu0 0.0
    %3309 = vmatprep.subr.mxu0 0.0
    %3310 = vmatpush1.msra.mxu0 0.0
    %3311 = vmatprep.subr.mxu0 0.0
    %3312 = vmatpush1.msra.mxu0 0.0
    %3313 = vmatprep.subr.mxu0 0.0
    %3314 = vmatpush1.msra.mxu0 0.0
    %3315 = vmatprep.subr.mxu0 0.0
    %3316 = vmatpush1.msra.mxu0 0.0
    %3317 = vmatprep.mubr.f32.mxu0 0.0
    %3318 = vmatmul.mubr.f32.gmra.mrb[0].mxu0 %v3251
    %v3319 = vpop.f32.mrb[0].mxu0
    %v3320 = vadd.f32 %v2225, %v3319
    %v3321 = vpop.f32.mrb[0].mxu0
    %3322 = vdwg.mxu0
    %v3323 = vsel %vm2302, %v3320, -inf
    %3324 = vmax.xlane.f32.xlu0 %v3323
    %v3325 = vpop.xlane.xlu0 %3324
    %vm3326 = vcmp.eq.f32.partialorder %v3320, %v3325
    %v3327 = vsel %vm3326, %v246, 16
    %v3328 = vsel %vm2302, %v3327, 2147483647
    %v3329 = vand.u32 %v3328, 65535
    %v3330 = vshra.s32 %v3328, 16
    %v3331 = vcvt.s32.f32 %v3329
    %v3332 = vcvt.s32.f32 %v3330
    %3333 = vmin.xlane.f32.xlu0 %v3332
    %v3334 = vpop.xlane.xlu0 %3333
    %vm3335 = vcmp.eq.f32.partialorder %v3332, %v3334
    %v3336 = vsel %vm3335, %v3331, inf
    %3337 = vmin.xlane.f32.xlu0 %v3336
    %v3338 = vpop.xlane.xlu0 %3337
    %v3339 = vcvt.f32.s32 %v3338
    %v3340 = vcvt.f32.s32 %v3334
    %v3341 = vshll.u32 %v3340, 16
    %v3342 = vadd.s32 %v3341, %v3339
    %vm3343 = vcmp.eq.s32.totalorder %v3342, %v246
    %v3344 = vsel %vm3343, 1, 0
    %v3345 = vcvt.s32.f32 %v3344
    %v3347 = vsel %vm253, %v3345, 0
    %3349 = vmatprep.subr.mxu0 0.0
    %3350 = vmatpush1.msra.mxu0 %v229
    %3351 = vmatprep.subr.mxu0 0.0
    %3352 = vmatpush1.msra.mxu0 %v230
    %3353 = vmatprep.subr.mxu0 0.0
    %3354 = vmatpush1.msra.mxu0 0.0
    %3355 = vmatprep.subr.mxu0 0.0
    %3356 = vmatpush1.msra.mxu0 0.0
    %3357 = vmatprep.subr.mxu0 0.0
    %3358 = vmatpush1.msra.mxu0 0.0
    %3359 = vmatprep.subr.mxu0 0.0
    %3360 = vmatpush1.msra.mxu0 0.0
    %3361 = vmatprep.subr.mxu0 0.0
    %3362 = vmatpush1.msra.mxu0 0.0
    %3363 = vmatprep.subr.mxu0 0.0
    %3364 = vmatpush1.msra.mxu0 0.0
    %3365 = vmatprep.subr.mxu0 0.0
    %3366 = vmatpush1.msra.mxu0 0.0
    %3367 = vmatprep.subr.mxu0 0.0
    %3368 = vmatpush1.msra.mxu0 0.0
    %3369 = vmatprep.subr.mxu0 0.0
    %3370 = vmatpush1.msra.mxu0 0.0
    %3371 = vmatprep.subr.mxu0 0.0
    %3372 = vmatpush1.msra.mxu0 0.0
    %3373 = vmatprep.subr.mxu0 0.0
    %3374 = vmatpush1.msra.mxu0 0.0
    %3375 = vmatprep.subr.mxu0 0.0
    %3376 = vmatpush1.msra.mxu0 0.0
    %3377 = vmatprep.subr.mxu0 0.0
    %3378 = vmatpush1.msra.mxu0 0.0
    %3379 = vmatprep.subr.mxu0 0.0
    %3380 = vmatpush1.msra.mxu0 0.0
    %3381 = vmatprep.subr.mxu0 0.0
    %3382 = vmatpush1.msra.mxu0 0.0
    %3383 = vmatprep.subr.mxu0 0.0
    %3384 = vmatpush1.msra.mxu0 0.0
    %3385 = vmatprep.subr.mxu0 0.0
    %3386 = vmatpush1.msra.mxu0 0.0
    %3387 = vmatprep.subr.mxu0 0.0
    %3388 = vmatpush1.msra.mxu0 0.0
    %3389 = vmatprep.subr.mxu0 0.0
    %3390 = vmatpush1.msra.mxu0 0.0
    %3391 = vmatprep.subr.mxu0 0.0
    %3392 = vmatpush1.msra.mxu0 0.0
    %3393 = vmatprep.subr.mxu0 0.0
    %3394 = vmatpush1.msra.mxu0 0.0
    %3395 = vmatprep.subr.mxu0 0.0
    %3396 = vmatpush1.msra.mxu0 0.0
    %3397 = vmatprep.subr.mxu0 0.0
    %3398 = vmatpush1.msra.mxu0 0.0
    %3399 = vmatprep.subr.mxu0 0.0
    %3400 = vmatpush1.msra.mxu0 0.0
    %3401 = vmatprep.subr.mxu0 0.0
    %3402 = vmatpush1.msra.mxu0 0.0
    %3403 = vmatprep.subr.mxu0 0.0
    %3404 = vmatpush1.msra.mxu0 0.0
    %3405 = vmatprep.subr.mxu0 0.0
    %3406 = vmatpush1.msra.mxu0 0.0
    %3407 = vmatprep.subr.mxu0 0.0
    %3408 = vmatpush1.msra.mxu0 0.0
    %3409 = vmatprep.subr.mxu0 0.0
    %3410 = vmatpush1.msra.mxu0 0.0
    %3411 = vmatprep.subr.mxu0 0.0
    %3412 = vmatpush1.msra.mxu0 0.0
    %3413 = vmatprep.mubr.f32.mxu0 0.0
    %3414 = vmatmul.mubr.f32.gmra.mrb[0].mxu0 %v3347
    %v3415 = vpop.f32.mrb[0].mxu0
    %v3416 = vadd.f32 0.0, %v3415
    %v3417 = vpop.f32.mrb[0].mxu0
    %3418 = vdwg.mxu0
    %v3420 = vsel %vm253, %v3416, 0
    %3422 = vmatprep.subr.mxu0 0.0
    %3423 = vmatpush1.msra.mxu0 %v231
    %3424 = vmatprep.subr.mxu0 0.0
    %3425 = vmatpush1.msra.mxu0 %v232
    %3426 = vmatprep.subr.mxu0 0.0
    %3427 = vmatpush1.msra.mxu0 0.0
    %3428 = vmatprep.subr.mxu0 0.0
    %3429 = vmatpush1.msra.mxu0 0.0
    %3430 = vmatprep.subr.mxu0 0.0
    %3431 = vmatpush1.msra.mxu0 0.0
    %3432 = vmatprep.subr.mxu0 0.0
    %3433 = vmatpush1.msra.mxu0 0.0
    %3434 = vmatprep.subr.mxu0 0.0
    %3435 = vmatpush1.msra.mxu0 0.0
    %3436 = vmatprep.subr.mxu0 0.0
    %3437 = vmatpush1.msra.mxu0 0.0
    %3438 = vmatprep.subr.mxu0 0.0
    %3439 = vmatpush1.msra.mxu0 0.0
    %3440 = vmatprep.subr.mxu0 0.0
    %3441 = vmatpush1.msra.mxu0 0.0
    %3442 = vmatprep.subr.mxu0 0.0
    %3443 = vmatpush1.msra.mxu0 0.0
    %3444 = vmatprep.subr.mxu0 0.0
    %3445 = vmatpush1.msra.mxu0 0.0
    %3446 = vmatprep.subr.mxu0 0.0
    %3447 = vmatpush1.msra.mxu0 0.0
    %3448 = vmatprep.subr.mxu0 0.0
    %3449 = vmatpush1.msra.mxu0 0.0
    %3450 = vmatprep.subr.mxu0 0.0
    %3451 = vmatpush1.msra.mxu0 0.0
    %3452 = vmatprep.subr.mxu0 0.0
    %3453 = vmatpush1.msra.mxu0 0.0
    %3454 = vmatprep.subr.mxu0 0.0
    %3455 = vmatpush1.msra.mxu0 0.0
    %3456 = vmatprep.subr.mxu0 0.0
    %3457 = vmatpush1.msra.mxu0 0.0
    %3458 = vmatprep.subr.mxu0 0.0
    %3459 = vmatpush1.msra.mxu0 0.0
    %3460 = vmatprep.subr.mxu0 0.0
    %3461 = vmatpush1.msra.mxu0 0.0
    %3462 = vmatprep.subr.mxu0 0.0
    %3463 = vmatpush1.msra.mxu0 0.0
    %3464 = vmatprep.subr.mxu0 0.0
    %3465 = vmatpush1.msra.mxu0 0.0
    %3466 = vmatprep.subr.mxu0 0.0
    %3467 = vmatpush1.msra.mxu0 0.0
    %3468 = vmatprep.subr.mxu0 0.0
    %3469 = vmatpush1.msra.mxu0 0.0
    %3470 = vmatprep.subr.mxu0 0.0
    %3471 = vmatpush1.msra.mxu0 0.0
    %3472 = vmatprep.subr.mxu0 0.0
    %3473 = vmatpush1.msra.mxu0 0.0
    %3474 = vmatprep.subr.mxu0 0.0
    %3475 = vmatpush1.msra.mxu0 0.0
    %3476 = vmatprep.subr.mxu0 0.0
    %3477 = vmatpush1.msra.mxu0 0.0
    %3478 = vmatprep.subr.mxu0 0.0
    %3479 = vmatpush1.msra.mxu0 0.0
    %3480 = vmatprep.subr.mxu0 0.0
    %3481 = vmatpush1.msra.mxu0 0.0
    %3482 = vmatprep.subr.mxu0 0.0
    %3483 = vmatpush1.msra.mxu0 0.0
    %3484 = vmatprep.subr.mxu0 0.0
    %3485 = vmatpush1.msra.mxu0 0.0
    %3486 = vmatprep.mubr.f32.mxu0 0.0
    %3487 = vmatmul.mubr.f32.gmra.mrb[0].mxu0 %v3420
    %v3488 = vpop.f32.mrb[0].mxu0
    %v3489 = vadd.f32 %v2038, %v3488
    %v3490 = vpop.f32.mrb[0].mxu0
    %3491 = vdwg.mxu0
    %3492 = vmatprep.subr.mxu0 0.0
    %3493 = vmatpush1.msra.mxu0 %v233
    %3494 = vmatprep.subr.mxu0 0.0
    %3495 = vmatpush1.msra.mxu0 %v234
    %3496 = vmatprep.subr.mxu0 0.0
    %3497 = vmatpush1.msra.mxu0 %v235
    %3498 = vmatprep.subr.mxu0 0.0
    %3499 = vmatpush1.msra.mxu0 %v236
    %3500 = vmatprep.subr.mxu0 0.0
    %3501 = vmatpush1.msra.mxu0 0.0
    %3502 = vmatprep.subr.mxu0 0.0
    %3503 = vmatpush1.msra.mxu0 0.0
    %3504 = vmatprep.subr.mxu0 0.0
    %3505 = vmatpush1.msra.mxu0 0.0
    %3506 = vmatprep.subr.mxu0 0.0
    %3507 = vmatpush1.msra.mxu0 0.0
    %3508 = vmatprep.subr.mxu0 0.0
    %3509 = vmatpush1.msra.mxu0 0.0
    %3510 = vmatprep.subr.mxu0 0.0
    %3511 = vmatpush1.msra.mxu0 0.0
    %3512 = vmatprep.subr.mxu0 0.0
    %3513 = vmatpush1.msra.mxu0 0.0
    %3514 = vmatprep.subr.mxu0 0.0
    %3515 = vmatpush1.msra.mxu0 0.0
    %3516 = vmatprep.subr.mxu0 0.0
    %3517 = vmatpush1.msra.mxu0 0.0
    %3518 = vmatprep.subr.mxu0 0.0
    %3519 = vmatpush1.msra.mxu0 0.0
    %3520 = vmatprep.subr.mxu0 0.0
    %3521 = vmatpush1.msra.mxu0 0.0
    %3522 = vmatprep.subr.mxu0 0.0
    %3523 = vmatpush1.msra.mxu0 0.0
    %3524 = vmatprep.subr.mxu0 0.0
    %3525 = vmatpush1.msra.mxu0 0.0
    %3526 = vmatprep.subr.mxu0 0.0
    %3527 = vmatpush1.msra.mxu0 0.0
    %3528 = vmatprep.subr.mxu0 0.0
    %3529 = vmatpush1.msra.mxu0 0.0
    %3530 = vmatprep.subr.mxu0 0.0
    %3531 = vmatpush1.msra.mxu0 0.0
    %3532 = vmatprep.subr.mxu0 0.0
    %3533 = vmatpush1.msra.mxu0 0.0
    %3534 = vmatprep.subr.mxu0 0.0
    %3535 = vmatpush1.msra.mxu0 0.0
    %3536 = vmatprep.subr.mxu0 0.0
    %3537 = vmatpush1.msra.mxu0 0.0
    %3538 = vmatprep.subr.mxu0 0.0
    %3539 = vmatpush1.msra.mxu0 0.0
    %3540 = vmatprep.subr.mxu0 0.0
    %3541 = vmatpush1.msra.mxu0 0.0
    %3542 = vmatprep.subr.mxu0 0.0
    %3543 = vmatpush1.msra.mxu0 0.0
    %3544 = vmatprep.subr.mxu0 0.0
    %3545 = vmatpush1.msra.mxu0 0.0
    %3546 = vmatprep.subr.mxu0 0.0
    %3547 = vmatpush1.msra.mxu0 0.0
    %3548 = vmatprep.subr.mxu0 0.0
    %3549 = vmatpush1.msra.mxu0 0.0
    %3550 = vmatprep.subr.mxu0 0.0
    %3551 = vmatpush1.msra.mxu0 0.0
    %3552 = vmatprep.subr.mxu0 0.0
    %3553 = vmatpush1.msra.mxu0 0.0
    %3554 = vmatprep.subr.mxu0 0.0
    %3555 = vmatpush1.msra.mxu0 0.0
    %3556 = vmatprep.mubr.f32.mxu0 0.0
    %3557 = vmatmul.mubr.f32.gmra.mrb[0].mxu0 %v3251
    %v3558 = vpop.f32.mrb[0].mxu0
    %v3559 = vadd.f32 %v2117, %v3558
    %v3560 = vpop.f32.mrb[0].mxu0
    %3561 = vdwg.mxu0
    %v3562 = vadd.f32 %v3489, %v3559
    %v3563 = vxor.u32 %v3562, 2147483648
    %v3564 = vmul.f32 %v3563, 1.442695
    %v3565 = vpow.pop %v3564
    %v3566 = vadd.f32 %v3565, 1.0
    %v3567 = vrcp.pop %v3566
    %v3568 = vmul.f32 1.0, %v3567
    %3570 = vrot.lane.b32.xlu0 %v3559, 64
    %v3571 = vpop.permute.xlu0 %3570
    %v3573 = vmul.f32 %v3568, %v3571
    %3575 = vrot.lane.b32.xlu0 %v3573, 64
    %v3576 = vpop.permute.xlu0 %3575
    %v3578 = vadd.f32 %v3489, %v3576
    %v3579 = vtanh.pop %v3578
    %v3580 = vsub.f32 1.0, %v3568
    %3582 = vrot.lane.b32.xlu0 %v3579, 96
    %v3583 = vpop.permute.xlu0 %3582
    %v3585 = vmul.f32 %v3580, %v3583
    %v3586 = vmul.f32 %v3568, %v3247
    %v3587 = vadd.f32 %v3585, %v3586
    %3589 = vrot.lane.b32.xlu0 %v3587, 96
    %v3590 = vpop.permute.xlu0 %3589
    %v3591 = vsel %vm412, %v3590, 0
    %3593 = vmatprep.subr.mxu0 0.0
    %3594 = vmatpush1.msra.mxu0 %v239
    %3595 = vmatprep.subr.mxu0 0.0
    %3596 = vmatpush1.msra.mxu0 %v240
    %3597 = vmatprep.subr.mxu0 0.0
    %3598 = vmatpush1.msra.mxu0 %v241
    %3599 = vmatprep.subr.mxu0 0.0
    %3600 = vmatpush1.msra.mxu0 %v242
    %3601 = vmatprep.subr.mxu0 0.0
    %3602 = vmatpush1.msra.mxu0 0.0
    %3603 = vmatprep.subr.mxu0 0.0
    %3604 = vmatpush1.msra.mxu0 0.0
    %3605 = vmatprep.subr.mxu0 0.0
    %3606 = vmatpush1.msra.mxu0 0.0
    %3607 = vmatprep.subr.mxu0 0.0
    %3608 = vmatpush1.msra.mxu0 0.0
    %3609 = vmatprep.subr.mxu0 0.0
    %3610 = vmatpush1.msra.mxu0 0.0
    %3611 = vmatprep.subr.mxu0 0.0
    %3612 = vmatpush1.msra.mxu0 0.0
    %3613 = vmatprep.subr.mxu0 0.0
    %3614 = vmatpush1.msra.mxu0 0.0
    %3615 = vmatprep.subr.mxu0 0.0
    %3616 = vmatpush1.msra.mxu0 0.0
    %3617 = vmatprep.subr.mxu0 0.0
    %3618 = vmatpush1.msra.mxu0 0.0
    %3619 = vmatprep.subr.mxu0 0.0
    %3620 = vmatpush1.msra.mxu0 0.0
    %3621 = vmatprep.subr.mxu0 0.0
    %3622 = vmatpush1.msra.mxu0 0.0
    %3623 = vmatprep.subr.mxu0 0.0
    %3624 = vmatpush1.msra.mxu0 0.0
    %3625 = vmatprep.subr.mxu0 0.0
    %3626 = vmatpush1.msra.mxu0 0.0
    %3627 = vmatprep.subr.mxu0 0.0
    %3628 = vmatpush1.msra.mxu0 0.0
    %3629 = vmatprep.subr.mxu0 0.0
    %3630 = vmatpush1.msra.mxu0 0.0
    %3631 = vmatprep.subr.mxu0 0.0
    %3632 = vmatpush1.msra.mxu0 0.0
    %3633 = vmatprep.subr.mxu0 0.0
    %3634 = vmatpush1.msra.mxu0 0.0
    %3635 = vmatprep.subr.mxu0 0.0
    %3636 = vmatpush1.msra.mxu0 0.0
    %3637 = vmatprep.subr.mxu0 0.0
    %3638 = vmatpush1.msra.mxu0 0.0
    %3639 = vmatprep.subr.mxu0 0.0
    %3640 = vmatpush1.msra.mxu0 0.0
    %3641 = vmatprep.subr.mxu0 0.0
    %3642 = vmatpush1.msra.mxu0 0.0
    %3643 = vmatprep.subr.mxu0 0.0
    %3644 = vmatpush1.msra.mxu0 0.0
    %3645 = vmatprep.subr.mxu0 0.0
    %3646 = vmatpush1.msra.mxu0 0.0
    %3647 = vmatprep.subr.mxu0 0.0
    %3648 = vmatpush1.msra.mxu0 0.0
    %3649 = vmatprep.subr.mxu0 0.0
    %3650 = vmatpush1.msra.mxu0 0.0
    %3651 = vmatprep.subr.mxu0 0.0
    %3652 = vmatpush1.msra.mxu0 0.0
    %3653 = vmatprep.subr.mxu0 0.0
    %3654 = vmatpush1.msra.mxu0 0.0
    %3655 = vmatprep.subr.mxu0 0.0
    %3656 = vmatpush1.msra.mxu0 0.0
    %3657 = vmatprep.mubr.f32.mxu0 0.0
    %3658 = vmatmul.mubr.f32.gmra.mrb[0].mxu0 %v3591
    %v3659 = vpop.f32.mrb[0].mxu0
    %v3660 = vadd.f32 %v2225, %v3659
    %v3661 = vpop.f32.mrb[0].mxu0
    %3662 = vdwg.mxu0
    %v3663 = vsel %vm2302, %v3660, -inf
    %3664 = vmax.xlane.f32.xlu0 %v3663
    %v3665 = vpop.xlane.xlu0 %3664
    %vm3666 = vcmp.eq.f32.partialorder %v3660, %v3665
    %v3667 = vsel %vm3666, %v246, 16
    %v3668 = vsel %vm2302, %v3667, 2147483647
    %v3669 = vand.u32 %v3668, 65535
    %v3670 = vshra.s32 %v3668, 16
    %v3671 = vcvt.s32.f32 %v3669
    %v3672 = vcvt.s32.f32 %v3670
    %3673 = vmin.xlane.f32.xlu0 %v3672
    %v3674 = vpop.xlane.xlu0 %3673
    %vm3675 = vcmp.eq.f32.partialorder %v3672, %v3674
    %v3676 = vsel %vm3675, %v3671, inf
    %3677 = vmin.xlane.f32.xlu0 %v3676
    %v3678 = vpop.xlane.xlu0 %3677
    %v3679 = vcvt.f32.s32 %v3678
    %v3680 = vcvt.f32.s32 %v3674
    %v3681 = vshll.u32 %v3680, 16
    %v3682 = vadd.s32 %v3681, %v3679
    %vm3683 = vcmp.eq.s32.totalorder %v3682, %v246
    %v3684 = vsel %vm3683, 1, 0
    %v3685 = vcvt.s32.f32 %v3684
    %v3687 = vsel %vm253, %v3685, 0
    %3689 = vmatprep.subr.mxu0 0.0
    %3690 = vmatpush1.msra.mxu0 %v229
    %3691 = vmatprep.subr.mxu0 0.0
    %3692 = vmatpush1.msra.mxu0 %v230
    %3693 = vmatprep.subr.mxu0 0.0
    %3694 = vmatpush1.msra.mxu0 0.0
    %3695 = vmatprep.subr.mxu0 0.0
    %3696 = vmatpush1.msra.mxu0 0.0
    %3697 = vmatprep.subr.mxu0 0.0
    %3698 = vmatpush1.msra.mxu0 0.0
    %3699 = vmatprep.subr.mxu0 0.0
    %3700 = vmatpush1.msra.mxu0 0.0
    %3701 = vmatprep.subr.mxu0 0.0
    %3702 = vmatpush1.msra.mxu0 0.0
    %3703 = vmatprep.subr.mxu0 0.0
    %3704 = vmatpush1.msra.mxu0 0.0
    %3705 = vmatprep.subr.mxu0 0.0
    %3706 = vmatpush1.msra.mxu0 0.0
    %3707 = vmatprep.subr.mxu0 0.0
    %3708 = vmatpush1.msra.mxu0 0.0
    %3709 = vmatprep.subr.mxu0 0.0
    %3710 = vmatpush1.msra.mxu0 0.0
    %3711 = vmatprep.subr.mxu0 0.0
    %3712 = vmatpush1.msra.mxu0 0.0
    %3713 = vmatprep.subr.mxu0 0.0
    %3714 = vmatpush1.msra.mxu0 0.0
    %3715 = vmatprep.subr.mxu0 0.0
    %3716 = vmatpush1.msra.mxu0 0.0
    %3717 = vmatprep.subr.mxu0 0.0
    %3718 = vmatpush1.msra.mxu0 0.0
    %3719 = vmatprep.subr.mxu0 0.0
    %3720 = vmatpush1.msra.mxu0 0.0
    %3721 = vmatprep.subr.mxu0 0.0
    %3722 = vmatpush1.msra.mxu0 0.0
    %3723 = vmatprep.subr.mxu0 0.0
    %3724 = vmatpush1.msra.mxu0 0.0
    %3725 = vmatprep.subr.mxu0 0.0
    %3726 = vmatpush1.msra.mxu0 0.0
    %3727 = vmatprep.subr.mxu0 0.0
    %3728 = vmatpush1.msra.mxu0 0.0
    %3729 = vmatprep.subr.mxu0 0.0
    %3730 = vmatpush1.msra.mxu0 0.0
    %3731 = vmatprep.subr.mxu0 0.0
    %3732 = vmatpush1.msra.mxu0 0.0
    %3733 = vmatprep.subr.mxu0 0.0
    %3734 = vmatpush1.msra.mxu0 0.0
    %3735 = vmatprep.subr.mxu0 0.0
    %3736 = vmatpush1.msra.mxu0 0.0
    %3737 = vmatprep.subr.mxu0 0.0
    %3738 = vmatpush1.msra.mxu0 0.0
    %3739 = vmatprep.subr.mxu0 0.0
    %3740 = vmatpush1.msra.mxu0 0.0
    %3741 = vmatprep.subr.mxu0 0.0
    %3742 = vmatpush1.msra.mxu0 0.0
    %3743 = vmatprep.subr.mxu0 0.0
    %3744 = vmatpush1.msra.mxu0 0.0
    %3745 = vmatprep.subr.mxu0 0.0
    %3746 = vmatpush1.msra.mxu0 0.0
    %3747 = vmatprep.subr.mxu0 0.0
    %3748 = vmatpush1.msra.mxu0 0.0
    %3749 = vmatprep.subr.mxu0 0.0
    %3750 = vmatpush1.msra.mxu0 0.0
    %3751 = vmatprep.subr.mxu0 0.0
    %3752 = vmatpush1.msra.mxu0 0.0
    %3753 = vmatprep.mubr.f32.mxu0 0.0
    %3754 = vmatmul.mubr.f32.gmra.mrb[0].mxu0 %v3687
    %v3755 = vpop.f32.mrb[0].mxu0
    %v3756 = vadd.f32 0.0, %v3755
    %v3757 = vpop.f32.mrb[0].mxu0
    %3758 = vdwg.mxu0
    %v3760 = vsel %vm253, %v3756, 0
    %3762 = vmatprep.subr.mxu0 0.0
    %3763 = vmatpush1.msra.mxu0 %v231
    %3764 = vmatprep.subr.mxu0 0.0
    %3765 = vmatpush1.msra.mxu0 %v232
    %3766 = vmatprep.subr.mxu0 0.0
    %3767 = vmatpush1.msra.mxu0 0.0
    %3768 = vmatprep.subr.mxu0 0.0
    %3769 = vmatpush1.msra.mxu0 0.0
    %3770 = vmatprep.subr.mxu0 0.0
    %3771 = vmatpush1.msra.mxu0 0.0
    %3772 = vmatprep.subr.mxu0 0.0
    %3773 = vmatpush1.msra.mxu0 0.0
    %3774 = vmatprep.subr.mxu0 0.0
    %3775 = vmatpush1.msra.mxu0 0.0
    %3776 = vmatprep.subr.mxu0 0.0
    %3777 = vmatpush1.msra.mxu0 0.0
    %3778 = vmatprep.subr.mxu0 0.0
    %3779 = vmatpush1.msra.mxu0 0.0
    %3780 = vmatprep.subr.mxu0 0.0
    %3781 = vmatpush1.msra.mxu0 0.0
    %3782 = vmatprep.subr.mxu0 0.0
    %3783 = vmatpush1.msra.mxu0 0.0
    %3784 = vmatprep.subr.mxu0 0.0
    %3785 = vmatpush1.msra.mxu0 0.0
    %3786 = vmatprep.subr.mxu0 0.0
    %3787 = vmatpush1.msra.mxu0 0.0
    %3788 = vmatprep.subr.mxu0 0.0
    %3789 = vmatpush1.msra.mxu0 0.0
    %3790 = vmatprep.subr.mxu0 0.0
    %3791 = vmatpush1.msra.mxu0 0.0
    %3792 = vmatprep.subr.mxu0 0.0
    %3793 = vmatpush1.msra.mxu0 0.0
    %3794 = vmatprep.subr.mxu0 0.0
    %3795 = vmatpush1.msra.mxu0 0.0
    %3796 = vmatprep.subr.mxu0 0.0
    %3797 = vmatpush1.msra.mxu0 0.0
    %3798 = vmatprep.subr.mxu0 0.0
    %3799 = vmatpush1.msra.mxu0 0.0
    %3800 = vmatprep.subr.mxu0 0.0
    %3801 = vmatpush1.msra.mxu0 0.0
    %3802 = vmatprep.subr.mxu0 0.0
    %3803 = vmatpush1.msra.mxu0 0.0
    %3804 = vmatprep.subr.mxu0 0.0
    %3805 = vmatpush1.msra.mxu0 0.0
    %3806 = vmatprep.subr.mxu0 0.0
    %3807 = vmatpush1.msra.mxu0 0.0
    %3808 = vmatprep.subr.mxu0 0.0
    %3809 = vmatpush1.msra.mxu0 0.0
    %3810 = vmatprep.subr.mxu0 0.0
    %3811 = vmatpush1.msra.mxu0 0.0
    %3812 = vmatprep.subr.mxu0 0.0
    %3813 = vmatpush1.msra.mxu0 0.0
    %3814 = vmatprep.subr.mxu0 0.0
    %3815 = vmatpush1.msra.mxu0 0.0
    %3816 = vmatprep.subr.mxu0 0.0
    %3817 = vmatpush1.msra.mxu0 0.0
    %3818 = vmatprep.subr.mxu0 0.0
    %3819 = vmatpush1.msra.mxu0 0.0
    %3820 = vmatprep.subr.mxu0 0.0
    %3821 = vmatpush1.msra.mxu0 0.0
    %3822 = vmatprep.subr.mxu0 0.0
    %3823 = vmatpush1.msra.mxu0 0.0
    %3824 = vmatprep.subr.mxu0 0.0
    %3825 = vmatpush1.msra.mxu0 0.0
    %3826 = vmatprep.mubr.f32.mxu0 0.0
    %3827 = vmatmul.mubr.f32.gmra.mrb[0].mxu0 %v3760
    %v3828 = vpop.f32.mrb[0].mxu0
    %v3829 = vadd.f32 %v2038, %v3828
    %v3830 = vpop.f32.mrb[0].mxu0
    %3831 = vdwg.mxu0
    %3832 = vmatprep.subr.mxu0 0.0
    %3833 = vmatpush1.msra.mxu0 %v233
    %3834 = vmatprep.subr.mxu0 0.0
    %3835 = vmatpush1.msra.mxu0 %v234
    %3836 = vmatprep.subr.mxu0 0.0
    %3837 = vmatpush1.msra.mxu0 %v235
    %3838 = vmatprep.subr.mxu0 0.0
    %3839 = vmatpush1.msra.mxu0 %v236
    %3840 = vmatprep.subr.mxu0 0.0
    %3841 = vmatpush1.msra.mxu0 0.0
    %3842 = vmatprep.subr.mxu0 0.0
    %3843 = vmatpush1.msra.mxu0 0.0
    %3844 = vmatprep.subr.mxu0 0.0
    %3845 = vmatpush1.msra.mxu0 0.0
    %3846 = vmatprep.subr.mxu0 0.0
    %3847 = vmatpush1.msra.mxu0 0.0
    %3848 = vmatprep.subr.mxu0 0.0
    %3849 = vmatpush1.msra.mxu0 0.0
    %3850 = vmatprep.subr.mxu0 0.0
    %3851 = vmatpush1.msra.mxu0 0.0
    %3852 = vmatprep.subr.mxu0 0.0
    %3853 = vmatpush1.msra.mxu0 0.0
    %3854 = vmatprep.subr.mxu0 0.0
    %3855 = vmatpush1.msra.mxu0 0.0
    %3856 = vmatprep.subr.mxu0 0.0
    %3857 = vmatpush1.msra.mxu0 0.0
    %3858 = vmatprep.subr.mxu0 0.0
    %3859 = vmatpush1.msra.mxu0 0.0
    %3860 = vmatprep.subr.mxu0 0.0
    %3861 = vmatpush1.msra.mxu0 0.0
    %3862 = vmatprep.subr.mxu0 0.0
    %3863 = vmatpush1.msra.mxu0 0.0
    %3864 = vmatprep.subr.mxu0 0.0
    %3865 = vmatpush1.msra.mxu0 0.0
    %3866 = vmatprep.subr.mxu0 0.0
    %3867 = vmatpush1.msra.mxu0 0.0
    %3868 = vmatprep.subr.mxu0 0.0
    %3869 = vmatpush1.msra.mxu0 0.0
    %3870 = vmatprep.subr.mxu0 0.0
    %3871 = vmatpush1.msra.mxu0 0.0
    %3872 = vmatprep.subr.mxu0 0.0
    %3873 = vmatpush1.msra.mxu0 0.0
    %3874 = vmatprep.subr.mxu0 0.0
    %3875 = vmatpush1.msra.mxu0 0.0
    %3876 = vmatprep.subr.mxu0 0.0
    %3877 = vmatpush1.msra.mxu0 0.0
    %3878 = vmatprep.subr.mxu0 0.0
    %3879 = vmatpush1.msra.mxu0 0.0
    %3880 = vmatprep.subr.mxu0 0.0
    %3881 = vmatpush1.msra.mxu0 0.0
    %3882 = vmatprep.subr.mxu0 0.0
    %3883 = vmatpush1.msra.mxu0 0.0
    %3884 = vmatprep.subr.mxu0 0.0
    %3885 = vmatpush1.msra.mxu0 0.0
    %3886 = vmatprep.subr.mxu0 0.0
    %3887 = vmatpush1.msra.mxu0 0.0
    %3888 = vmatprep.subr.mxu0 0.0
    %3889 = vmatpush1.msra.mxu0 0.0
    %3890 = vmatprep.subr.mxu0 0.0
    %3891 = vmatpush1.msra.mxu0 0.0
    %3892 = vmatprep.subr.mxu0 0.0
    %3893 = vmatpush1.msra.mxu0 0.0
    %3894 = vmatprep.subr.mxu0 0.0
    %3895 = vmatpush1.msra.mxu0 0.0
    %3896 = vmatprep.mubr.f32.mxu0 0.0
    %3897 = vmatmul.mubr.f32.gmra.mrb[0].mxu0 %v3591
    %v3898 = vpop.f32.mrb[0].mxu0
    %v3899 = vadd.f32 %v2117, %v3898
    %v3900 = vpop.f32.mrb[0].mxu0
    %3901 = vdwg.mxu0
    %v3902 = vadd.f32 %v3829, %v3899
    %v3903 = vxor.u32 %v3902, 2147483648
    %v3904 = vmul.f32 %v3903, 1.442695
    %v3905 = vpow.pop %v3904
    %v3906 = vadd.f32 %v3905, 1.0
    %v3907 = vrcp.pop %v3906
    %v3908 = vmul.f32 1.0, %v3907
    %3910 = vrot.lane.b32.xlu0 %v3899, 64
    %v3911 = vpop.permute.xlu0 %3910
    %v3913 = vmul.f32 %v3908, %v3911
    %3915 = vrot.lane.b32.xlu0 %v3913, 64
    %v3916 = vpop.permute.xlu0 %3915
    %v3918 = vadd.f32 %v3829, %v3916
    %v3919 = vtanh.pop %v3918
    %v3920 = vsub.f32 1.0, %v3908
    %3922 = vrot.lane.b32.xlu0 %v3919, 96
    %v3923 = vpop.permute.xlu0 %3922
    %v3925 = vmul.f32 %v3920, %v3923
    %v3926 = vmul.f32 %v3908, %v3587
    %v3927 = vadd.f32 %v3925, %v3926
    %3929 = vrot.lane.b32.xlu0 %v3927, 96
    %v3930 = vpop.permute.xlu0 %3929
    %v3931 = vsel %vm412, %v3930, 0
    %3933 = vmatprep.subr.mxu0 0.0
    %3934 = vmatpush1.msra.mxu0 %v239
    %3935 = vmatprep.subr.mxu0 0.0
    %3936 = vmatpush1.msra.mxu0 %v240
    %3937 = vmatprep.subr.mxu0 0.0
    %3938 = vmatpush1.msra.mxu0 %v241
    %3939 = vmatprep.subr.mxu0 0.0
    %3940 = vmatpush1.msra.mxu0 %v242
    %3941 = vmatprep.subr.mxu0 0.0
    %3942 = vmatpush1.msra.mxu0 0.0
    %3943 = vmatprep.subr.mxu0 0.0
    %3944 = vmatpush1.msra.mxu0 0.0
    %3945 = vmatprep.subr.mxu0 0.0
    %3946 = vmatpush1.msra.mxu0 0.0
    %3947 = vmatprep.subr.mxu0 0.0
    %3948 = vmatpush1.msra.mxu0 0.0
    %3949 = vmatprep.subr.mxu0 0.0
    %3950 = vmatpush1.msra.mxu0 0.0
    %3951 = vmatprep.subr.mxu0 0.0
    %3952 = vmatpush1.msra.mxu0 0.0
    %3953 = vmatprep.subr.mxu0 0.0
    %3954 = vmatpush1.msra.mxu0 0.0
    %3955 = vmatprep.subr.mxu0 0.0
    %3956 = vmatpush1.msra.mxu0 0.0
    %3957 = vmatprep.subr.mxu0 0.0
    %3958 = vmatpush1.msra.mxu0 0.0
    %3959 = vmatprep.subr.mxu0 0.0
    %3960 = vmatpush1.msra.mxu0 0.0
    %3961 = vmatprep.subr.mxu0 0.0
    %3962 = vmatpush1.msra.mxu0 0.0
    %3963 = vmatprep.subr.mxu0 0.0
    %3964 = vmatpush1.msra.mxu0 0.0
    %3965 = vmatprep.subr.mxu0 0.0
    %3966 = vmatpush1.msra.mxu0 0.0
    %3967 = vmatprep.subr.mxu0 0.0
    %3968 = vmatpush1.msra.mxu0 0.0
    %3969 = vmatprep.subr.mxu0 0.0
    %3970 = vmatpush1.msra.mxu0 0.0
    %3971 = vmatprep.subr.mxu0 0.0
    %3972 = vmatpush1.msra.mxu0 0.0
    %3973 = vmatprep.subr.mxu0 0.0
    %3974 = vmatpush1.msra.mxu0 0.0
    %3975 = vmatprep.subr.mxu0 0.0
    %3976 = vmatpush1.msra.mxu0 0.0
    %3977 = vmatprep.subr.mxu0 0.0
    %3978 = vmatpush1.msra.mxu0 0.0
    %3979 = vmatprep.subr.mxu0 0.0
    %3980 = vmatpush1.msra.mxu0 0.0
    %3981 = vmatprep.subr.mxu0 0.0
    %3982 = vmatpush1.msra.mxu0 0.0
    %3983 = vmatprep.subr.mxu0 0.0
    %3984 = vmatpush1.msra.mxu0 0.0
    %3985 = vmatprep.subr.mxu0 0.0
    %3986 = vmatpush1.msra.mxu0 0.0
    %3987 = vmatprep.subr.mxu0 0.0
    %3988 = vmatpush1.msra.mxu0 0.0
    %3989 = vmatprep.subr.mxu0 0.0
    %3990 = vmatpush1.msra.mxu0 0.0
    %3991 = vmatprep.subr.mxu0 0.0
    %3992 = vmatpush1.msra.mxu0 0.0
    %3993 = vmatprep.subr.mxu0 0.0
    %3994 = vmatpush1.msra.mxu0 0.0
    %3995 = vmatprep.subr.mxu0 0.0
    %3996 = vmatpush1.msra.mxu0 0.0
    %3997 = vmatprep.mubr.f32.mxu0 0.0
    %3998 = vmatmul.mubr.f32.gmra.mrb[0].mxu0 %v3931
    %v3999 = vpop.f32.mrb[0].mxu0
    %v4000 = vadd.f32 %v2225, %v3999
    %v4001 = vpop.f32.mrb[0].mxu0
    %4002 = vdwg.mxu0
    %v4003 = vsel %vm2302, %v4000, -inf
    %4004 = vmax.xlane.f32.xlu0 %v4003
    %v4005 = vpop.xlane.xlu0 %4004
    %vm4006 = vcmp.eq.f32.partialorder %v4000, %v4005
    %v4007 = vsel %vm4006, %v246, 16
    %v4008 = vsel %vm2302, %v4007, 2147483647
    %v4009 = vand.u32 %v4008, 65535
    %v4010 = vshra.s32 %v4008, 16
    %v4011 = vcvt.s32.f32 %v4009
    %v4012 = vcvt.s32.f32 %v4010
    %4013 = vmin.xlane.f32.xlu0 %v4012
    %v4014 = vpop.xlane.xlu0 %4013
    %vm4015 = vcmp.eq.f32.partialorder %v4012, %v4014
    %v4016 = vsel %vm4015, %v4011, inf
    %4017 = vmin.xlane.f32.xlu0 %v4016
    %v4018 = vpop.xlane.xlu0 %4017
    %v4019 = vcvt.f32.s32 %v4018
    %v4020 = vcvt.f32.s32 %v4014
    %v4021 = vshll.u32 %v4020, 16
    %v4022 = vadd.s32 %v4021, %v4019
    %vm4023 = vcmp.eq.s32.totalorder %v4022, %v246
    %v4024 = vsel %vm4023, 1, 0
    %v4025 = vcvt.s32.f32 %v4024
    %v4027 = vsel %vm253, %v4025, 0
    %4029 = vmatprep.subr.mxu0 0.0
    %4030 = vmatpush1.msra.mxu0 %v229
    %4031 = vmatprep.subr.mxu0 0.0
    %4032 = vmatpush1.msra.mxu0 %v230
    %4033 = vmatprep.subr.mxu0 0.0
    %4034 = vmatpush1.msra.mxu0 0.0
    %4035 = vmatprep.subr.mxu0 0.0
    %4036 = vmatpush1.msra.mxu0 0.0
    %4037 = vmatprep.subr.mxu0 0.0
    %4038 = vmatpush1.msra.mxu0 0.0
    %4039 = vmatprep.subr.mxu0 0.0
    %4040 = vmatpush1.msra.mxu0 0.0
    %4041 = vmatprep.subr.mxu0 0.0
    %4042 = vmatpush1.msra.mxu0 0.0
    %4043 = vmatprep.subr.mxu0 0.0
    %4044 = vmatpush1.msra.mxu0 0.0
    %4045 = vmatprep.subr.mxu0 0.0
    %4046 = vmatpush1.msra.mxu0 0.0
    %4047 = vmatprep.subr.mxu0 0.0
    %4048 = vmatpush1.msra.mxu0 0.0
    %4049 = vmatprep.subr.mxu0 0.0
    %4050 = vmatpush1.msra.mxu0 0.0
    %4051 = vmatprep.subr.mxu0 0.0
    %4052 = vmatpush1.msra.mxu0 0.0
    %4053 = vmatprep.subr.mxu0 0.0
    %4054 = vmatpush1.msra.mxu0 0.0
    %4055 = vmatprep.subr.mxu0 0.0
    %4056 = vmatpush1.msra.mxu0 0.0
    %4057 = vmatprep.subr.mxu0 0.0
    %4058 = vmatpush1.msra.mxu0 0.0
    %4059 = vmatprep.subr.mxu0 0.0
    %4060 = vmatpush1.msra.mxu0 0.0
    %4061 = vmatprep.subr.mxu0 0.0
    %4062 = vmatpush1.msra.mxu0 0.0
    %4063 = vmatprep.subr.mxu0 0.0
    %4064 = vmatpush1.msra.mxu0 0.0
    %4065 = vmatprep.subr.mxu0 0.0
    %4066 = vmatpush1.msra.mxu0 0.0
    %4067 = vmatprep.subr.mxu0 0.0
    %4068 = vmatpush1.msra.mxu0 0.0
    %4069 = vmatprep.subr.mxu0 0.0
    %4070 = vmatpush1.msra.mxu0 0.0
    %4071 = vmatprep.subr.mxu0 0.0
    %4072 = vmatpush1.msra.mxu0 0.0
    %4073 = vmatprep.subr.mxu0 0.0
    %4074 = vmatpush1.msra.mxu0 0.0
    %4075 = vmatprep.subr.mxu0 0.0
    %4076 = vmatpush1.msra.mxu0 0.0
    %4077 = vmatprep.subr.mxu0 0.0
    %4078 = vmatpush1.msra.mxu0 0.0
    %4079 = vmatprep.subr.mxu0 0.0
    %4080 = vmatpush1.msra.mxu0 0.0
    %4081 = vmatprep.subr.mxu0 0.0
    %4082 = vmatpush1.msra.mxu0 0.0
    %4083 = vmatprep.subr.mxu0 0.0
    %4084 = vmatpush1.msra.mxu0 0.0
    %4085 = vmatprep.subr.mxu0 0.0
    %4086 = vmatpush1.msra.mxu0 0.0
    %4087 = vmatprep.subr.mxu0 0.0
    %4088 = vmatpush1.msra.mxu0 0.0
    %4089 = vmatprep.subr.mxu0 0.0
    %4090 = vmatpush1.msra.mxu0 0.0
    %4091 = vmatprep.subr.mxu0 0.0
    %4092 = vmatpush1.msra.mxu0 0.0
    %4093 = vmatprep.mubr.f32.mxu0 0.0
    %4094 = vmatmul.mubr.f32.gmra.mrb[0].mxu0 %v4027
    %v4095 = vpop.f32.mrb[0].mxu0
    %v4096 = vadd.f32 0.0, %v4095
    %v4097 = vpop.f32.mrb[0].mxu0
    %4098 = vdwg.mxu0
    %v4100 = vsel %vm253, %v4096, 0
    %4102 = vmatprep.subr.mxu0 0.0
    %4103 = vmatpush1.msra.mxu0 %v231
    %4104 = vmatprep.subr.mxu0 0.0
    %4105 = vmatpush1.msra.mxu0 %v232
    %4106 = vmatprep.subr.mxu0 0.0
    %4107 = vmatpush1.msra.mxu0 0.0
    %4108 = vmatprep.subr.mxu0 0.0
    %4109 = vmatpush1.msra.mxu0 0.0
    %4110 = vmatprep.subr.mxu0 0.0
    %4111 = vmatpush1.msra.mxu0 0.0
    %4112 = vmatprep.subr.mxu0 0.0
    %4113 = vmatpush1.msra.mxu0 0.0
    %4114 = vmatprep.subr.mxu0 0.0
    %4115 = vmatpush1.msra.mxu0 0.0
    %4116 = vmatprep.subr.mxu0 0.0
    %4117 = vmatpush1.msra.mxu0 0.0
    %4118 = vmatprep.subr.mxu0 0.0
    %4119 = vmatpush1.msra.mxu0 0.0
    %4120 = vmatprep.subr.mxu0 0.0
    %4121 = vmatpush1.msra.mxu0 0.0
    %4122 = vmatprep.subr.mxu0 0.0
    %4123 = vmatpush1.msra.mxu0 0.0
    %4124 = vmatprep.subr.mxu0 0.0
    %4125 = vmatpush1.msra.mxu0 0.0
    %4126 = vmatprep.subr.mxu0 0.0
    %4127 = vmatpush1.msra.mxu0 0.0
    %4128 = vmatprep.subr.mxu0 0.0
    %4129 = vmatpush1.msra.mxu0 0.0
    %4130 = vmatprep.subr.mxu0 0.0
    %4131 = vmatpush1.msra.mxu0 0.0
    %4132 = vmatprep.subr.mxu0 0.0
    %4133 = vmatpush1.msra.mxu0 0.0
    %4134 = vmatprep.subr.mxu0 0.0
    %4135 = vmatpush1.msra.mxu0 0.0
    %4136 = vmatprep.subr.mxu0 0.0
    %4137 = vmatpush1.msra.mxu0 0.0
    %4138 = vmatprep.subr.mxu0 0.0
    %4139 = vmatpush1.msra.mxu0 0.0
    %4140 = vmatprep.subr.mxu0 0.0
    %4141 = vmatpush1.msra.mxu0 0.0
    %4142 = vmatprep.subr.mxu0 0.0
    %4143 = vmatpush1.msra.mxu0 0.0
    %4144 = vmatprep.subr.mxu0 0.0
    %4145 = vmatpush1.msra.mxu0 0.0
    %4146 = vmatprep.subr.mxu0 0.0
    %4147 = vmatpush1.msra.mxu0 0.0
    %4148 = vmatprep.subr.mxu0 0.0
    %4149 = vmatpush1.msra.mxu0 0.0
    %4150 = vmatprep.subr.mxu0 0.0
    %4151 = vmatpush1.msra.mxu0 0.0
    %4152 = vmatprep.subr.mxu0 0.0
    %4153 = vmatpush1.msra.mxu0 0.0
    %4154 = vmatprep.subr.mxu0 0.0
    %4155 = vmatpush1.msra.mxu0 0.0
    %4156 = vmatprep.subr.mxu0 0.0
    %4157 = vmatpush1.msra.mxu0 0.0
    %4158 = vmatprep.subr.mxu0 0.0
    %4159 = vmatpush1.msra.mxu0 0.0
    %4160 = vmatprep.subr.mxu0 0.0
    %4161 = vmatpush1.msra.mxu0 0.0
    %4162 = vmatprep.subr.mxu0 0.0
    %4163 = vmatpush1.msra.mxu0 0.0
    %4164 = vmatprep.subr.mxu0 0.0
    %4165 = vmatpush1.msra.mxu0 0.0
    %4166 = vmatprep.mubr.f32.mxu0 0.0
    %4167 = vmatmul.mubr.f32.gmra.mrb[0].mxu0 %v4100
    %v4168 = vpop.f32.mrb[0].mxu0
    %v4169 = vadd.f32 %v2038, %v4168
    %v4170 = vpop.f32.mrb[0].mxu0
    %4171 = vdwg.mxu0
    %4172 = vmatprep.subr.mxu0 0.0
    %4173 = vmatpush1.msra.mxu0 %v233
    %4174 = vmatprep.subr.mxu0 0.0
    %4175 = vmatpush1.msra.mxu0 %v234
    %4176 = vmatprep.subr.mxu0 0.0
    %4177 = vmatpush1.msra.mxu0 %v235
    %4178 = vmatprep.subr.mxu0 0.0
    %4179 = vmatpush1.msra.mxu0 %v236
    %4180 = vmatprep.subr.mxu0 0.0
    %4181 = vmatpush1.msra.mxu0 0.0
    %4182 = vmatprep.subr.mxu0 0.0
    %4183 = vmatpush1.msra.mxu0 0.0
    %4184 = vmatprep.subr.mxu0 0.0
    %4185 = vmatpush1.msra.mxu0 0.0
    %4186 = vmatprep.subr.mxu0 0.0
    %4187 = vmatpush1.msra.mxu0 0.0
    %4188 = vmatprep.subr.mxu0 0.0
    %4189 = vmatpush1.msra.mxu0 0.0
    %4190 = vmatprep.subr.mxu0 0.0
    %4191 = vmatpush1.msra.mxu0 0.0
    %4192 = vmatprep.subr.mxu0 0.0
    %4193 = vmatpush1.msra.mxu0 0.0
    %4194 = vmatprep.subr.mxu0 0.0
    %4195 = vmatpush1.msra.mxu0 0.0
    %4196 = vmatprep.subr.mxu0 0.0
    %4197 = vmatpush1.msra.mxu0 0.0
    %4198 = vmatprep.subr.mxu0 0.0
    %4199 = vmatpush1.msra.mxu0 0.0
    %4200 = vmatprep.subr.mxu0 0.0
    %4201 = vmatpush1.msra.mxu0 0.0
    %4202 = vmatprep.subr.mxu0 0.0
    %4203 = vmatpush1.msra.mxu0 0.0
    %4204 = vmatprep.subr.mxu0 0.0
    %4205 = vmatpush1.msra.mxu0 0.0
    %4206 = vmatprep.subr.mxu0 0.0
    %4207 = vmatpush1.msra.mxu0 0.0
    %4208 = vmatprep.subr.mxu0 0.0
    %4209 = vmatpush1.msra.mxu0 0.0
    %4210 = vmatprep.subr.mxu0 0.0
    %4211 = vmatpush1.msra.mxu0 0.0
    %4212 = vmatprep.subr.mxu0 0.0
    %4213 = vmatpush1.msra.mxu0 0.0
    %4214 = vmatprep.subr.mxu0 0.0
    %4215 = vmatpush1.msra.mxu0 0.0
    %4216 = vmatprep.subr.mxu0 0.0
    %4217 = vmatpush1.msra.mxu0 0.0
    %4218 = vmatprep.subr.mxu0 0.0
    %4219 = vmatpush1.msra.mxu0 0.0
    %4220 = vmatprep.subr.mxu0 0.0
    %4221 = vmatpush1.msra.mxu0 0.0
    %4222 = vmatprep.subr.mxu0 0.0
    %4223 = vmatpush1.msra.mxu0 0.0
    %4224 = vmatprep.subr.mxu0 0.0
    %4225 = vmatpush1.msra.mxu0 0.0
    %4226 = vmatprep.subr.mxu0 0.0
    %4227 = vmatpush1.msra.mxu0 0.0
    %4228 = vmatprep.subr.mxu0 0.0
    %4229 = vmatpush1.msra.mxu0 0.0
    %4230 = vmatprep.subr.mxu0 0.0
    %4231 = vmatpush1.msra.mxu0 0.0
    %4232 = vmatprep.subr.mxu0 0.0
    %4233 = vmatpush1.msra.mxu0 0.0
    %4234 = vmatprep.subr.mxu0 0.0
    %4235 = vmatpush1.msra.mxu0 0.0
    %4236 = vmatprep.mubr.f32.mxu0 0.0
    %4237 = vmatmul.mubr.f32.gmra.mrb[0].mxu0 %v3931
    %v4238 = vpop.f32.mrb[0].mxu0
    %v4239 = vadd.f32 %v2117, %v4238
    %v4240 = vpop.f32.mrb[0].mxu0
    %4241 = vdwg.mxu0
    %v4242 = vadd.f32 %v4169, %v4239
    %v4243 = vxor.u32 %v4242, 2147483648
    %v4244 = vmul.f32 %v4243, 1.442695
    %v4245 = vpow.pop %v4244
    %v4246 = vadd.f32 %v4245, 1.0
    %v4247 = vrcp.pop %v4246
    %v4248 = vmul.f32 1.0, %v4247
    %4250 = vrot.lane.b32.xlu0 %v4239, 64
    %v4251 = vpop.permute.xlu0 %4250
    %v4253 = vmul.f32 %v4248, %v4251
    %4255 = vrot.lane.b32.xlu0 %v4253, 64
    %v4256 = vpop.permute.xlu0 %4255
    %v4258 = vadd.f32 %v4169, %v4256
    %v4259 = vtanh.pop %v4258
    %v4260 = vsub.f32 1.0, %v4248
    %4262 = vrot.lane.b32.xlu0 %v4259, 96
    %v4263 = vpop.permute.xlu0 %4262
    %v4265 = vmul.f32 %v4260, %v4263
    %v4266 = vmul.f32 %v4248, %v3927
    %v4267 = vadd.f32 %v4265, %v4266
    %4269 = vrot.lane.b32.xlu0 %v4267, 96
    %v4270 = vpop.permute.xlu0 %4269
    %v4271 = vsel %vm412, %v4270, 0
    %4273 = vmatprep.subr.mxu0 0.0
    %4274 = vmatpush1.msra.mxu0 %v239
    %4275 = vmatprep.subr.mxu0 0.0
    %4276 = vmatpush1.msra.mxu0 %v240
    %4277 = vmatprep.subr.mxu0 0.0
    %4278 = vmatpush1.msra.mxu0 %v241
    %4279 = vmatprep.subr.mxu0 0.0
    %4280 = vmatpush1.msra.mxu0 %v242
    %4281 = vmatprep.subr.mxu0 0.0
    %4282 = vmatpush1.msra.mxu0 0.0
    %4283 = vmatprep.subr.mxu0 0.0
    %4284 = vmatpush1.msra.mxu0 0.0
    %4285 = vmatprep.subr.mxu0 0.0
    %4286 = vmatpush1.msra.mxu0 0.0
    %4287 = vmatprep.subr.mxu0 0.0
    %4288 = vmatpush1.msra.mxu0 0.0
    %4289 = vmatprep.subr.mxu0 0.0
    %4290 = vmatpush1.msra.mxu0 0.0
    %4291 = vmatprep.subr.mxu0 0.0
    %4292 = vmatpush1.msra.mxu0 0.0
    %4293 = vmatprep.subr.mxu0 0.0
    %4294 = vmatpush1.msra.mxu0 0.0
    %4295 = vmatprep.subr.mxu0 0.0
    %4296 = vmatpush1.msra.mxu0 0.0
    %4297 = vmatprep.subr.mxu0 0.0
    %4298 = vmatpush1.msra.mxu0 0.0
    %4299 = vmatprep.subr.mxu0 0.0
    %4300 = vmatpush1.msra.mxu0 0.0
    %4301 = vmatprep.subr.mxu0 0.0
    %4302 = vmatpush1.msra.mxu0 0.0
    %4303 = vmatprep.subr.mxu0 0.0
    %4304 = vmatpush1.msra.mxu0 0.0
    %4305 = vmatprep.subr.mxu0 0.0
    %4306 = vmatpush1.msra.mxu0 0.0
    %4307 = vmatprep.subr.mxu0 0.0
    %4308 = vmatpush1.msra.mxu0 0.0
    %4309 = vmatprep.subr.mxu0 0.0
    %4310 = vmatpush1.msra.mxu0 0.0
    %4311 = vmatprep.subr.mxu0 0.0
    %4312 = vmatpush1.msra.mxu0 0.0
    %4313 = vmatprep.subr.mxu0 0.0
    %4314 = vmatpush1.msra.mxu0 0.0
    %4315 = vmatprep.subr.mxu0 0.0
    %4316 = vmatpush1.msra.mxu0 0.0
    %4317 = vmatprep.subr.mxu0 0.0
    %4318 = vmatpush1.msra.mxu0 0.0
    %4319 = vmatprep.subr.mxu0 0.0
    %4320 = vmatpush1.msra.mxu0 0.0
    %4321 = vmatprep.subr.mxu0 0.0
    %4322 = vmatpush1.msra.mxu0 0.0
    %4323 = vmatprep.subr.mxu0 0.0
    %4324 = vmatpush1.msra.mxu0 0.0
    %4325 = vmatprep.subr.mxu0 0.0
    %4326 = vmatpush1.msra.mxu0 0.0
    %4327 = vmatprep.subr.mxu0 0.0
    %4328 = vmatpush1.msra.mxu0 0.0
    %4329 = vmatprep.subr.mxu0 0.0
    %4330 = vmatpush1.msra.mxu0 0.0
    %4331 = vmatprep.subr.mxu0 0.0
    %4332 = vmatpush1.msra.mxu0 0.0
    %4333 = vmatprep.subr.mxu0 0.0
    %4334 = vmatpush1.msra.mxu0 0.0
    %4335 = vmatprep.subr.mxu0 0.0
    %4336 = vmatpush1.msra.mxu0 0.0
    %4337 = vmatprep.mubr.f32.mxu0 0.0
    %4338 = vmatmul.mubr.f32.gmra.mrb[0].mxu0 %v4271
    %v4339 = vpop.f32.mrb[0].mxu0
    %v4340 = vadd.f32 %v2225, %v4339
    %v4341 = vpop.f32.mrb[0].mxu0
    %4342 = vdwg.mxu0
    %4344 = vrot.lane.b32.xlu0 %v2299, 16
    %v4345 = vpop.permute.xlu0 %4344
    %4348 = vrot.lane.b32.xlu0 %v2640, 32
    %v4349 = vpop.permute.xlu0 %4348
    %4352 = vrot.lane.b32.xlu0 %v2980, 48
    %v4353 = vpop.permute.xlu0 %4352
    %4356 = vrot.lane.b32.xlu0 %v3320, 64
    %v4357 = vpop.permute.xlu0 %4356
    %4360 = vrot.lane.b32.xlu0 %v3660, 80
    %v4361 = vpop.permute.xlu0 %4360
    %4364 = vrot.lane.b32.xlu0 %v4000, 96
    %v4365 = vpop.permute.xlu0 %4364
    %4368 = vrot.lane.b32.xlu0 %v4340, 112
    %v4369 = vpop.permute.xlu0 %4368
    %v4371 = vsel %vm253, 0.0, %v4345
    %v4372 = vsel %vm412, %v4371, %v4349
    %vm4373 = vcmask 392192
    %v4374 = vsel %vm4373, %v4372, %v4353
    %vm4375 = vcmask 523264
    %v4376 = vsel %vm4375, %v4374, %v4357
    %vm4377 = vcmask 654336
    %v4378 = vsel %vm4377, %v4376, %v4361
    %vm4379 = vcmask 785408
    %v4380 = vsel %vm4379, %v4378, %v4365
    %vm4381 = vcmask 916480
    %v4382 = vsel %vm4381, %v4380, %v4369
    %4383 = vst [vmem:[%s22] sm:$0x3] %v4382
    %4385 = vst.msk [vmem:[#allocation26] sm:$0x3] %vm1950, %v4270
    // Predicated region
    $region126: #{vae_forward.1} parent=1 // pred_check
      _
    $region127: #{vae_forward.1} parent=1 // pred_check_branch
      %4387 = sbr.rel (0) target = $region129
    $region128: #{vae_forward.1} parent=1 // pred_region
      %s4389 = ssub.s32 32, 32
      %4390 = vsyncadd [#allocation4], %s4389
      %s4392 = sshll.u32 [#allocation22], 4
      %s4393 = int_to_ptr.vmem [resolvable:$true] %s4392
      %4395 = dma.vmem_to_hbm [thread:$0]  %s4393, 32, %s19, [#allocation4]
    $region129: #{vae_forward.1} parent=1 // pred_fallthru
      _
    // Predicated region
    $region130: #{vae_forward.1} parent=1 // pred_check
      _
    $region131: #{vae_forward.1} parent=1 // pred_check_branch
      %4397 = sbr.rel (0) target = $region133
    $region132: #{vae_forward.1} parent=1 // pred_region
      %s4399 = ssub.s32 32, 32
      %4400 = vsyncadd [#allocation24], %s4399
      %s4402 = sshll.u32 [#allocation23], 4
      %s4403 = int_to_ptr.vmem [resolvable:$true] %s4402
      %4405 = dma.vmem_to_hbm [thread:$0]  %s4403, 32, %s20, [#allocation24]
    $region133: #{vae_forward.1} parent=1 // pred_fallthru
      _
    // Predicated region
    $region134: #{vae_forward.1} parent=1 // pred_check
      _
    $region135: #{vae_forward.1} parent=1 // pred_check_branch
      %4407 = sbr.rel (0) target = $region137
    $region136: #{vae_forward.1} parent=1 // pred_region
      %s4409 = ssub.s32 32, 32
      %4410 = vsyncadd [#allocation24], %s4409
      %s4412 = sshll.u32 [#allocation25], 4
      %s4413 = int_to_ptr.vmem [resolvable:$true] %s4412
      %4415 = dma.vmem_to_hbm [thread:$0]  %s4413, 32, %s21, [#allocation24]
    $region137: #{vae_forward.1} parent=1 // pred_fallthru
      _
    // Predicated region
    $region138: #{vae_forward.1} parent=1 // pred_check
      _
    $region139: #{vae_forward.1} parent=1 // pred_check_branch
      %4417 = sbr.rel (0) target = $region141
    $region140: #{vae_forward.1} parent=1 // pred_region
      _
    $region141: #{vae_forward.1} parent=1 // pred_fallthru
      _
    // Predicated region
    $region142: #{vae_forward.1} parent=1 // pred_check
      _
    $region143: #{vae_forward.1} parent=1 // pred_check_branch
      %4419 = sbr.rel (0) target = $region145
    $region144: #{vae_forward.1} parent=1 // pred_region
      %s4421 = ssub.s32 32, 32
      %4422 = vsyncadd [#allocation27], %s4421
      %s4424 = sshll.u32 [#allocation26], 4
      %s4425 = int_to_ptr.vmem [resolvable:$true] %s4424
      %4427 = dma.vmem_to_hbm [thread:$0]  %s4425, 32, %s23, [#allocation27]
    $region145: #{vae_forward.1} parent=1 // pred_fallthru
      _
    // Predicated region
    $region146: #{vae_forward.1} parent=1 // pred_check
      _
    $region147: #{vae_forward.1} parent=1 // pred_check_branch
      %4429 = sbr.rel (0) target = $region149
    $region148: #{vae_forward.1} parent=1 // pred_region
      %4430 = dma.done [#allocation4], 32
    $region149: #{vae_forward.1} parent=1 // pred_fallthru
      _
    // Predicated region
    $region150: #{vae_forward.1} parent=1 // pred_check
      _
    $region151: #{vae_forward.1} parent=1 // pred_check_branch
      %4432 = sbr.rel (0) target = $region153
    $region152: #{vae_forward.1} parent=1 // pred_region
      %4433 = dma.done [#allocation24], 32
    $region153: #{vae_forward.1} parent=1 // pred_fallthru
      _
    // Predicated region
    $region154: #{vae_forward.1} parent=1 // pred_check
      _
    $region155: #{vae_forward.1} parent=1 // pred_check_branch
      %4435 = sbr.rel (0) target = $region157
    $region156: #{vae_forward.1} parent=1 // pred_region
      %4436 = dma.done [#allocation24], 32
    $region157: #{vae_forward.1} parent=1 // pred_fallthru
      _
    // Predicated region
    $region158: #{vae_forward.1} parent=1 // pred_check
      _
    $region159: #{vae_forward.1} parent=1 // pred_check_branch
      %4438 = sbr.rel (0) target = $region161
    $region160: #{vae_forward.1} parent=1 // pred_region
      _
    $region161: #{vae_forward.1} parent=1 // pred_fallthru
      _
    // Predicated region
    $region162: #{vae_forward.1} parent=1 // pred_check
      _
    $region163: #{vae_forward.1} parent=1 // pred_check_branch
      %4440 = sbr.rel (0) target = $region165
    $region164: #{vae_forward.1} parent=1 // pred_region
      %4441 = dma.done [#allocation27], 32
    $region165: #{vae_forward.1} parent=1 // pred_fallthru
      _
    %4442 = vsyncpa [#allocation3], 1
    %4443 = vsyncpa [#allocation6], 1
    %4444 = vsyncpa [#allocation9], 1
    %4445 = vsyncpa [#allocation12], 1
    %4446 = vsyncpa [#allocation15], 1
    %4447 = vsyncpa [#allocation18], 1
    %4448 = vsyncpa [#allocation21], 1
    %4449 = vsyncpa [#allocation4], 1
    %4450 = vsyncpa [#allocation24], 1
    %4451 = vsyncpa [#allocation27], 1

</llo_original>
